<compile_context>
chip_gen: v7x
topology: tpu7x:2x2x1
jax: 0.10.0
libtpu: 0.0.40
codegen_flags: <defaults>
</compile_context>

<pallas_src>
import functools

import jax
import jax.numpy as jnp
from jax import lax
from jax.experimental import pallas as pl
from jax.experimental.pallas import tpu as pltpu


def _round_up(x, m):
    return ((x + m - 1) // m) * m


def _device_kind():
    try:
        return jax.devices()[0].device_kind.lower()
    except Exception:
        return ""


def _lstm_bidir_kernel(TS, Bp, Hp, w_dtype, fuse_dirs, unroll,
                       lens_ref, gin_f_ref, gin_b_ref, whh_hbm_ref,
                       h0_ref, c0_ref,
                       out_f_ref, out_b_ref, hfin_ref, cfin_ref,
                       whh_vmem, whh_sem, h_st, c_st):
    j = pl.program_id(0)
    nb = pl.num_programs(0)
    G = 4 * Hp

    @pl.when(j == 0)
    def _():
        # Load W_hh once into a single resident VMEM copy (no double-buffer).
        cp = pltpu.make_async_copy(whh_hbm_ref, whh_vmem, whh_sem)
        cp.start()
        cp.wait()
        h_st[...] = h0_ref[...]          # rows [0:Bp] forward, [Bp:2Bp] backward
        c_st[...] = c0_ref[...]

    lens = lens_ref[...]                 # (Bp, 1) int32

    def lstm_gates(gates, c_prev):
        # PyTorch gate order: i, f, g, o.  Hp is a multiple of 128 -> slices
        # are lane-aligned.
        i_g = jax.nn.sigmoid(gates[:, 0 * Hp:1 * Hp])
        f_g = jax.nn.sigmoid(gates[:, 1 * Hp:2 * Hp])
        g_g = jnp.tanh(gates[:, 2 * Hp:3 * Hp])
        o_g = jax.nn.sigmoid(gates[:, 3 * Hp:4 * Hp])
        c_new = f_g * c_prev + i_g * g_g
        h_new = o_g * jnp.tanh(c_new)
        return h_new, c_new

    def body(s, carry):
        # forward: local step s, global time t_f = j*TS + s
        # backward: local step TS-1-s (descending), global t_b
        t_f = j * TS + s
        sb = TS - 1 - s
        t_b = (nb - 1 - j) * TS + sb

        h_prev = h_st[...]               # (2Bp, Hp) f32
        c_prev = c_st[...]
        h_op = h_prev.astype(w_dtype)

        if fuse_dirs:
            # One wide MXU push per step for both directions; take the two
            # diagonal (Bp, 4Hp) blocks of the (2Bp, 8Hp) result.
            rec = jnp.dot(h_op, whh_vmem[...],
                          preferred_element_type=jnp.float32)
            rec_f = rec[:Bp, :G]
            rec_b = rec[Bp:, G:]
        else:
            rec_f = jnp.dot(h_op[:Bp], whh_vmem[:, :G],
                            preferred_element_type=jnp.float32)
            rec_b = jnp.dot(h_op[Bp:], whh_vmem[:, G:],
                            preferred_element_type=jnp.float32)

        # gin already holds x @ W_ih + (b_ih + b_hh), streamed as bf16.
        gates_f = gin_f_ref[s].astype(jnp.float32) + rec_f
        gates_b = gin_b_ref[sb].astype(jnp.float32) + rec_b

        hf_new, cf_new = lstm_gates(gates_f, c_prev[:Bp])
        hb_new, cb_new = lstm_gates(gates_b, c_prev[Bp:])

        m_f = t_f < lens                 # (Bp, 1) bool
        m_b = t_b < lens

        h_st[:Bp, :] = jnp.where(m_f, hf_new, h_prev[:Bp])
        c_st[:Bp, :] = jnp.where(m_f, cf_new, c_prev[:Bp])
        h_st[Bp:, :] = jnp.where(m_b, hb_new, h_prev[Bp:])
        c_st[Bp:, :] = jnp.where(m_b, cb_new, c_prev[Bp:])

        out_f_ref[s] = jnp.where(m_f, hf_new, 0.0)    # padded positions -> 0
        out_b_ref[sb] = jnp.where(m_b, hb_new, 0.0)
        return carry

    lax.fori_loop(0, TS, body, 0, unroll=unroll)

    # Resident final-state blocks (constant index_map): only the last write
    # matters.
    @pl.when(j == nb - 1)
    def _():
        hfin_ref[...] = h_st[...]
        cfin_ref[...] = c_st[...]


def encoder_forward(params, src_embedding, src_lens, *,
                    time_block=None, dot_dtype=jnp.bfloat16):
    """src_embedding: (B, T, E) f32, batch_first; src_lens: (B,) int32.

    Returns (output, (h_n, c_n)):
      output: (B, T, 2H)   zero at padded positions
      h_n, c_n: (2, B, H)  [forward, backward] final states

    dot_dtype=jnp.bfloat16 (default) streams the gate pre-activations and
    keeps W_hh resident in bf16 with f32 accumulation; states/nonlinearities
    stay f32.  Pass dot_dtype=jnp.float32 for a full-precision path.
    """
    B, T, E = src_embedding.shape
    H = params["hidden_size"]

    kind = _device_kind()
    is_v7 = ("v7" in kind) or ("tpu7" in kind)
    if time_block is None:
        time_block = 16 if is_v7 else 32       # smaller blocks on 64 MiB VMEM

    Bp = _round_up(B, 8)                       # sublane-dense batch
    Hp = _round_up(H, 128)                     # lane-dense hidden / gate slices
    G = 4 * Hp

    TS = int(max(1, min(time_block, T)))
    nb = -(-T // TS)                           # ceil(T / TS)
    T_pad = nb * TS

    f32 = jnp.float32

    # ---- pad + reorder inputs --------------------------------------------
    x_p = jnp.zeros((Bp, T, E), f32).at[:B].set(src_embedding.astype(f32))
    x_tm = jnp.transpose(x_p, (1, 0, 2))                        # (T, Bp, E)
    lens_p = jnp.zeros((Bp, 1), jnp.int32).at[:B, 0].set(
        src_lens.astype(jnp.int32))

    def pad_gate_mat(w, in_pad=None):
        # (4H, D) -> (4Hp, D or in_pad); zero-pad each gate block on H axis.
        D = w.shape[1]
        Dp = D if in_pad is None else in_pad
        out = jnp.zeros((4, Hp, Dp), f32).at[:, :H, :D].set(
            w.reshape(4, H, D).astype(f32))
        return out.reshape(4 * Hp, Dp)

    def pad_gate_vec(b):
        return jnp.zeros((4, Hp), f32).at[:, :H].set(
            b.reshape(4, H).astype(f32)).reshape(4 * Hp)

    def pad_state(v):                           # (H,) -> (Bp, Hp)
        vp = jnp.zeros((Hp,), f32).at[:H].set(v.astype(f32))
        return jnp.broadcast_to(vp, (Bp, Hp))

    # pre-transpose weights so everything is x @ W
    wih_f = pad_gate_mat(params["w_ih_f"]).T.astype(dot_dtype)     # (E, 4Hp)
    wih_b = pad_gate_mat(params["w_ih_b"]).T.astype(dot_dtype)
    whh_f = pad_gate_mat(params["w_hh_f"], Hp).T                   # (Hp, 4Hp)
    whh_b = pad_gate_mat(params["w_hh_b"], Hp).T
    whh_cat = jnp.concatenate([whh_f, whh_b], axis=1).astype(dot_dtype)  # (Hp,8Hp)
    b_f = pad_gate_vec(params["b_ih_f"] + params["b_hh_f"])
    b_b = pad_gate_vec(params["b_ih_b"] + params["b_hh_b"])

    h0_cat = jnp.concatenate([pad_state(params["h0"][0]),
                              pad_state(params["h0"][1])], axis=0)   # (2Bp,Hp)
    c0_cat = jnp.concatenate([pad_state(params["c0"][0]),
                              pad_state(params["c0"][1])], axis=0)

    # ---- hoisted input projection (off the serial chain, full MXU) --------
    def input_proj(w, b):
        g = jnp.einsum("tbe,eg->tbg", x_tm.astype(dot_dtype), w,
                       preferred_element_type=jnp.float32)
        return (g + b).astype(dot_dtype)       # stream pre-activations narrow

    gin_f = input_proj(wih_f, b_f)             # (T, Bp, 4Hp) dot_dtype
    gin_b = input_proj(wih_b, b_b)
    if T_pad != T:
        pad = ((0, T_pad - T), (0, 0), (0, 0))
        gin_f = jnp.pad(gin_f, pad)            # masked in-kernel anyway
        gin_b = jnp.pad(gin_b, pad)

    fuse_dirs = Bp < 128                       # one MXU push per step if small B
    unroll = int(max(1, min(TS, 8)))           # partial unroll: bound vregs

    kernel = functools.partial(_lstm_bidir_kernel, TS, Bp, Hp, dot_dtype,
                               fuse_dirs, unroll)

    grid_spec = pltpu.PrefetchScalarGridSpec(
        num_scalar_prefetch=0,
        grid=(nb,),
        in_specs=[
            pl.BlockSpec((Bp, 1), lambda j: (0, 0)),                  # lens
            pl.BlockSpec((TS, Bp, G), lambda j: (j, 0, 0)),           # gates fwd
            pl.BlockSpec((TS, Bp, G), lambda j: (nb - 1 - j, 0, 0)),  # gates bwd
            pl.BlockSpec(memory_space=pl.ANY),                        # W_hh (HBM)
            pl.BlockSpec((2 * Bp, Hp), lambda j: (0, 0)),             # h0 [f;b]
            pl.BlockSpec((2 * Bp, Hp), lambda j: (0, 0)),             # c0 [f;b]
        ],
        out_specs=[
            pl.BlockSpec((TS, Bp, Hp), lambda j: (j, 0, 0)),          # out fwd
            pl.BlockSpec((TS, Bp, Hp), lambda j: (nb - 1 - j, 0, 0)),  # out bwd
            pl.BlockSpec((2 * Bp, Hp), lambda j: (0, 0)),             # h_n [f;b]
            pl.BlockSpec((2 * Bp, Hp), lambda j: (0, 0)),             # c_n [f;b]
        ],
        scratch_shapes=[
            pltpu.VMEM((Hp, 2 * G), dot_dtype),     # resident W_hh (1 copy)
            pltpu.SemaphoreType.DMA,                # weight-load DMA sem
            pltpu.VMEM((2 * Bp, Hp), jnp.float32),  # h state  [fwd; bwd]
            pltpu.VMEM((2 * Bp, Hp), jnp.float32),  # c state
        ],
    )

    # Real double-buffered VMEM footprint + headroom, capped per generation
    # (v7x has 64 MiB physical -> cap well below it; v5e/v6e have 128 MiB).
    sbytes = jnp.dtype(dot_dtype).itemsize
    needed = (2 * 2 * TS * Bp * G * sbytes        # gin fwd/bwd, 2 bufs each
              + 2 * 2 * TS * Bp * Hp * 4          # out fwd/bwd, 2 bufs each
              + Hp * 2 * G * sbytes               # resident W_hh scratch
              + 2 * 2 * 2 * Bp * Hp * 4           # h0/c0 inputs, 2 bufs each
              + 2 * 2 * 2 * Bp * Hp * 4           # h_n/c_n outputs, 2 bufs each
              + 2 * 2 * Bp * Hp * 4               # h/c state scratch
              + 2 * Bp * 4)                       # lens
    if is_v7:
        vmem_cap = 56 << 20
    elif any(s in kind for s in ("v4", "v5", "v6")):
        vmem_cap = 100 << 20
    else:
        vmem_cap = 56 << 20
    vmem_limit = int(min(vmem_cap,
                         max(needed + needed // 4 + (1 << 20), 16 << 20)))

    out_f, out_b, h_fin, c_fin = pl.pallas_call(
        kernel,
        grid_spec=grid_spec,
        out_shape=(
            jax.ShapeDtypeStruct((T_pad, Bp, Hp), jnp.float32),
            jax.ShapeDtypeStruct((T_pad, Bp, Hp), jnp.float32),
            jax.ShapeDtypeStruct((2 * Bp, Hp), jnp.float32),
            jax.ShapeDtypeStruct((2 * Bp, Hp), jnp.float32),
        ),
        compiler_params=pltpu.CompilerParams(
            dimension_semantics=("arbitrary",),     # recurrence -> sequential
            vmem_limit_bytes=vmem_limit),
    )(lens_p, gin_f, gin_b, whh_cat, h0_cat, c0_cat)

    # Epilogue: drop time/batch/hidden padding, go batch-major, concat dirs.
    output = jnp.transpose(
        jnp.concatenate([out_f[:T, :B, :H], out_b[:T, :B, :H]], axis=-1),
        (1, 0, 2))                                              # (B, T, 2H)
    h_n = jnp.stack([h_fin[:B, :H], h_fin[Bp:Bp + B, :H]], axis=0)  # (2, B, H)
    c_n = jnp.stack([c_fin[:B, :H], c_fin[Bp:Bp + B, :H]], axis=0)
    return output, (h_n, c_n)


# --------------------------- pure-JAX reference ----------------------------
def reference_forward(params, src_embedding, src_lens):
    B, T, E = src_embedding.shape
    H = params["hidden_size"]

    def cell(x, h, c, wih, whh, b):
        g = x @ wih.T + h @ whh.T + b
        i_g = jax.nn.sigmoid(g[:, 0 * H:1 * H])
        f_g = jax.nn.sigmoid(g[:, 1 * H:2 * H])
        g_g = jnp.tanh(g[:, 2 * H:3 * H])
        o_g = jax.nn.sigmoid(g[:, 3 * H:4 * H])
        c_new = f_g * c + i_g * g_g
        return o_g * jnp.tanh(c_new), c_new

    b_f = params["b_ih_f"] + params["b_hh_f"]
    b_b = params["b_ih_b"] + params["b_hh_b"]
    hf = jnp.broadcast_to(params["h0"][0], (B, H))
    cf = jnp.broadcast_to(params["c0"][0], (B, H))
    hb = jnp.broadcast_to(params["h0"][1], (B, H))
    cb = jnp.broadcast_to(params["c0"][1], (B, H))

    outs_f, outs_b = [None] * T, [None] * T
    for t in range(T):
        hn, cn = cell(src_embedding[:, t], hf, cf,
                      params["w_ih_f"], params["w_hh_f"], b_f)
        m = (t < src_lens).astype(jnp.float32)[:, None]
        hf = m * hn + (1 - m) * hf
        cf = m * cn + (1 - m) * cf
        outs_f[t] = m * hf
    for t in range(T - 1, -1, -1):
        hn, cn = cell(src_embedding[:, t], hb, cb,
                      params["w_ih_b"], params["w_hh_b"], b_b)
        m = (t < src_lens).astype(jnp.float32)[:, None]
        hb = m * hn + (1 - m) * hb
        cb = m * cn + (1 - m) * cb
        outs_b[t] = m * hb
    out = jnp.concatenate([jnp.stack(outs_f, axis=1),
                           jnp.stack(outs_b, axis=1)], axis=-1)
    return out, (jnp.stack([hf, hb]), jnp.stack([cf, cb]))


def init_params(key, embed_size, hidden_size):
    ks = jax.random.split(key, 10)

    def xavier(k, shape):
        fan_in, fan_out = shape[1], shape[0]
        lim = (6.0 / (fan_in + fan_out)) ** 0.5
        return jax.random.uniform(k, shape, jnp.float32, -lim, lim)

    H, E = hidden_size, embed_size
    return {
        "hidden_size": H,
        "w_ih_f": xavier(ks[0], (4 * H, E)),
        "w_hh_f": xavier(ks[1], (4 * H, H)),
        "b_ih_f": 0.01 * jax.random.normal(ks[2], (4 * H,), jnp.float32),
        "b_hh_f": 0.01 * jax.random.normal(ks[3], (4 * H,), jnp.float32),
        "w_ih_b": xavier(ks[4], (4 * H, E)),
        "w_hh_b": xavier(ks[5], (4 * H, H)),
        "b_ih_b": 0.01 * jax.random.normal(ks[6], (4 * H,), jnp.float32),
        "b_hh_b": 0.01 * jax.random.normal(ks[7], (4 * H,), jnp.float32),
        "h0": xavier(ks[8], (2, H)),   # nn.ParameterList[0], xavier_uniform_
        "c0": xavier(ks[9], (2, H)),   # nn.ParameterList[1], xavier_uniform_
    }
    # TODO(synk): inter-layer dropout is a no-op for num_layers=1, so omitted.


if __name__ == "__main__":
    B, T, E, H = 4, 10, 32, 32
    key = jax.random.PRNGKey(0)
    k_param, k_x = jax.random.split(key)

    params = init_params(k_param, E, H)
    src_embedding = jax.random.normal(k_x, (B, T, E), jnp.float32)
    src_lens = jnp.array([10, 7, 3, 6], dtype=jnp.int32)   # max(len) == T

    ref_out, (ref_h, ref_c) = reference_forward(params, src_embedding, src_lens)

    # Full-precision path (tight tolerance); time_block=4 -> 3 time blocks,
    # exercises time padding (10 -> 12) and batch/hidden padding (4->8, 32->128).
    out32, (h32, c32) = encoder_forward(params, src_embedding, src_lens,
                                        time_block=4, dot_dtype=jnp.float32)
    jax.block_until_ready((out32, h32, c32))
    assert out32.shape == (B, T, 2 * H) and h32.shape == (2, B, H)
    assert jnp.allclose(out32, ref_out, atol=5e-3, rtol=5e-3)
    assert jnp.allclose(h32, ref_h, atol=5e-3, rtol=5e-3)
    assert jnp.allclose(c32, ref_c, atol=5e-3, rtol=5e-3)

    # Default bf16 path (bf16 gate streams + bf16 resident weights, f32
    # accumulation/state) — looser tolerance due to bf16 pre-activations.
    out, (h_n, c_n) = encoder_forward(params, src_embedding, src_lens,
                                      time_block=4)
    jax.block_until_ready((out, h_n, c_n))
    assert out.shape == (B, T, 2 * H) and h_n.shape == (2, B, H)
    assert jnp.allclose(out, ref_out, atol=4e-2, rtol=4e-2)
    assert jnp.allclose(h_n, ref_h, atol=4e-2, rtol=4e-2)
    assert jnp.allclose(c_n, ref_c, atol=4e-2, rtol=4e-2)

    print("KERNEL_OK")
</pallas_src>

<mosaic_0001>
module attributes {stable_mosaic.version = 11 : i64} {
  func.func @_lstm_bidir_kernel(%arg0: i32, %arg1: memref<8x1xi32, #tpu.memory_space<vmem>>, %arg2: memref<4x8x512xf32, #tpu.memory_space<vmem>>, %arg3: memref<4x8x512xf32, #tpu.memory_space<vmem>>, %arg4: memref<128x1024xf32, #tpu.memory_space<any>>, %arg5: memref<16x128xf32, #tpu.memory_space<vmem>>, %arg6: memref<16x128xf32, #tpu.memory_space<vmem>>, %arg7: memref<4x8x128xf32, #tpu.memory_space<vmem>>, %arg8: memref<4x8x128xf32, #tpu.memory_space<vmem>>, %arg9: memref<16x128xf32, #tpu.memory_space<vmem>>, %arg10: memref<16x128xf32, #tpu.memory_space<vmem>>, %arg11: memref<128x1024xf32, #tpu.memory_space<vmem>>, %arg12: memref<!tpu.dma_semaphore, #tpu.memory_space<semaphore_mem>>, %arg13: memref<16x128xf32, #tpu.memory_space<vmem>>, %arg14: memref<16x128xf32, #tpu.memory_space<vmem>>) attributes {dimension_semantics = [#tpu.dimension_semantics<arbitrary>], iteration_bounds = array<i64: 3>, scalar_prefetch = 0 : i64, scratch_operands = 4 : i64, tpu.core_type = #tpu.core_type<tc>, window_params = [{pipeline_mode = #tpu.pipeline_mode<synchronous>, transform_indices = @transform_0, window_bounds = array<i64: 8, 1>}, {transform_indices = @transform_1, window_bounds = array<i64: 4, 8, 512>}, {transform_indices = @transform_2, window_bounds = array<i64: 4, 8, 512>}, {}, {pipeline_mode = #tpu.pipeline_mode<synchronous>, transform_indices = @transform_4, window_bounds = array<i64: 16, 128>}, {pipeline_mode = #tpu.pipeline_mode<synchronous>, transform_indices = @transform_5, window_bounds = array<i64: 16, 128>}, {transform_indices = @transform_6, window_bounds = array<i64: 4, 8, 128>}, {transform_indices = @transform_7, window_bounds = array<i64: 4, 8, 128>}, {pipeline_mode = #tpu.pipeline_mode<synchronous>, transform_indices = @transform_8, window_bounds = array<i64: 16, 128>}, {pipeline_mode = #tpu.pipeline_mode<synchronous>, transform_indices = @transform_9, window_bounds = array<i64: 16, 128>}]} {
    %c0_i32 = arith.constant 0 : i32
    %0 = arith.cmpi eq, %arg0, %c0_i32 : i32
    %1 = arith.extui %0 : i1 to i32
    %c0_i32_0 = arith.constant 0 : i32
    %2 = arith.cmpi ne, %1, %c0_i32_0 : i32
    scf.if %2 {
      tpu.enqueue_dma source(%arg4 : memref<128x1024xf32, #tpu.memory_space<any>>) target(%arg11 : memref<128x1024xf32, #tpu.memory_space<vmem>>) target_semaphore(%arg12 : memref<!tpu.dma_semaphore, #tpu.memory_space<semaphore_mem>>)
      tpu.wait_dma2 semaphore(%arg12 : memref<!tpu.dma_semaphore, #tpu.memory_space<semaphore_mem>>) src(%arg4 : memref<128x1024xf32, #tpu.memory_space<any>>) dst(%arg11 : memref<128x1024xf32, #tpu.memory_space<vmem>>)
      %c0_143 = arith.constant 0 : index
      %c0_144 = arith.constant 0 : index
      %455 = vector.load %arg5[%c0_143, %c0_144] : memref<16x128xf32, #tpu.memory_space<vmem>>, vector<16x128xf32>
      %c0_145 = arith.constant 0 : index
      %c0_146 = arith.constant 0 : index
      %456 = vector.load %arg13[%c0_145, %c0_146] : memref<16x128xf32, #tpu.memory_space<vmem>>, vector<16x128xf32>
      tpu.vector_store %arg13[%c0_145, %c0_146], %455 {strides = array<i32>} : memref<16x128xf32, #tpu.memory_space<vmem>>, vector<16x128xf32>,
      %c0_147 = arith.constant 0 : index
      %c0_148 = arith.constant 0 : index
      %457 = vector.load %arg6[%c0_147, %c0_148] : memref<16x128xf32, #tpu.memory_space<vmem>>, vector<16x128xf32>
      %c0_149 = arith.constant 0 : index
      %c0_150 = arith.constant 0 : index
      %458 = vector.load %arg14[%c0_149, %c0_150] : memref<16x128xf32, #tpu.memory_space<vmem>>, vector<16x128xf32>
      tpu.vector_store %arg14[%c0_149, %c0_150], %457 {strides = array<i32>} : memref<16x128xf32, #tpu.memory_space<vmem>>, vector<16x128xf32>,
    } else {
    }
    %c0 = arith.constant 0 : index
    %c0_1 = arith.constant 0 : index
    %3 = vector.load %arg1[%c0, %c0_1] : memref<8x1xi32, #tpu.memory_space<vmem>>, vector<8x1xi32>
    %c0_i32_2 = arith.constant 0 : i32
    %c4_i32 = arith.constant 4 : i32
    %4 = arith.muli %arg0, %c4_i32 : i32
    %5 = arith.addi %4, %c0_i32_2 : i32
    %c3_i32 = arith.constant 3 : i32
    %6 = arith.subi %c3_i32, %c0_i32_2 : i32
    %c2_i32 = arith.constant 2 : i32
    %7 = arith.subi %c2_i32, %arg0 : i32
    %c4_i32_3 = arith.constant 4 : i32
    %8 = arith.muli %7, %c4_i32_3 : i32
    %9 = arith.addi %8, %6 : i32
    %c0_4 = arith.constant 0 : index
    %c0_5 = arith.constant 0 : index
    %10 = vector.load %arg13[%c0_4, %c0_5] : memref<16x128xf32, #tpu.memory_space<vmem>>, vector<16x128xf32>
    %c0_6 = arith.constant 0 : index
    %c0_7 = arith.constant 0 : index
    %11 = vector.load %arg14[%c0_6, %c0_7] : memref<16x128xf32, #tpu.memory_space<vmem>>, vector<16x128xf32>
    %c0_8 = arith.constant 0 : index
    %c0_9 = arith.constant 0 : index
    %12 = vector.load %arg11[%c0_8, %c0_9] : memref<128x1024xf32, #tpu.memory_space<vmem>>, vector<128x1024xf32>
    %cst = arith.constant dense<0.000000e+00> : vector<16x1024xf32>
    %13 = tpu.matmul %10, %12, %cst {dimension_numbers = #tpu.dot_dimension_numbers<[1], [0], [0], [1], [0, 0, 1, 1], [], []>} : vector<16x128xf32>, vector<128x1024xf32>, vector<16x1024xf32> -> vector<16x1024xf32>
    %14 = vector.extract_strided_slice %13 {offsets = [0, 0], sizes = [8, 512], strides = [1, 1]} : vector<16x1024xf32> to vector<8x512xf32>
    %15 = vector.extract_strided_slice %13 {offsets = [8, 512], sizes = [8, 512], strides = [1, 1]} : vector<16x1024xf32> to vector<8x512xf32>
    %16 = arith.index_cast %c0_i32_2 : i32 to index
    %c0_10 = arith.constant 0 : index
    %c0_11 = arith.constant 0 : index
    %17 = vector.load %arg2[%16, %c0_10, %c0_11] : memref<4x8x512xf32, #tpu.memory_space<vmem>>, vector<1x8x512xf32>
    %18 = vector.shape_cast %17 : vector<1x8x512xf32> to vector<8x512xf32>
    %19 = arith.addf %18, %14 : vector<8x512xf32>
    %20 = arith.index_cast %6 : i32 to index
    %c0_12 = arith.constant 0 : index
    %c0_13 = arith.constant 0 : index
    %21 = vector.load %arg3[%20, %c0_12, %c0_13] : memref<4x8x512xf32, #tpu.memory_space<vmem>>, vector<1x8x512xf32>
    %22 = vector.shape_cast %21 : vector<1x8x512xf32> to vector<8x512xf32>
    %23 = arith.addf %22, %15 : vector<8x512xf32>
    %24 = vector.extract_strided_slice %11 {offsets = [0, 0], sizes = [8, 128], strides = [1, 1]} : vector<16x128xf32> to vector<8x128xf32>
    %25 = vector.extract_strided_slice %19 {offsets = [0, 0], sizes = [8, 128], strides = [1, 1]} : vector<8x512xf32> to vector<8x128xf32>
    %26 = arith.negf %25 : vector<8x128xf32>
    %27 = math.exp %26 : vector<8x128xf32>
    %cst_14 = arith.constant 1.000000e+00 : f32
    %28 = vector.broadcast %cst_14 : f32 to vector<8x128xf32>
    %29 = arith.addf %28, %27 : vector<8x128xf32>
    %30 = arith.divf %28, %29 : vector<8x128xf32>
    %31 = vector.extract_strided_slice %19 {offsets = [0, 128], sizes = [8, 128], strides = [1, 1]} : vector<8x512xf32> to vector<8x128xf32>
    %32 = arith.negf %31 : vector<8x128xf32>
    %33 = math.exp %32 : vector<8x128xf32>
    %cst_15 = arith.constant 1.000000e+00 : f32
    %34 = vector.broadcast %cst_15 : f32 to vector<8x128xf32>
    %35 = arith.addf %34, %33 : vector<8x128xf32>
    %36 = arith.divf %34, %35 : vector<8x128xf32>
    %37 = vector.extract_strided_slice %19 {offsets = [0, 256], sizes = [8, 128], strides = [1, 1]} : vector<8x512xf32> to vector<8x128xf32>
    %38 = math.tanh %37 : vector<8x128xf32>
    %39 = vector.extract_strided_slice %19 {offsets = [0, 384], sizes = [8, 128], strides = [1, 1]} : vector<8x512xf32> to vector<8x128xf32>
    %40 = arith.negf %39 : vector<8x128xf32>
    %41 = math.exp %40 : vector<8x128xf32>
    %cst_16 = arith.constant 1.000000e+00 : f32
    %42 = vector.broadcast %cst_16 : f32 to vector<8x128xf32>
    %43 = arith.addf %42, %41 : vector<8x128xf32>
    %44 = arith.divf %42, %43 : vector<8x128xf32>
    %45 = arith.mulf %36, %24 : vector<8x128xf32>
    %46 = arith.mulf %30, %38 : vector<8x128xf32>
    %47 = arith.addf %45, %46 : vector<8x128xf32>
    %48 = math.tanh %47 : vector<8x128xf32>
    %49 = arith.mulf %44, %48 : vector<8x128xf32>
    %50 = vector.extract_strided_slice %11 {offsets = [8, 0], sizes = [8, 128], strides = [1, 1]} : vector<16x128xf32> to vector<8x128xf32>
    %51 = vector.extract_strided_slice %23 {offsets = [0, 0], sizes = [8, 128], strides = [1, 1]} : vector<8x512xf32> to vector<8x128xf32>
    %52 = arith.negf %51 : vector<8x128xf32>
    %53 = math.exp %52 : vector<8x128xf32>
    %cst_17 = arith.constant 1.000000e+00 : f32
    %54 = vector.broadcast %cst_17 : f32 to vector<8x128xf32>
    %55 = arith.addf %54, %53 : vector<8x128xf32>
    %56 = arith.divf %54, %55 : vector<8x128xf32>
    %57 = vector.extract_strided_slice %23 {offsets = [0, 128], sizes = [8, 128], strides = [1, 1]} : vector<8x512xf32> to vector<8x128xf32>
    %58 = arith.negf %57 : vector<8x128xf32>
    %59 = math.exp %58 : vector<8x128xf32>
    %cst_18 = arith.constant 1.000000e+00 : f32
    %60 = vector.broadcast %cst_18 : f32 to vector<8x128xf32>
    %61 = arith.addf %60, %59 : vector<8x128xf32>
    %62 = arith.divf %60, %61 : vector<8x128xf32>
    %63 = vector.extract_strided_slice %23 {offsets = [0, 256], sizes = [8, 128], strides = [1, 1]} : vector<8x512xf32> to vector<8x128xf32>
    %64 = math.tanh %63 : vector<8x128xf32>
    %65 = vector.extract_strided_slice %23 {offsets = [0, 384], sizes = [8, 128], strides = [1, 1]} : vector<8x512xf32> to vector<8x128xf32>
    %66 = arith.negf %65 : vector<8x128xf32>
    %67 = math.exp %66 : vector<8x128xf32>
    %cst_19 = arith.constant 1.000000e+00 : f32
    %68 = vector.broadcast %cst_19 : f32 to vector<8x128xf32>
    %69 = arith.addf %68, %67 : vector<8x128xf32>
    %70 = arith.divf %68, %69 : vector<8x128xf32>
    %71 = arith.mulf %62, %50 : vector<8x128xf32>
    %72 = arith.mulf %56, %64 : vector<8x128xf32>
    %73 = arith.addf %71, %72 : vector<8x128xf32>
    %74 = math.tanh %73 : vector<8x128xf32>
    %75 = arith.mulf %70, %74 : vector<8x128xf32>
    %76 = vector.broadcast %5 : i32 to vector<8x1xi32>
    %77 = arith.cmpi slt, %76, %3 : vector<8x1xi32>
    %78 = vector.broadcast %9 : i32 to vector<8x1xi32>
    %79 = arith.cmpi slt, %78, %3 : vector<8x1xi32>
    %80 = vector.extract_strided_slice %10 {offsets = [0, 0], sizes = [8, 128], strides = [1, 1]} : vector<16x128xf32> to vector<8x128xf32>
    %81 = vector.shape_cast %77 : vector<8x1xi1> to vector<8x1xi1>
    %82 = vector.broadcast %81 : vector<8x1xi1> to vector<8x128xi1>
    %83 = arith.select %82, %49, %80 : vector<8x128xi1>, vector<8x128xf32>
    %c0_20 = arith.constant 0 : index
    %c0_21 = arith.constant 0 : index
    %84 = vector.load %arg13[%c0_20, %c0_21] : memref<16x128xf32, #tpu.memory_space<vmem>>, vector<8x128xf32>
    tpu.vector_store %arg13[%c0_20, %c0_21], %83 {strides = array<i32>} : memref<16x128xf32, #tpu.memory_space<vmem>>, vector<8x128xf32>,
    %85 = vector.extract_strided_slice %11 {offsets = [0, 0], sizes = [8, 128], strides = [1, 1]} : vector<16x128xf32> to vector<8x128xf32>
    %86 = vector.shape_cast %77 : vector<8x1xi1> to vector<8x1xi1>
    %87 = vector.broadcast %86 : vector<8x1xi1> to vector<8x128xi1>
    %88 = arith.select %87, %47, %85 : vector<8x128xi1>, vector<8x128xf32>
    %c0_22 = arith.constant 0 : index
    %c0_23 = arith.constant 0 : index
    %89 = vector.load %arg14[%c0_22, %c0_23] : memref<16x128xf32, #tpu.memory_space<vmem>>, vector<8x128xf32>
    tpu.vector_store %arg14[%c0_22, %c0_23], %88 {strides = array<i32>} : memref<16x128xf32, #tpu.memory_space<vmem>>, vector<8x128xf32>,
    %90 = vector.extract_strided_slice %10 {offsets = [8, 0], sizes = [8, 128], strides = [1, 1]} : vector<16x128xf32> to vector<8x128xf32>
    %91 = vector.shape_cast %79 : vector<8x1xi1> to vector<8x1xi1>
    %92 = vector.broadcast %91 : vector<8x1xi1> to vector<8x128xi1>
    %93 = arith.select %92, %75, %90 : vector<8x128xi1>, vector<8x128xf32>
    %c8 = arith.constant 8 : index
    %c0_24 = arith.constant 0 : index
    %94 = vector.load %arg13[%c8, %c0_24] : memref<16x128xf32, #tpu.memory_space<vmem>>, vector<8x128xf32>
    tpu.vector_store %arg13[%c8, %c0_24], %93 {strides = array<i32>} : memref<16x128xf32, #tpu.memory_space<vmem>>, vector<8x128xf32>,
    %95 = vector.extract_strided_slice %11 {offsets = [8, 0], sizes = [8, 128], strides = [1, 1]} : vector<16x128xf32> to vector<8x128xf32>
    %96 = vector.shape_cast %79 : vector<8x1xi1> to vector<8x1xi1>
    %97 = vector.broadcast %96 : vector<8x1xi1> to vector<8x128xi1>
    %98 = arith.select %97, %73, %95 : vector<8x128xi1>, vector<8x128xf32>
    %c8_25 = arith.constant 8 : index
    %c0_26 = arith.constant 0 : index
    %99 = vector.load %arg14[%c8_25, %c0_26] : memref<16x128xf32, #tpu.memory_space<vmem>>, vector<8x128xf32>
    tpu.vector_store %arg14[%c8_25, %c0_26], %98 {strides = array<i32>} : memref<16x128xf32, #tpu.memory_space<vmem>>, vector<8x128xf32>,
    %cst_27 = arith.constant 0.000000e+00 : f32
    %100 = vector.shape_cast %77 : vector<8x1xi1> to vector<8x1xi1>
    %101 = vector.broadcast %100 : vector<8x1xi1> to vector<8x128xi1>
    %102 = vector.broadcast %cst_27 : f32 to vector<8x128xf32>
    %103 = arith.select %101, %49, %102 : vector<8x128xi1>, vector<8x128xf32>
    %104 = arith.index_cast %c0_i32_2 : i32 to index
    %c0_28 = arith.constant 0 : index
    %c0_29 = arith.constant 0 : index
    %105 = vector.load %arg7[%104, %c0_28, %c0_29] : memref<4x8x128xf32, #tpu.memory_space<vmem>>, vector<1x8x128xf32>
    %106 = vector.shape_cast %105 : vector<1x8x128xf32> to vector<8x128xf32>
    %107 = vector.shape_cast %103 : vector<8x128xf32> to vector<1x8x128xf32>
    tpu.vector_store %arg7[%104, %c0_28, %c0_29], %107 {strides = array<i32>} : memref<4x8x128xf32, #tpu.memory_space<vmem>>, vector<1x8x128xf32>,
    %cst_30 = arith.constant 0.000000e+00 : f32
    %108 = vector.shape_cast %79 : vector<8x1xi1> to vector<8x1xi1>
    %109 = vector.broadcast %108 : vector<8x1xi1> to vector<8x128xi1>
    %110 = vector.broadcast %cst_30 : f32 to vector<8x128xf32>
    %111 = arith.select %109, %75, %110 : vector<8x128xi1>, vector<8x128xf32>
    %112 = arith.index_cast %6 : i32 to index
    %c0_31 = arith.constant 0 : index
    %c0_32 = arith.constant 0 : index
    %113 = vector.load %arg8[%112, %c0_31, %c0_32] : memref<4x8x128xf32, #tpu.memory_space<vmem>>, vector<1x8x128xf32>
    %114 = vector.shape_cast %113 : vector<1x8x128xf32> to vector<8x128xf32>
    %115 = vector.shape_cast %111 : vector<8x128xf32> to vector<1x8x128xf32>
    tpu.vector_store %arg8[%112, %c0_31, %c0_32], %115 {strides = array<i32>} : memref<4x8x128xf32, #tpu.memory_space<vmem>>, vector<1x8x128xf32>,
    %c1_i32 = arith.constant 1 : i32
    %c4_i32_33 = arith.constant 4 : i32
    %116 = arith.muli %arg0, %c4_i32_33 : i32
    %117 = arith.addi %116, %c1_i32 : i32
    %c3_i32_34 = arith.constant 3 : i32
    %118 = arith.subi %c3_i32_34, %c1_i32 : i32
    %c2_i32_35 = arith.constant 2 : i32
    %119 = arith.subi %c2_i32_35, %arg0 : i32
    %c4_i32_36 = arith.constant 4 : i32
    %120 = arith.muli %119, %c4_i32_36 : i32
    %121 = arith.addi %120, %118 : i32
    %c0_37 = arith.constant 0 : index
    %c0_38 = arith.constant 0 : index
    %122 = vector.load %arg13[%c0_37, %c0_38] : memref<16x128xf32, #tpu.memory_space<vmem>>, vector<16x128xf32>
    %c0_39 = arith.constant 0 : index
    %c0_40 = arith.constant 0 : index
    %123 = vector.load %arg14[%c0_39, %c0_40] : memref<16x128xf32, #tpu.memory_space<vmem>>, vector<16x128xf32>
    %c0_41 = arith.constant 0 : index
    %c0_42 = arith.constant 0 : index
    %124 = vector.load %arg11[%c0_41, %c0_42] : memref<128x1024xf32, #tpu.memory_space<vmem>>, vector<128x1024xf32>
    %cst_43 = arith.constant dense<0.000000e+00> : vector<16x1024xf32>
    %125 = tpu.matmul %122, %124, %cst_43 {dimension_numbers = #tpu.dot_dimension_numbers<[1], [0], [0], [1], [0, 0, 1, 1], [], []>} : vector<16x128xf32>, vector<128x1024xf32>, vector<16x1024xf32> -> vector<16x1024xf32>
    %126 = vector.extract_strided_slice %125 {offsets = [0, 0], sizes = [8, 512], strides = [1, 1]} : vector<16x1024xf32> to vector<8x512xf32>
    %127 = vector.extract_strided_slice %125 {offsets = [8, 512], sizes = [8, 512], strides = [1, 1]} : vector<16x1024xf32> to vector<8x512xf32>
    %128 = arith.index_cast %c1_i32 : i32 to index
    %c0_44 = arith.constant 0 : index
    %c0_45 = arith.constant 0 : index
    %129 = vector.load %arg2[%128, %c0_44, %c0_45] : memref<4x8x512xf32, #tpu.memory_space<vmem>>, vector<1x8x512xf32>
    %130 = vector.shape_cast %129 : vector<1x8x512xf32> to vector<8x512xf32>
    %131 = arith.addf %130, %126 : vector<8x512xf32>
    %132 = arith.index_cast %118 : i32 to index
    %c0_46 = arith.constant 0 : index
    %c0_47 = arith.constant 0 : index
    %133 = vector.load %arg3[%132, %c0_46, %c0_47] : memref<4x8x512xf32, #tpu.memory_space<vmem>>, vector<1x8x512xf32>
    %134 = vector.shape_cast %133 : vector<1x8x512xf32> to vector<8x512xf32>
    %135 = arith.addf %134, %127 : vector<8x512xf32>
    %136 = vector.extract_strided_slice %123 {offsets = [0, 0], sizes = [8, 128], strides = [1, 1]} : vector<16x128xf32> to vector<8x128xf32>
    %137 = vector.extract_strided_slice %131 {offsets = [0, 0], sizes = [8, 128], strides = [1, 1]} : vector<8x512xf32> to vector<8x128xf32>
    %138 = arith.negf %137 : vector<8x128xf32>
    %139 = math.exp %138 : vector<8x128xf32>
    %cst_48 = arith.constant 1.000000e+00 : f32
    %140 = vector.broadcast %cst_48 : f32 to vector<8x128xf32>
    %141 = arith.addf %140, %139 : vector<8x128xf32>
    %142 = arith.divf %140, %141 : vector<8x128xf32>
    %143 = vector.extract_strided_slice %131 {offsets = [0, 128], sizes = [8, 128], strides = [1, 1]} : vector<8x512xf32> to vector<8x128xf32>
    %144 = arith.negf %143 : vector<8x128xf32>
    %145 = math.exp %144 : vector<8x128xf32>
    %cst_49 = arith.constant 1.000000e+00 : f32
    %146 = vector.broadcast %cst_49 : f32 to vector<8x128xf32>
    %147 = arith.addf %146, %145 : vector<8x128xf32>
    %148 = arith.divf %146, %147 : vector<8x128xf32>
    %149 = vector.extract_strided_slice %131 {offsets = [0, 256], sizes = [8, 128], strides = [1, 1]} : vector<8x512xf32> to vector<8x128xf32>
    %150 = math.tanh %149 : vector<8x128xf32>
    %151 = vector.extract_strided_slice %131 {offsets = [0, 384], sizes = [8, 128], strides = [1, 1]} : vector<8x512xf32> to vector<8x128xf32>
    %152 = arith.negf %151 : vector<8x128xf32>
    %153 = math.exp %152 : vector<8x128xf32>
    %cst_50 = arith.constant 1.000000e+00 : f32
    %154 = vector.broadcast %cst_50 : f32 to vector<8x128xf32>
    %155 = arith.addf %154, %153 : vector<8x128xf32>
    %156 = arith.divf %154, %155 : vector<8x128xf32>
    %157 = arith.mulf %148, %136 : vector<8x128xf32>
    %158 = arith.mulf %142, %150 : vector<8x128xf32>
    %159 = arith.addf %157, %158 : vector<8x128xf32>
    %160 = math.tanh %159 : vector<8x128xf32>
    %161 = arith.mulf %156, %160 : vector<8x128xf32>
    %162 = vector.extract_strided_slice %123 {offsets = [8, 0], sizes = [8, 128], strides = [1, 1]} : vector<16x128xf32> to vector<8x128xf32>
    %163 = vector.extract_strided_slice %135 {offsets = [0, 0], sizes = [8, 128], strides = [1, 1]} : vector<8x512xf32> to vector<8x128xf32>
    %164 = arith.negf %163 : vector<8x128xf32>
    %165 = math.exp %164 : vector<8x128xf32>
    %cst_51 = arith.constant 1.000000e+00 : f32
    %166 = vector.broadcast %cst_51 : f32 to vector<8x128xf32>
    %167 = arith.addf %166, %165 : vector<8x128xf32>
    %168 = arith.divf %166, %167 : vector<8x128xf32>
    %169 = vector.extract_strided_slice %135 {offsets = [0, 128], sizes = [8, 128], strides = [1, 1]} : vector<8x512xf32> to vector<8x128xf32>
    %170 = arith.negf %169 : vector<8x128xf32>
    %171 = math.exp %170 : vector<8x128xf32>
    %cst_52 = arith.constant 1.000000e+00 : f32
    %172 = vector.broadcast %cst_52 : f32 to vector<8x128xf32>
    %173 = arith.addf %172, %171 : vector<8x128xf32>
    %174 = arith.divf %172, %173 : vector<8x128xf32>
    %175 = vector.extract_strided_slice %135 {offsets = [0, 256], sizes = [8, 128], strides = [1, 1]} : vector<8x512xf32> to vector<8x128xf32>
    %176 = math.tanh %175 : vector<8x128xf32>
    %177 = vector.extract_strided_slice %135 {offsets = [0, 384], sizes = [8, 128], strides = [1, 1]} : vector<8x512xf32> to vector<8x128xf32>
    %178 = arith.negf %177 : vector<8x128xf32>
    %179 = math.exp %178 : vector<8x128xf32>
    %cst_53 = arith.constant 1.000000e+00 : f32
    %180 = vector.broadcast %cst_53 : f32 to vector<8x128xf32>
    %181 = arith.addf %180, %179 : vector<8x128xf32>
    %182 = arith.divf %180, %181 : vector<8x128xf32>
    %183 = arith.mulf %174, %162 : vector<8x128xf32>
    %184 = arith.mulf %168, %176 : vector<8x128xf32>
    %185 = arith.addf %183, %184 : vector<8x128xf32>
    %186 = math.tanh %185 : vector<8x128xf32>
    %187 = arith.mulf %182, %186 : vector<8x128xf32>
    %188 = vector.broadcast %117 : i32 to vector<8x1xi32>
    %189 = arith.cmpi slt, %188, %3 : vector<8x1xi32>
    %190 = vector.broadcast %121 : i32 to vector<8x1xi32>
    %191 = arith.cmpi slt, %190, %3 : vector<8x1xi32>
    %192 = vector.extract_strided_slice %122 {offsets = [0, 0], sizes = [8, 128], strides = [1, 1]} : vector<16x128xf32> to vector<8x128xf32>
    %193 = vector.shape_cast %189 : vector<8x1xi1> to vector<8x1xi1>
    %194 = vector.broadcast %193 : vector<8x1xi1> to vector<8x128xi1>
    %195 = arith.select %194, %161, %192 : vector<8x128xi1>, vector<8x128xf32>
    %c0_54 = arith.constant 0 : index
    %c0_55 = arith.constant 0 : index
    %196 = vector.load %arg13[%c0_54, %c0_55] : memref<16x128xf32, #tpu.memory_space<vmem>>, vector<8x128xf32>
    tpu.vector_store %arg13[%c0_54, %c0_55], %195 {strides = array<i32>} : memref<16x128xf32, #tpu.memory_space<vmem>>, vector<8x128xf32>,
    %197 = vector.extract_strided_slice %123 {offsets = [0, 0], sizes = [8, 128], strides = [1, 1]} : vector<16x128xf32> to vector<8x128xf32>
    %198 = vector.shape_cast %189 : vector<8x1xi1> to vector<8x1xi1>
    %199 = vector.broadcast %198 : vector<8x1xi1> to vector<8x128xi1>
    %200 = arith.select %199, %159, %197 : vector<8x128xi1>, vector<8x128xf32>
    %c0_56 = arith.constant 0 : index
    %c0_57 = arith.constant 0 : index
    %201 = vector.load %arg14[%c0_56, %c0_57] : memref<16x128xf32, #tpu.memory_space<vmem>>, vector<8x128xf32>
    tpu.vector_store %arg14[%c0_56, %c0_57], %200 {strides = array<i32>} : memref<16x128xf32, #tpu.memory_space<vmem>>, vector<8x128xf32>,
    %202 = vector.extract_strided_slice %122 {offsets = [8, 0], sizes = [8, 128], strides = [1, 1]} : vector<16x128xf32> to vector<8x128xf32>
    %203 = vector.shape_cast %191 : vector<8x1xi1> to vector<8x1xi1>
    %204 = vector.broadcast %203 : vector<8x1xi1> to vector<8x128xi1>
    %205 = arith.select %204, %187, %202 : vector<8x128xi1>, vector<8x128xf32>
    %c8_58 = arith.constant 8 : index
    %c0_59 = arith.constant 0 : index
    %206 = vector.load %arg13[%c8_58, %c0_59] : memref<16x128xf32, #tpu.memory_space<vmem>>, vector<8x128xf32>
    tpu.vector_store %arg13[%c8_58, %c0_59], %205 {strides = array<i32>} : memref<16x128xf32, #tpu.memory_space<vmem>>, vector<8x128xf32>,
    %207 = vector.extract_strided_slice %123 {offsets = [8, 0], sizes = [8, 128], strides = [1, 1]} : vector<16x128xf32> to vector<8x128xf32>
    %208 = vector.shape_cast %191 : vector<8x1xi1> to vector<8x1xi1>
    %209 = vector.broadcast %208 : vector<8x1xi1> to vector<8x128xi1>
    %210 = arith.select %209, %185, %207 : vector<8x128xi1>, vector<8x128xf32>
    %c8_60 = arith.constant 8 : index
    %c0_61 = arith.constant 0 : index
    %211 = vector.load %arg14[%c8_60, %c0_61] : memref<16x128xf32, #tpu.memory_space<vmem>>, vector<8x128xf32>
    tpu.vector_store %arg14[%c8_60, %c0_61], %210 {strides = array<i32>} : memref<16x128xf32, #tpu.memory_space<vmem>>, vector<8x128xf32>,
    %cst_62 = arith.constant 0.000000e+00 : f32
    %212 = vector.shape_cast %189 : vector<8x1xi1> to vector<8x1xi1>
    %213 = vector.broadcast %212 : vector<8x1xi1> to vector<8x128xi1>
    %214 = vector.broadcast %cst_62 : f32 to vector<8x128xf32>
    %215 = arith.select %213, %161, %214 : vector<8x128xi1>, vector<8x128xf32>
    %216 = arith.index_cast %c1_i32 : i32 to index
    %c0_63 = arith.constant 0 : index
    %c0_64 = arith.constant 0 : index
    %217 = vector.load %arg7[%216, %c0_63, %c0_64] : memref<4x8x128xf32, #tpu.memory_space<vmem>>, vector<1x8x128xf32>
    %218 = vector.shape_cast %217 : vector<1x8x128xf32> to vector<8x128xf32>
    %219 = vector.shape_cast %215 : vector<8x128xf32> to vector<1x8x128xf32>
    tpu.vector_store %arg7[%216, %c0_63, %c0_64], %219 {strides = array<i32>} : memref<4x8x128xf32, #tpu.memory_space<vmem>>, vector<1x8x128xf32>,
    %cst_65 = arith.constant 0.000000e+00 : f32
    %220 = vector.shape_cast %191 : vector<8x1xi1> to vector<8x1xi1>
    %221 = vector.broadcast %220 : vector<8x1xi1> to vector<8x128xi1>
    %222 = vector.broadcast %cst_65 : f32 to vector<8x128xf32>
    %223 = arith.select %221, %187, %222 : vector<8x128xi1>, vector<8x128xf32>
    %224 = arith.index_cast %118 : i32 to index
    %c0_66 = arith.constant 0 : index
    %c0_67 = arith.constant 0 : index
    %225 = vector.load %arg8[%224, %c0_66, %c0_67] : memref<4x8x128xf32, #tpu.memory_space<vmem>>, vector<1x8x128xf32>
    %226 = vector.shape_cast %225 : vector<1x8x128xf32> to vector<8x128xf32>
    %227 = vector.shape_cast %223 : vector<8x128xf32> to vector<1x8x128xf32>
    tpu.vector_store %arg8[%224, %c0_66, %c0_67], %227 {strides = array<i32>} : memref<4x8x128xf32, #tpu.memory_space<vmem>>, vector<1x8x128xf32>,
    %c2_i32_68 = arith.constant 2 : i32
    %c4_i32_69 = arith.constant 4 : i32
    %228 = arith.muli %arg0, %c4_i32_69 : i32
    %229 = arith.addi %228, %c2_i32_68 : i32
    %c3_i32_70 = arith.constant 3 : i32
    %230 = arith.subi %c3_i32_70, %c2_i32_68 : i32
    %c2_i32_71 = arith.constant 2 : i32
    %231 = arith.subi %c2_i32_71, %arg0 : i32
    %c4_i32_72 = arith.constant 4 : i32
    %232 = arith.muli %231, %c4_i32_72 : i32
    %233 = arith.addi %232, %230 : i32
    %c0_73 = arith.constant 0 : index
    %c0_74 = arith.constant 0 : index
    %234 = vector.load %arg13[%c0_73, %c0_74] : memref<16x128xf32, #tpu.memory_space<vmem>>, vector<16x128xf32>
    %c0_75 = arith.constant 0 : index
    %c0_76 = arith.constant 0 : index
    %235 = vector.load %arg14[%c0_75, %c0_76] : memref<16x128xf32, #tpu.memory_space<vmem>>, vector<16x128xf32>
    %c0_77 = arith.constant 0 : index
    %c0_78 = arith.constant 0 : index
    %236 = vector.load %arg11[%c0_77, %c0_78] : memref<128x1024xf32, #tpu.memory_space<vmem>>, vector<128x1024xf32>
    %cst_79 = arith.constant dense<0.000000e+00> : vector<16x1024xf32>
    %237 = tpu.matmul %234, %236, %cst_79 {dimension_numbers = #tpu.dot_dimension_numbers<[1], [0], [0], [1], [0, 0, 1, 1], [], []>} : vector<16x128xf32>, vector<128x1024xf32>, vector<16x1024xf32> -> vector<16x1024xf32>
    %238 = vector.extract_strided_slice %237 {offsets = [0, 0], sizes = [8, 512], strides = [1, 1]} : vector<16x1024xf32> to vector<8x512xf32>
    %239 = vector.extract_strided_slice %237 {offsets = [8, 512], sizes = [8, 512], strides = [1, 1]} : vector<16x1024xf32> to vector<8x512xf32>
    %240 = arith.index_cast %c2_i32_68 : i32 to index
    %c0_80 = arith.constant 0 : index
    %c0_81 = arith.constant 0 : index
    %241 = vector.load %arg2[%240, %c0_80, %c0_81] : memref<4x8x512xf32, #tpu.memory_space<vmem>>, vector<1x8x512xf32>
    %242 = vector.shape_cast %241 : vector<1x8x512xf32> to vector<8x512xf32>
    %243 = arith.addf %242, %238 : vector<8x512xf32>
    %244 = arith.index_cast %230 : i32 to index
    %c0_82 = arith.constant 0 : index
    %c0_83 = arith.constant 0 : index
    %245 = vector.load %arg3[%244, %c0_82, %c0_83] : memref<4x8x512xf32, #tpu.memory_space<vmem>>, vector<1x8x512xf32>
    %246 = vector.shape_cast %245 : vector<1x8x512xf32> to vector<8x512xf32>
    %247 = arith.addf %246, %239 : vector<8x512xf32>
    %248 = vector.extract_strided_slice %235 {offsets = [0, 0], sizes = [8, 128], strides = [1, 1]} : vector<16x128xf32> to vector<8x128xf32>
    %249 = vector.extract_strided_slice %243 {offsets = [0, 0], sizes = [8, 128], strides = [1, 1]} : vector<8x512xf32> to vector<8x128xf32>
    %250 = arith.negf %249 : vector<8x128xf32>
    %251 = math.exp %250 : vector<8x128xf32>
    %cst_84 = arith.constant 1.000000e+00 : f32
    %252 = vector.broadcast %cst_84 : f32 to vector<8x128xf32>
    %253 = arith.addf %252, %251 : vector<8x128xf32>
    %254 = arith.divf %252, %253 : vector<8x128xf32>
    %255 = vector.extract_strided_slice %243 {offsets = [0, 128], sizes = [8, 128], strides = [1, 1]} : vector<8x512xf32> to vector<8x128xf32>
    %256 = arith.negf %255 : vector<8x128xf32>
    %257 = math.exp %256 : vector<8x128xf32>
    %cst_85 = arith.constant 1.000000e+00 : f32
    %258 = vector.broadcast %cst_85 : f32 to vector<8x128xf32>
    %259 = arith.addf %258, %257 : vector<8x128xf32>
    %260 = arith.divf %258, %259 : vector<8x128xf32>
    %261 = vector.extract_strided_slice %243 {offsets = [0, 256], sizes = [8, 128], strides = [1, 1]} : vector<8x512xf32> to vector<8x128xf32>
    %262 = math.tanh %261 : vector<8x128xf32>
    %263 = vector.extract_strided_slice %243 {offsets = [0, 384], sizes = [8, 128], strides = [1, 1]} : vector<8x512xf32> to vector<8x128xf32>
    %264 = arith.negf %263 : vector<8x128xf32>
    %265 = math.exp %264 : vector<8x128xf32>
    %cst_86 = arith.constant 1.000000e+00 : f32
    %266 = vector.broadcast %cst_86 : f32 to vector<8x128xf32>
    %267 = arith.addf %266, %265 : vector<8x128xf32>
    %268 = arith.divf %266, %267 : vector<8x128xf32>
    %269 = arith.mulf %260, %248 : vector<8x128xf32>
    %270 = arith.mulf %254, %262 : vector<8x128xf32>
    %271 = arith.addf %269, %270 : vector<8x128xf32>
    %272 = math.tanh %271 : vector<8x128xf32>
    %273 = arith.mulf %268, %272 : vector<8x128xf32>
    %274 = vector.extract_strided_slice %235 {offsets = [8, 0], sizes = [8, 128], strides = [1, 1]} : vector<16x128xf32> to vector<8x128xf32>
    %275 = vector.extract_strided_slice %247 {offsets = [0, 0], sizes = [8, 128], strides = [1, 1]} : vector<8x512xf32> to vector<8x128xf32>
    %276 = arith.negf %275 : vector<8x128xf32>
    %277 = math.exp %276 : vector<8x128xf32>
    %cst_87 = arith.constant 1.000000e+00 : f32
    %278 = vector.broadcast %cst_87 : f32 to vector<8x128xf32>
    %279 = arith.addf %278, %277 : vector<8x128xf32>
    %280 = arith.divf %278, %279 : vector<8x128xf32>
    %281 = vector.extract_strided_slice %247 {offsets = [0, 128], sizes = [8, 128], strides = [1, 1]} : vector<8x512xf32> to vector<8x128xf32>
    %282 = arith.negf %281 : vector<8x128xf32>
    %283 = math.exp %282 : vector<8x128xf32>
    %cst_88 = arith.constant 1.000000e+00 : f32
    %284 = vector.broadcast %cst_88 : f32 to vector<8x128xf32>
    %285 = arith.addf %284, %283 : vector<8x128xf32>
    %286 = arith.divf %284, %285 : vector<8x128xf32>
    %287 = vector.extract_strided_slice %247 {offsets = [0, 256], sizes = [8, 128], strides = [1, 1]} : vector<8x512xf32> to vector<8x128xf32>
    %288 = math.tanh %287 : vector<8x128xf32>
    %289 = vector.extract_strided_slice %247 {offsets = [0, 384], sizes = [8, 128], strides = [1, 1]} : vector<8x512xf32> to vector<8x128xf32>
    %290 = arith.negf %289 : vector<8x128xf32>
    %291 = math.exp %290 : vector<8x128xf32>
    %cst_89 = arith.constant 1.000000e+00 : f32
    %292 = vector.broadcast %cst_89 : f32 to vector<8x128xf32>
    %293 = arith.addf %292, %291 : vector<8x128xf32>
    %294 = arith.divf %292, %293 : vector<8x128xf32>
    %295 = arith.mulf %286, %274 : vector<8x128xf32>
    %296 = arith.mulf %280, %288 : vector<8x128xf32>
    %297 = arith.addf %295, %296 : vector<8x128xf32>
    %298 = math.tanh %297 : vector<8x128xf32>
    %299 = arith.mulf %294, %298 : vector<8x128xf32>
    %300 = vector.broadcast %229 : i32 to vector<8x1xi32>
    %301 = arith.cmpi slt, %300, %3 : vector<8x1xi32>
    %302 = vector.broadcast %233 : i32 to vector<8x1xi32>
    %303 = arith.cmpi slt, %302, %3 : vector<8x1xi32>
    %304 = vector.extract_strided_slice %234 {offsets = [0, 0], sizes = [8, 128], strides = [1, 1]} : vector<16x128xf32> to vector<8x128xf32>
    %305 = vector.shape_cast %301 : vector<8x1xi1> to vector<8x1xi1>
    %306 = vector.broadcast %305 : vector<8x1xi1> to vector<8x128xi1>
    %307 = arith.select %306, %273, %304 : vector<8x128xi1>, vector<8x128xf32>
    %c0_90 = arith.constant 0 : index
    %c0_91 = arith.constant 0 : index
    %308 = vector.load %arg13[%c0_90, %c0_91] : memref<16x128xf32, #tpu.memory_space<vmem>>, vector<8x128xf32>
    tpu.vector_store %arg13[%c0_90, %c0_91], %307 {strides = array<i32>} : memref<16x128xf32, #tpu.memory_space<vmem>>, vector<8x128xf32>,
    %309 = vector.extract_strided_slice %235 {offsets = [0, 0], sizes = [8, 128], strides = [1, 1]} : vector<16x128xf32> to vector<8x128xf32>
    %310 = vector.shape_cast %301 : vector<8x1xi1> to vector<8x1xi1>
    %311 = vector.broadcast %310 : vector<8x1xi1> to vector<8x128xi1>
    %312 = arith.select %311, %271, %309 : vector<8x128xi1>, vector<8x128xf32>
    %c0_92 = arith.constant 0 : index
    %c0_93 = arith.constant 0 : index
    %313 = vector.load %arg14[%c0_92, %c0_93] : memref<16x128xf32, #tpu.memory_space<vmem>>, vector<8x128xf32>
    tpu.vector_store %arg14[%c0_92, %c0_93], %312 {strides = array<i32>} : memref<16x128xf32, #tpu.memory_space<vmem>>, vector<8x128xf32>,
    %314 = vector.extract_strided_slice %234 {offsets = [8, 0], sizes = [8, 128], strides = [1, 1]} : vector<16x128xf32> to vector<8x128xf32>
    %315 = vector.shape_cast %303 : vector<8x1xi1> to vector<8x1xi1>
    %316 = vector.broadcast %315 : vector<8x1xi1> to vector<8x128xi1>
    %317 = arith.select %316, %299, %314 : vector<8x128xi1>, vector<8x128xf32>
    %c8_94 = arith.constant 8 : index
    %c0_95 = arith.constant 0 : index
    %318 = vector.load %arg13[%c8_94, %c0_95] : memref<16x128xf32, #tpu.memory_space<vmem>>, vector<8x128xf32>
    tpu.vector_store %arg13[%c8_94, %c0_95], %317 {strides = array<i32>} : memref<16x128xf32, #tpu.memory_space<vmem>>, vector<8x128xf32>,
    %319 = vector.extract_strided_slice %235 {offsets = [8, 0], sizes = [8, 128], strides = [1, 1]} : vector<16x128xf32> to vector<8x128xf32>
    %320 = vector.shape_cast %303 : vector<8x1xi1> to vector<8x1xi1>
    %321 = vector.broadcast %320 : vector<8x1xi1> to vector<8x128xi1>
    %322 = arith.select %321, %297, %319 : vector<8x128xi1>, vector<8x128xf32>
    %c8_96 = arith.constant 8 : index
    %c0_97 = arith.constant 0 : index
    %323 = vector.load %arg14[%c8_96, %c0_97] : memref<16x128xf32, #tpu.memory_space<vmem>>, vector<8x128xf32>
    tpu.vector_store %arg14[%c8_96, %c0_97], %322 {strides = array<i32>} : memref<16x128xf32, #tpu.memory_space<vmem>>, vector<8x128xf32>,
    %cst_98 = arith.constant 0.000000e+00 : f32
    %324 = vector.shape_cast %301 : vector<8x1xi1> to vector<8x1xi1>
    %325 = vector.broadcast %324 : vector<8x1xi1> to vector<8x128xi1>
    %326 = vector.broadcast %cst_98 : f32 to vector<8x128xf32>
    %327 = arith.select %325, %273, %326 : vector<8x128xi1>, vector<8x128xf32>
    %328 = arith.index_cast %c2_i32_68 : i32 to index
    %c0_99 = arith.constant 0 : index
    %c0_100 = arith.constant 0 : index
    %329 = vector.load %arg7[%328, %c0_99, %c0_100] : memref<4x8x128xf32, #tpu.memory_space<vmem>>, vector<1x8x128xf32>
    %330 = vector.shape_cast %329 : vector<1x8x128xf32> to vector<8x128xf32>
    %331 = vector.shape_cast %327 : vector<8x128xf32> to vector<1x8x128xf32>
    tpu.vector_store %arg7[%328, %c0_99, %c0_100], %331 {strides = array<i32>} : memref<4x8x128xf32, #tpu.memory_space<vmem>>, vector<1x8x128xf32>,
    %cst_101 = arith.constant 0.000000e+00 : f32
    %332 = vector.shape_cast %303 : vector<8x1xi1> to vector<8x1xi1>
    %333 = vector.broadcast %332 : vector<8x1xi1> to vector<8x128xi1>
    %334 = vector.broadcast %cst_101 : f32 to vector<8x128xf32>
    %335 = arith.select %333, %299, %334 : vector<8x128xi1>, vector<8x128xf32>
    %336 = arith.index_cast %230 : i32 to index
    %c0_102 = arith.constant 0 : index
    %c0_103 = arith.constant 0 : index
    %337 = vector.load %arg8[%336, %c0_102, %c0_103] : memref<4x8x128xf32, #tpu.memory_space<vmem>>, vector<1x8x128xf32>
    %338 = vector.shape_cast %337 : vector<1x8x128xf32> to vector<8x128xf32>
    %339 = vector.shape_cast %335 : vector<8x128xf32> to vector<1x8x128xf32>
    tpu.vector_store %arg8[%336, %c0_102, %c0_103], %339 {strides = array<i32>} : memref<4x8x128xf32, #tpu.memory_space<vmem>>, vector<1x8x128xf32>,
    %c3_i32_104 = arith.constant 3 : i32
    %c4_i32_105 = arith.constant 4 : i32
    %340 = arith.muli %arg0, %c4_i32_105 : i32
    %341 = arith.addi %340, %c3_i32_104 : i32
    %c3_i32_106 = arith.constant 3 : i32
    %342 = arith.subi %c3_i32_106, %c3_i32_104 : i32
    %c2_i32_107 = arith.constant 2 : i32
    %343 = arith.subi %c2_i32_107, %arg0 : i32
    %c4_i32_108 = arith.constant 4 : i32
    %344 = arith.muli %343, %c4_i32_108 : i32
    %345 = arith.addi %344, %342 : i32
    %c0_109 = arith.constant 0 : index
    %c0_110 = arith.constant 0 : index
    %346 = vector.load %arg13[%c0_109, %c0_110] : memref<16x128xf32, #tpu.memory_space<vmem>>, vector<16x128xf32>
    %c0_111 = arith.constant 0 : index
    %c0_112 = arith.constant 0 : index
    %347 = vector.load %arg14[%c0_111, %c0_112] : memref<16x128xf32, #tpu.memory_space<vmem>>, vector<16x128xf32>
    %c0_113 = arith.constant 0 : index
    %c0_114 = arith.constant 0 : index
    %348 = vector.load %arg11[%c0_113, %c0_114] : memref<128x1024xf32, #tpu.memory_space<vmem>>, vector<128x1024xf32>
    %cst_115 = arith.constant dense<0.000000e+00> : vector<16x1024xf32>
    %349 = tpu.matmul %346, %348, %cst_115 {dimension_numbers = #tpu.dot_dimension_numbers<[1], [0], [0], [1], [0, 0, 1, 1], [], []>} : vector<16x128xf32>, vector<128x1024xf32>, vector<16x1024xf32> -> vector<16x1024xf32>
    %350 = vector.extract_strided_slice %349 {offsets = [0, 0], sizes = [8, 512], strides = [1, 1]} : vector<16x1024xf32> to vector<8x512xf32>
    %351 = vector.extract_strided_slice %349 {offsets = [8, 512], sizes = [8, 512], strides = [1, 1]} : vector<16x1024xf32> to vector<8x512xf32>
    %352 = arith.index_cast %c3_i32_104 : i32 to index
    %c0_116 = arith.constant 0 : index
    %c0_117 = arith.constant 0 : index
    %353 = vector.load %arg2[%352, %c0_116, %c0_117] : memref<4x8x512xf32, #tpu.memory_space<vmem>>, vector<1x8x512xf32>
    %354 = vector.shape_cast %353 : vector<1x8x512xf32> to vector<8x512xf32>
    %355 = arith.addf %354, %350 : vector<8x512xf32>
    %356 = arith.index_cast %342 : i32 to index
    %c0_118 = arith.constant 0 : index
    %c0_119 = arith.constant 0 : index
    %357 = vector.load %arg3[%356, %c0_118, %c0_119] : memref<4x8x512xf32, #tpu.memory_space<vmem>>, vector<1x8x512xf32>
    %358 = vector.shape_cast %357 : vector<1x8x512xf32> to vector<8x512xf32>
    %359 = arith.addf %358, %351 : vector<8x512xf32>
    %360 = vector.extract_strided_slice %347 {offsets = [0, 0], sizes = [8, 128], strides = [1, 1]} : vector<16x128xf32> to vector<8x128xf32>
    %361 = vector.extract_strided_slice %355 {offsets = [0, 0], sizes = [8, 128], strides = [1, 1]} : vector<8x512xf32> to vector<8x128xf32>
    %362 = arith.negf %361 : vector<8x128xf32>
    %363 = math.exp %362 : vector<8x128xf32>
    %cst_120 = arith.constant 1.000000e+00 : f32
    %364 = vector.broadcast %cst_120 : f32 to vector<8x128xf32>
    %365 = arith.addf %364, %363 : vector<8x128xf32>
    %366 = arith.divf %364, %365 : vector<8x128xf32>
    %367 = vector.extract_strided_slice %355 {offsets = [0, 128], sizes = [8, 128], strides = [1, 1]} : vector<8x512xf32> to vector<8x128xf32>
    %368 = arith.negf %367 : vector<8x128xf32>
    %369 = math.exp %368 : vector<8x128xf32>
    %cst_121 = arith.constant 1.000000e+00 : f32
    %370 = vector.broadcast %cst_121 : f32 to vector<8x128xf32>
    %371 = arith.addf %370, %369 : vector<8x128xf32>
    %372 = arith.divf %370, %371 : vector<8x128xf32>
    %373 = vector.extract_strided_slice %355 {offsets = [0, 256], sizes = [8, 128], strides = [1, 1]} : vector<8x512xf32> to vector<8x128xf32>
    %374 = math.tanh %373 : vector<8x128xf32>
    %375 = vector.extract_strided_slice %355 {offsets = [0, 384], sizes = [8, 128], strides = [1, 1]} : vector<8x512xf32> to vector<8x128xf32>
    %376 = arith.negf %375 : vector<8x128xf32>
    %377 = math.exp %376 : vector<8x128xf32>
    %cst_122 = arith.constant 1.000000e+00 : f32
    %378 = vector.broadcast %cst_122 : f32 to vector<8x128xf32>
    %379 = arith.addf %378, %377 : vector<8x128xf32>
    %380 = arith.divf %378, %379 : vector<8x128xf32>
    %381 = arith.mulf %372, %360 : vector<8x128xf32>
    %382 = arith.mulf %366, %374 : vector<8x128xf32>
    %383 = arith.addf %381, %382 : vector<8x128xf32>
    %384 = math.tanh %383 : vector<8x128xf32>
    %385 = arith.mulf %380, %384 : vector<8x128xf32>
    %386 = vector.extract_strided_slice %347 {offsets = [8, 0], sizes = [8, 128], strides = [1, 1]} : vector<16x128xf32> to vector<8x128xf32>
    %387 = vector.extract_strided_slice %359 {offsets = [0, 0], sizes = [8, 128], strides = [1, 1]} : vector<8x512xf32> to vector<8x128xf32>
    %388 = arith.negf %387 : vector<8x128xf32>
    %389 = math.exp %388 : vector<8x128xf32>
    %cst_123 = arith.constant 1.000000e+00 : f32
    %390 = vector.broadcast %cst_123 : f32 to vector<8x128xf32>
    %391 = arith.addf %390, %389 : vector<8x128xf32>
    %392 = arith.divf %390, %391 : vector<8x128xf32>
    %393 = vector.extract_strided_slice %359 {offsets = [0, 128], sizes = [8, 128], strides = [1, 1]} : vector<8x512xf32> to vector<8x128xf32>
    %394 = arith.negf %393 : vector<8x128xf32>
    %395 = math.exp %394 : vector<8x128xf32>
    %cst_124 = arith.constant 1.000000e+00 : f32
    %396 = vector.broadcast %cst_124 : f32 to vector<8x128xf32>
    %397 = arith.addf %396, %395 : vector<8x128xf32>
    %398 = arith.divf %396, %397 : vector<8x128xf32>
    %399 = vector.extract_strided_slice %359 {offsets = [0, 256], sizes = [8, 128], strides = [1, 1]} : vector<8x512xf32> to vector<8x128xf32>
    %400 = math.tanh %399 : vector<8x128xf32>
    %401 = vector.extract_strided_slice %359 {offsets = [0, 384], sizes = [8, 128], strides = [1, 1]} : vector<8x512xf32> to vector<8x128xf32>
    %402 = arith.negf %401 : vector<8x128xf32>
    %403 = math.exp %402 : vector<8x128xf32>
    %cst_125 = arith.constant 1.000000e+00 : f32
    %404 = vector.broadcast %cst_125 : f32 to vector<8x128xf32>
    %405 = arith.addf %404, %403 : vector<8x128xf32>
    %406 = arith.divf %404, %405 : vector<8x128xf32>
    %407 = arith.mulf %398, %386 : vector<8x128xf32>
    %408 = arith.mulf %392, %400 : vector<8x128xf32>
    %409 = arith.addf %407, %408 : vector<8x128xf32>
    %410 = math.tanh %409 : vector<8x128xf32>
    %411 = arith.mulf %406, %410 : vector<8x128xf32>
    %412 = vector.broadcast %341 : i32 to vector<8x1xi32>
    %413 = arith.cmpi slt, %412, %3 : vector<8x1xi32>
    %414 = vector.broadcast %345 : i32 to vector<8x1xi32>
    %415 = arith.cmpi slt, %414, %3 : vector<8x1xi32>
    %416 = vector.extract_strided_slice %346 {offsets = [0, 0], sizes = [8, 128], strides = [1, 1]} : vector<16x128xf32> to vector<8x128xf32>
    %417 = vector.shape_cast %413 : vector<8x1xi1> to vector<8x1xi1>
    %418 = vector.broadcast %417 : vector<8x1xi1> to vector<8x128xi1>
    %419 = arith.select %418, %385, %416 : vector<8x128xi1>, vector<8x128xf32>
    %c0_126 = arith.constant 0 : index
    %c0_127 = arith.constant 0 : index
    %420 = vector.load %arg13[%c0_126, %c0_127] : memref<16x128xf32, #tpu.memory_space<vmem>>, vector<8x128xf32>
    tpu.vector_store %arg13[%c0_126, %c0_127], %419 {strides = array<i32>} : memref<16x128xf32, #tpu.memory_space<vmem>>, vector<8x128xf32>,
    %421 = vector.extract_strided_slice %347 {offsets = [0, 0], sizes = [8, 128], strides = [1, 1]} : vector<16x128xf32> to vector<8x128xf32>
    %422 = vector.shape_cast %413 : vector<8x1xi1> to vector<8x1xi1>
    %423 = vector.broadcast %422 : vector<8x1xi1> to vector<8x128xi1>
    %424 = arith.select %423, %383, %421 : vector<8x128xi1>, vector<8x128xf32>
    %c0_128 = arith.constant 0 : index
    %c0_129 = arith.constant 0 : index
    %425 = vector.load %arg14[%c0_128, %c0_129] : memref<16x128xf32, #tpu.memory_space<vmem>>, vector<8x128xf32>
    tpu.vector_store %arg14[%c0_128, %c0_129], %424 {strides = array<i32>} : memref<16x128xf32, #tpu.memory_space<vmem>>, vector<8x128xf32>,
    %426 = vector.extract_strided_slice %346 {offsets = [8, 0], sizes = [8, 128], strides = [1, 1]} : vector<16x128xf32> to vector<8x128xf32>
    %427 = vector.shape_cast %415 : vector<8x1xi1> to vector<8x1xi1>
    %428 = vector.broadcast %427 : vector<8x1xi1> to vector<8x128xi1>
    %429 = arith.select %428, %411, %426 : vector<8x128xi1>, vector<8x128xf32>
    %c8_130 = arith.constant 8 : index
    %c0_131 = arith.constant 0 : index
    %430 = vector.load %arg13[%c8_130, %c0_131] : memref<16x128xf32, #tpu.memory_space<vmem>>, vector<8x128xf32>
    tpu.vector_store %arg13[%c8_130, %c0_131], %429 {strides = array<i32>} : memref<16x128xf32, #tpu.memory_space<vmem>>, vector<8x128xf32>,
    %431 = vector.extract_strided_slice %347 {offsets = [8, 0], sizes = [8, 128], strides = [1, 1]} : vector<16x128xf32> to vector<8x128xf32>
    %432 = vector.shape_cast %415 : vector<8x1xi1> to vector<8x1xi1>
    %433 = vector.broadcast %432 : vector<8x1xi1> to vector<8x128xi1>
    %434 = arith.select %433, %409, %431 : vector<8x128xi1>, vector<8x128xf32>
    %c8_132 = arith.constant 8 : index
    %c0_133 = arith.constant 0 : index
    %435 = vector.load %arg14[%c8_132, %c0_133] : memref<16x128xf32, #tpu.memory_space<vmem>>, vector<8x128xf32>
    tpu.vector_store %arg14[%c8_132, %c0_133], %434 {strides = array<i32>} : memref<16x128xf32, #tpu.memory_space<vmem>>, vector<8x128xf32>,
    %cst_134 = arith.constant 0.000000e+00 : f32
    %436 = vector.shape_cast %413 : vector<8x1xi1> to vector<8x1xi1>
    %437 = vector.broadcast %436 : vector<8x1xi1> to vector<8x128xi1>
    %438 = vector.broadcast %cst_134 : f32 to vector<8x128xf32>
    %439 = arith.select %437, %385, %438 : vector<8x128xi1>, vector<8x128xf32>
    %440 = arith.index_cast %c3_i32_104 : i32 to index
    %c0_135 = arith.constant 0 : index
    %c0_136 = arith.constant 0 : index
    %441 = vector.load %arg7[%440, %c0_135, %c0_136] : memref<4x8x128xf32, #tpu.memory_space<vmem>>, vector<1x8x128xf32>
    %442 = vector.shape_cast %441 : vector<1x8x128xf32> to vector<8x128xf32>
    %443 = vector.shape_cast %439 : vector<8x128xf32> to vector<1x8x128xf32>
    tpu.vector_store %arg7[%440, %c0_135, %c0_136], %443 {strides = array<i32>} : memref<4x8x128xf32, #tpu.memory_space<vmem>>, vector<1x8x128xf32>,
    %cst_137 = arith.constant 0.000000e+00 : f32
    %444 = vector.shape_cast %415 : vector<8x1xi1> to vector<8x1xi1>
    %445 = vector.broadcast %444 : vector<8x1xi1> to vector<8x128xi1>
    %446 = vector.broadcast %cst_137 : f32 to vector<8x128xf32>
    %447 = arith.select %445, %411, %446 : vector<8x128xi1>, vector<8x128xf32>
    %448 = arith.index_cast %342 : i32 to index
    %c0_138 = arith.constant 0 : index
    %c0_139 = arith.constant 0 : index
    %449 = vector.load %arg8[%448, %c0_138, %c0_139] : memref<4x8x128xf32, #tpu.memory_space<vmem>>, vector<1x8x128xf32>
    %450 = vector.shape_cast %449 : vector<1x8x128xf32> to vector<8x128xf32>
    %451 = vector.shape_cast %447 : vector<8x128xf32> to vector<1x8x128xf32>
    tpu.vector_store %arg8[%448, %c0_138, %c0_139], %451 {strides = array<i32>} : memref<4x8x128xf32, #tpu.memory_space<vmem>>, vector<1x8x128xf32>,
    %c4_i32_140 = arith.constant 4 : i32
    %c2_i32_141 = arith.constant 2 : i32
    %452 = arith.cmpi eq, %arg0, %c2_i32_141 : i32
    %453 = arith.extui %452 : i1 to i32
    %c0_i32_142 = arith.constant 0 : i32
    %454 = arith.cmpi ne, %453, %c0_i32_142 : i32
    scf.if %454 {
      %c0_143 = arith.constant 0 : index
      %c0_144 = arith.constant 0 : index
      %455 = vector.load %arg13[%c0_143, %c0_144] : memref<16x128xf32, #tpu.memory_space<vmem>>, vector<16x128xf32>
      %c0_145 = arith.constant 0 : index
      %c0_146 = arith.constant 0 : index
      %456 = vector.load %arg9[%c0_145, %c0_146] : memref<16x128xf32, #tpu.memory_space<vmem>>, vector<16x128xf32>
      tpu.vector_store %arg9[%c0_145, %c0_146], %455 {strides = array<i32>} : memref<16x128xf32, #tpu.memory_space<vmem>>, vector<16x128xf32>,
      %c0_147 = arith.constant 0 : index
      %c0_148 = arith.constant 0 : index
      %457 = vector.load %arg14[%c0_147, %c0_148] : memref<16x128xf32, #tpu.memory_space<vmem>>, vector<16x128xf32>
      %c0_149 = arith.constant 0 : index
      %c0_150 = arith.constant 0 : index
      %458 = vector.load %arg10[%c0_149, %c0_150] : memref<16x128xf32, #tpu.memory_space<vmem>>, vector<16x128xf32>
      tpu.vector_store %arg10[%c0_149, %c0_150], %457 {strides = array<i32>} : memref<16x128xf32, #tpu.memory_space<vmem>>, vector<16x128xf32>,
    } else {
    }
    return
  }
  func.func @transform_0(%arg0: i32) -> (i32, i32) {
    %c0_i32 = arith.constant 0 : i32
    %c0_i32_0 = arith.constant 0 : i32
    %c0_i32_1 = arith.constant 0 : i32
    return %c0_i32, %c0_i32_0 : i32, i32
  }
  func.func @transform_1(%arg0: i32) -> (i32, i32, i32) {
    %c0_i32 = arith.constant 0 : i32
    %c0_i32_0 = arith.constant 0 : i32
    %c0_i32_1 = arith.constant 0 : i32
    return %arg0, %c0_i32, %c0_i32_0 : i32, i32, i32
  }
  func.func @transform_2(%arg0: i32) -> (i32, i32, i32) {
    %c2_i32 = arith.constant 2 : i32
    %0 = arith.subi %c2_i32, %arg0 : i32
    %c0_i32 = arith.constant 0 : i32
    %c0_i32_0 = arith.constant 0 : i32
    %c0_i32_1 = arith.constant 0 : i32
    return %0, %c0_i32, %c0_i32_0 : i32, i32, i32
  }
  func.func @transform_4(%arg0: i32) -> (i32, i32) {
    %c0_i32 = arith.constant 0 : i32
    %c0_i32_0 = arith.constant 0 : i32
    %c0_i32_1 = arith.constant 0 : i32
    return %c0_i32, %c0_i32_0 : i32, i32
  }
  func.func @transform_5(%arg0: i32) -> (i32, i32) {
    %c0_i32 = arith.constant 0 : i32
    %c0_i32_0 = arith.constant 0 : i32
    %c0_i32_1 = arith.constant 0 : i32
    return %c0_i32, %c0_i32_0 : i32, i32
  }
  func.func @transform_6(%arg0: i32) -> (i32, i32, i32) {
    %c0_i32 = arith.constant 0 : i32
    %c0_i32_0 = arith.constant 0 : i32
    %c0_i32_1 = arith.constant 0 : i32
    return %arg0, %c0_i32, %c0_i32_0 : i32, i32, i32
  }
  func.func @transform_7(%arg0: i32) -> (i32, i32, i32) {
    %c2_i32 = arith.constant 2 : i32
    %0 = arith.subi %c2_i32, %arg0 : i32
    %c0_i32 = arith.constant 0 : i32
    %c0_i32_0 = arith.constant 0 : i32
    %c0_i32_1 = arith.constant 0 : i32
    return %0, %c0_i32, %c0_i32_0 : i32, i32, i32
  }
  func.func @transform_8(%arg0: i32) -> (i32, i32) {
    %c0_i32 = arith.constant 0 : i32
    %c0_i32_0 = arith.constant 0 : i32
    %c0_i32_1 = arith.constant 0 : i32
    return %c0_i32, %c0_i32_0 : i32, i32
  }
  func.func @transform_9(%arg0: i32) -> (i32, i32) {
    %c0_i32 = arith.constant 0 : i32
    %c0_i32_0 = arith.constant 0 : i32
    %c0_i32_1 = arith.constant 0 : i32
    return %c0_i32, %c0_i32_0 : i32, i32
  }
}

</mosaic_0001>

<llo_original>
// kernel: tpu_custom_call.1
$region0: #{tpu_custom_call.1}
  #allocation0 [shape = 'u32[]', space=smem, size = 0x4, offset = 0x4, fixed_abs, tag = 'smem constant byte address 0x4 - core index']
  #allocation1 [shape = 'u32[144,128]{1,0:T(1,128)}', space=vmem, size = 0x12000, scoped, tag = 'internal scratch']
  #allocation2 [shape = 'f32[128,1024]{1,0:T(8,128)}', space=vmem, size = 0x80000, scoped, tag = 'scratch operand']
  #allocation3 [shape = 's32[1]{0}', space=sflag, size = 0x4, scoped, tag = 'scratch operand']
  #allocation4 [shape = 'f32[16,128]{1,0:T(8,128)}', space=vmem, size = 0x2000, scoped, tag = 'scratch operand']
  #allocation5 [shape = 'f32[16,128]{1,0:T(8,128)}', space=vmem, size = 0x2000, scoped, tag = 'scratch operand']
  #allocation18 [shape = 's32[]', space=sflag, size = 0x4, offset = 0, fixed_abs, tag = 'sflag constant byte address 0x0 - dummy sync flag']
  #allocation19 [shape = 's32[]', space=sflag, size = 0x4, offset = 0, fixed_abs, tag = 'sflag constant byte address 0x0 - dummy sync flag']
  #allocation20 [shape = 'u32[]', space=smem, size = 0x4, offset = 0x44, fixed_abs, tag = 'smem constant byte address 0x44 - assertion arg 0']
  #allocation21 [shape = 'u32[]', space=smem, size = 0x4, offset = 0x48, fixed_abs, tag = 'smem constant byte address 0x48 - assertion arg 1']
  %s0 = inlined_call_operand.vmem [shape: s32[8,1], index: 0, kind: input, shape index: {}]
  %s1 = inlined_call_operand.hbm [shape: f32[12,8,512], index: 1, kind: input, shape index: {}]
  %s2 = inlined_call_operand.hbm [shape: f32[12,8,512], index: 2, kind: input, shape index: {}]
  %s3 = inlined_call_operand.hbm [shape: f32[128,1024], index: 3, kind: input, shape index: {}]
  %s4 = inlined_call_operand.vmem [shape: f32[16,128], index: 4, kind: input, shape index: {}]
  %s5 = inlined_call_operand.hbm [shape: f32[16,128], index: 5, kind: input, shape index: {}]
  %s6 = inlined_call_operand.hbm [shape: f32[12,8,128], index: 6, kind: output, shape index: {0}]
  %s7 = inlined_call_operand.hbm [shape: f32[12,8,128], index: 7, kind: output, shape index: {1}]
  %s8 = inlined_call_operand.hbm [shape: f32[16,128], index: 8, kind: output, shape index: {2}]
  %s9 = inlined_call_operand.hbm [shape: f32[16,128], index: 9, kind: output, shape index: {3}]
  %10 = xla_tuple %s6, %s7, %s8, %s9
  %s11 = sld [smem:[#allocation0]]
  $region101: #{tpu_custom_call.1} parent=0
    _
  %s13 = ssub.s32 1, %s11
  %s14 = scalar_select 0, %s13, %s11
  $region1: #{tpu_custom_call.1} parent=0
    #allocation6 [shape = 'u8[131072]{0}', space=vmem, size = 0x20000, scoped, tag = 'input window, operand 1']
    #allocation7 [shape = 's32[2]{0}', space=sflag, size = 0x8, scoped, tag = 'scoped memory for tpu_custom_call.1']
    #allocation8 [shape = 's32[2]{0}', space=sflag, size = 0x8, scoped, tag = 'scoped memory for tpu_custom_call.1']
    #allocation9 [shape = 'u8[131072]{0}', space=vmem, size = 0x20000, scoped, tag = 'input window, operand 2']
    #allocation10 [shape = 's32[2]{0}', space=sflag, size = 0x8, scoped, tag = 'scoped memory for tpu_custom_call.1']
    #allocation11 [shape = 'u8[8192]{0}', space=vmem, size = 0x2000, scoped, tag = 'input window, operand 5, single buffered']
    #allocation12 [shape = 'u8[32768]{0}', space=vmem, size = 0x8000, scoped, tag = 'output window, operand 0']
    #allocation13 [shape = 'u8[32768]{0}', space=vmem, size = 0x8000, scoped, tag = 'output window, operand 1']
    #allocation14 [shape = 's32[2]{0}', space=sflag, size = 0x8, scoped, tag = 'scoped memory for tpu_custom_call.1']
    #allocation15 [shape = 'u8[8192]{0}', space=vmem, size = 0x2000, scoped, tag = 'output window, operand 2, single buffered']
    #allocation16 [shape = 'u8[8192]{0}', space=vmem, size = 0x2000, scoped, tag = 'output window, operand 3, single buffered']
    #allocation17 [shape = 's32[1]{0}', space=sflag, size = 0x4, scoped, tag = 'scoped memory for tpu_custom_call.1']
    %15 = vsyncpa [#allocation7], 0
    %s16 = scalar_lea.sflag [#allocation7], 1
    %17 = vsyncpa %s16, 0
    %18 = vsyncpa [#allocation10], 0
    %s19 = scalar_lea.sflag [#allocation10], 1
    %20 = vsyncpa %s19, 0
    %21 = vsyncpa [#allocation8], 0
    %s22 = scalar_lea.sflag [#allocation8], 1
    %23 = vsyncpa %s22, 0
    %24 = vsyncpa [#allocation14], 0
    %s25 = scalar_lea.sflag [#allocation14], 1
    %26 = vsyncpa %s25, 0
    %27 = vsyncpa [#allocation17], 0
    loop: start=0, step=1, limit=5
    $region2: #{tpu_custom_call.1} parent=1 // loop_pre_header
      _
    $region3: #{tpu_custom_call.1} parent=1 // loop_header
      %s29 = sphi 0, %s33
      %p30 = scmp.ge.s32.totalorder %s29, 5
      %s37 = sphi 0, %s37
      %s39 = sphi 0, %s37
      %s40 = sphi 0, %s39
      %s54 = sphi 0, %s40
      %s60 = sphi 0, %s62
      %s63 = sphi 0, %s60
      %s64 = sphi 0, %s63
      %s80 = sphi 0, %s64
      %s88 = sphi 0, %s90
      %s91 = sphi 0, %s88
      %s92 = sphi 0, %s91
      %s108 = sphi 0, %s92
      %s112 = sphi 0, %s112
      %s114 = sphi 0, %s112
      %s115 = sphi 0, %s114
      %s129 = sphi 0, %s115
      %s133 = sphi 0, %s133
      %s135 = sphi 0, %s133
      %s136 = sphi 0, %s135
      %s150 = sphi 0, %s136
      %s156 = sphi 0, %s158
      %s159 = sphi 0, %s156
      %s160 = sphi 0, %s159
      %s176 = sphi 0, %s160
      %s184 = sphi 0, %s186
      %s187 = sphi 0, %s184
      %s188 = sphi 0, %s187
      %s204 = sphi 0, %s188
      %s208 = sphi 0, %s208
      %s210 = sphi 0, %s208
      %s211 = sphi 0, %s210
      %s225 = sphi 0, %s211
      %s229 = sphi 0, %s229
      %s231 = sphi 0, %s229
      %s232 = sphi 0, %s231
      %s246 = sphi 0, %s232
    $region4: #{tpu_custom_call.1} parent=1 // loop_header_branch
      %32 = sbr.rel (%p30) target = $region8
    $region5: #{tpu_custom_call.1} parent=1 // loop_body
      %s34 = ssub.s32 %s29, 1
      %s35 = ssub.s32 %s29, 2
      %s36 = sadd.s32 %s29, 1
      %s38 = sadd.s32 %s37, 1
      %p41 = scmp.eq.s32.totalorder %s29, 2
      %p42 = scmp.ne.s32.totalorder %s37, %s39
      %p43 = scmp.eq.s32.totalorder %s29, 0
      %p44 = por %p42, %p43
      %p45 = scmp.ne.s32.totalorder %s37, %s39
      %p46 = scmp.eq.s32.totalorder %s34, 2
      %p47 = por %p45, %p46
      %p48 = scmp.ne.s32.totalorder %s39, %s40
      %p49 = scmp.eq.s32.totalorder %s34, 0
      %p50 = por %p48, %p49
      %p51 = scmp.ne.s32.totalorder %s39, %s40
      %p52 = scmp.eq.s32.totalorder %s35, 2
      %p53 = por %p51, %p52
      %p55 = scmp.ne.s32.totalorder %s40, %s54
      %p56 = scmp.eq.s32.totalorder %s35, 0
      %p57 = por %p55, %p56
      %s58 = ssub.s32 %s29, %s36
      %p59 = scmp.eq.s32.totalorder %s58, 0
      %s61 = sadd.s32 %s60, 1
      %s62 = scalar_select %p59, %s60, %s61
      %p65 = pneg %p59
      %p66 = scmp.eq.s32.totalorder %s29, 2
      %p67 = por %p65, %p66
      %p68 = scmp.ne.s32.totalorder %s60, %s63
      %p69 = scmp.eq.s32.totalorder %s29, 0
      %p70 = por %p68, %p69
      %p71 = scmp.ne.s32.totalorder %s60, %s63
      %p72 = scmp.eq.s32.totalorder %s34, 2
      %p73 = por %p71, %p72
      %p74 = scmp.ne.s32.totalorder %s63, %s64
      %p75 = scmp.eq.s32.totalorder %s34, 0
      %p76 = por %p74, %p75
      %p77 = scmp.ne.s32.totalorder %s63, %s64
      %p78 = scmp.eq.s32.totalorder %s35, 2
      %p79 = por %p77, %p78
      %p81 = scmp.ne.s32.totalorder %s64, %s80
      %p82 = scmp.eq.s32.totalorder %s35, 0
      %p83 = por %p81, %p82
      %s84 = ssub.s32 2, %s29
      %s85 = ssub.s32 2, %s36
      %s86 = ssub.s32 %s84, %s85
      %p87 = scmp.eq.s32.totalorder %s86, 0
      %s89 = sadd.s32 %s88, 1
      %s90 = scalar_select %p87, %s88, %s89
      %p93 = pneg %p87
      %p94 = scmp.eq.s32.totalorder %s29, 2
      %p95 = por %p93, %p94
      %p96 = scmp.ne.s32.totalorder %s88, %s91
      %p97 = scmp.eq.s32.totalorder %s29, 0
      %p98 = por %p96, %p97
      %p99 = scmp.ne.s32.totalorder %s88, %s91
      %p100 = scmp.eq.s32.totalorder %s34, 2
      %p101 = por %p99, %p100
      %p102 = scmp.ne.s32.totalorder %s91, %s92
      %p103 = scmp.eq.s32.totalorder %s34, 0
      %p104 = por %p102, %p103
      %p105 = scmp.ne.s32.totalorder %s91, %s92
      %p106 = scmp.eq.s32.totalorder %s35, 2
      %p107 = por %p105, %p106
      %p109 = scmp.ne.s32.totalorder %s92, %s108
      %p110 = scmp.eq.s32.totalorder %s35, 0
      %p111 = por %p109, %p110
      %s113 = sadd.s32 %s112, 1
      %p116 = scmp.eq.s32.totalorder %s29, 2
      %p117 = scmp.ne.s32.totalorder %s112, %s114
      %p118 = scmp.eq.s32.totalorder %s29, 0
      %p119 = por %p117, %p118
      %p120 = scmp.ne.s32.totalorder %s112, %s114
      %p121 = scmp.eq.s32.totalorder %s34, 2
      %p122 = por %p120, %p121
      %p123 = scmp.ne.s32.totalorder %s114, %s115
      %p124 = scmp.eq.s32.totalorder %s34, 0
      %p125 = por %p123, %p124
      %p126 = scmp.ne.s32.totalorder %s114, %s115
      %p127 = scmp.eq.s32.totalorder %s35, 2
      %p128 = por %p126, %p127
      %p130 = scmp.ne.s32.totalorder %s115, %s129
      %p131 = scmp.eq.s32.totalorder %s35, 0
      %p132 = por %p130, %p131
      %s134 = sadd.s32 %s133, 1
      %p137 = scmp.eq.s32.totalorder %s29, 2
      %p138 = scmp.ne.s32.totalorder %s133, %s135
      %p139 = scmp.eq.s32.totalorder %s29, 0
      %p140 = por %p138, %p139
      %p141 = scmp.ne.s32.totalorder %s133, %s135
      %p142 = scmp.eq.s32.totalorder %s34, 2
      %p143 = por %p141, %p142
      %p144 = scmp.ne.s32.totalorder %s135, %s136
      %p145 = scmp.eq.s32.totalorder %s34, 0
      %p146 = por %p144, %p145
      %p147 = scmp.ne.s32.totalorder %s135, %s136
      %p148 = scmp.eq.s32.totalorder %s35, 2
      %p149 = por %p147, %p148
      %p151 = scmp.ne.s32.totalorder %s136, %s150
      %p152 = scmp.eq.s32.totalorder %s35, 0
      %p153 = por %p151, %p152
      %s154 = ssub.s32 %s29, %s36
      %p155 = scmp.eq.s32.totalorder %s154, 0
      %s157 = sadd.s32 %s156, 1
      %s158 = scalar_select %p155, %s156, %s157
      %p161 = pneg %p155
      %p162 = scmp.eq.s32.totalorder %s29, 2
      %p163 = por %p161, %p162
      %p164 = scmp.ne.s32.totalorder %s156, %s159
      %p165 = scmp.eq.s32.totalorder %s29, 0
      %p166 = por %p164, %p165
      %p167 = scmp.ne.s32.totalorder %s156, %s159
      %p168 = scmp.eq.s32.totalorder %s34, 2
      %p169 = por %p167, %p168
      %p170 = scmp.ne.s32.totalorder %s159, %s160
      %p171 = scmp.eq.s32.totalorder %s34, 0
      %p172 = por %p170, %p171
      %p173 = scmp.ne.s32.totalorder %s159, %s160
      %p174 = scmp.eq.s32.totalorder %s35, 2
      %p175 = por %p173, %p174
      %p177 = scmp.ne.s32.totalorder %s160, %s176
      %p178 = scmp.eq.s32.totalorder %s35, 0
      %p179 = por %p177, %p178
      %s180 = ssub.s32 2, %s29
      %s181 = ssub.s32 2, %s36
      %s182 = ssub.s32 %s180, %s181
      %p183 = scmp.eq.s32.totalorder %s182, 0
      %s185 = sadd.s32 %s184, 1
      %s186 = scalar_select %p183, %s184, %s185
      %p189 = pneg %p183
      %p190 = scmp.eq.s32.totalorder %s29, 2
      %p191 = por %p189, %p190
      %p192 = scmp.ne.s32.totalorder %s184, %s187
      %p193 = scmp.eq.s32.totalorder %s29, 0
      %p194 = por %p192, %p193
      %p195 = scmp.ne.s32.totalorder %s184, %s187
      %p196 = scmp.eq.s32.totalorder %s34, 2
      %p197 = por %p195, %p196
      %p198 = scmp.ne.s32.totalorder %s187, %s188
      %p199 = scmp.eq.s32.totalorder %s34, 0
      %p200 = por %p198, %p199
      %p201 = scmp.ne.s32.totalorder %s187, %s188
      %p202 = scmp.eq.s32.totalorder %s35, 2
      %p203 = por %p201, %p202
      %p205 = scmp.ne.s32.totalorder %s188, %s204
      %p206 = scmp.eq.s32.totalorder %s35, 0
      %p207 = por %p205, %p206
      %s209 = sadd.s32 %s208, 1
      %p212 = scmp.eq.s32.totalorder %s29, 2
      %p213 = scmp.ne.s32.totalorder %s208, %s210
      %p214 = scmp.eq.s32.totalorder %s29, 0
      %p215 = por %p213, %p214
      %p216 = scmp.ne.s32.totalorder %s208, %s210
      %p217 = scmp.eq.s32.totalorder %s34, 2
      %p218 = por %p216, %p217
      %p219 = scmp.ne.s32.totalorder %s210, %s211
      %p220 = scmp.eq.s32.totalorder %s34, 0
      %p221 = por %p219, %p220
      %p222 = scmp.ne.s32.totalorder %s210, %s211
      %p223 = scmp.eq.s32.totalorder %s35, 2
      %p224 = por %p222, %p223
      %p226 = scmp.ne.s32.totalorder %s211, %s225
      %p227 = scmp.eq.s32.totalorder %s35, 0
      %p228 = por %p226, %p227
      %s230 = sadd.s32 %s229, 1
      %p233 = scmp.eq.s32.totalorder %s29, 2
      %p234 = scmp.ne.s32.totalorder %s229, %s231
      %p235 = scmp.eq.s32.totalorder %s29, 0
      %p236 = por %p234, %p235
      %p237 = scmp.ne.s32.totalorder %s229, %s231
      %p238 = scmp.eq.s32.totalorder %s34, 2
      %p239 = por %p237, %p238
      %p240 = scmp.ne.s32.totalorder %s231, %s232
      %p241 = scmp.eq.s32.totalorder %s34, 0
      %p242 = por %p240, %p241
      %p243 = scmp.ne.s32.totalorder %s231, %s232
      %p244 = scmp.eq.s32.totalorder %s35, 2
      %p245 = por %p243, %p244
      %p247 = scmp.ne.s32.totalorder %s232, %s246
      %p248 = scmp.eq.s32.totalorder %s35, 0
      %p249 = por %p247, %p248
      %p250 = scmp.le.s32.totalorder 1, %s29
      %p251 = scmp.lt.s32.totalorder %s29, 4
      %p252 = pnand %p250, %p251
      %p253 = pneg %p252
      // Predicated region
      $region9: #{tpu_custom_call.1} parent=5 // pred_check
        _
      $region10: #{tpu_custom_call.1} parent=5 // pred_check_branch
        %255 = sbr.rel (%p252) target = $region12
      $region11: #{tpu_custom_call.1} parent=5 // pred_region
        %s256 = ssub.s32 %s29, 1
        // Predicated region
        $region13: #{tpu_custom_call.1} parent=11 // pred_check
          %p257 = pneg %p50
        $region14: #{tpu_custom_call.1} parent=11 // pred_check_branch
          %259 = sbr.rel (%p257) target = $region16
        $region15: #{tpu_custom_call.1} parent=11 // pred_region
          _
        $region16: #{tpu_custom_call.1} parent=11 // pred_fallthru
          _
        // Predicated region
        $region17: #{tpu_custom_call.1} parent=11 // pred_check
          %p260 = pneg %p125
        $region18: #{tpu_custom_call.1} parent=11 // pred_check_branch
          %262 = sbr.rel (%p260) target = $region20
        $region19: #{tpu_custom_call.1} parent=11 // pred_region
          _
        $region20: #{tpu_custom_call.1} parent=11 // pred_fallthru
          _
        // Predicated region
        $region21: #{tpu_custom_call.1} parent=11 // pred_check
          %p263 = pneg %p146
        $region22: #{tpu_custom_call.1} parent=11 // pred_check_branch
          %265 = sbr.rel (%p263) target = $region24
        $region23: #{tpu_custom_call.1} parent=11 // pred_region
          %s267 = ssub.s32 256, 256
          %268 = vsyncadd [#allocation10], %s267
          %s269 = sshll.u32 [#allocation11], 4
          %s270 = int_to_ptr.vmem [resolvable:$true] %s269
          %275 = dma.hbm_to_vmem [thread:$0]  %s5, 256, %s270, [#allocation10], 128, 128, 8
        $region24: #{tpu_custom_call.1} parent=11 // pred_fallthru
          _
      $region12: #{tpu_custom_call.1} parent=5 // pred_fallthru
        _
      %p276 = scmp.lt.s32.totalorder %s29, 3
      // Predicated region
      $region25: #{tpu_custom_call.1} parent=5 // pred_check
        %p277 = pneg %p276
      $region26: #{tpu_custom_call.1} parent=5 // pred_check_branch
        %279 = sbr.rel (%p277) target = $region28
      $region27: #{tpu_custom_call.1} parent=5 // pred_region
        // Predicated region
        $region29: #{tpu_custom_call.1} parent=27 // pred_check
          %p280 = pneg %p70
        $region30: #{tpu_custom_call.1} parent=27 // pred_check_branch
          %282 = sbr.rel (%p280) target = $region32
        $region31: #{tpu_custom_call.1} parent=27 // pred_region
          %s283 = sand.u32 %s60, 1
          %s284 = scalar_lea.sflag [#allocation7], %s283
          %s285 = sand.u32 %s60, 1
          %s286 = smul.addr %s285, 128
          %s287 = scalar_lea.vmem [#allocation6], %s286
          %s288 = smul.u32 4, %s29
          %s290 = ssub.s32 2048, 2048
          %291 = vsyncadd %s284, %s290
          %s292 = smul.addr %s288, 4
          %s293 = smul.addr %s292, 128
          %s294 = scalar_lea.hbm %s1, %s293
          %s295 = sshll.u32 %s287, 4
          %s296 = int_to_ptr.vmem [resolvable:$true] %s295
          %301 = dma.hbm_to_vmem [thread:$0]  %s294, 2048, %s296, %s284, 512, 512, 32
        $region32: #{tpu_custom_call.1} parent=27 // pred_fallthru
          _
        // Predicated region
        $region33: #{tpu_custom_call.1} parent=27 // pred_check
          %p302 = pneg %p98
        $region34: #{tpu_custom_call.1} parent=27 // pred_check_branch
          %304 = sbr.rel (%p302) target = $region36
        $region35: #{tpu_custom_call.1} parent=27 // pred_region
          %s305 = sand.u32 %s29, 1
          %s306 = scalar_lea.sflag [#allocation10], %s305
          %s307 = sand.u32 %s88, 1
          %s308 = smul.addr %s307, 128
          %s309 = scalar_lea.vmem [#allocation9], %s308
          %s310 = ssub.s32 2, %s29
          %s311 = smul.u32 4, %s310
          %s313 = ssub.s32 2048, 2048
          %314 = vsyncadd %s306, %s313
          %s315 = smul.addr %s311, 4
          %s316 = smul.addr %s315, 128
          %s317 = scalar_lea.hbm %s2, %s316
          %s318 = sshll.u32 %s309, 4
          %s319 = int_to_ptr.vmem [resolvable:$true] %s318
          %324 = dma.hbm_to_vmem [thread:$0]  %s317, 2048, %s319, %s306, 512, 512, 32
        $region36: #{tpu_custom_call.1} parent=27 // pred_fallthru
          _
      $region28: #{tpu_custom_call.1} parent=5 // pred_fallthru
        _
      %p325 = scmp.le.s32.totalorder 1, %s29
      %p326 = scmp.lt.s32.totalorder %s29, 4
      %p327 = pnand %p325, %p326
      %p328 = pneg %p327
      // Predicated region
      $region37: #{tpu_custom_call.1} parent=5 // pred_check
        _
      $region38: #{tpu_custom_call.1} parent=5 // pred_check_branch
        %330 = sbr.rel (%p327) target = $region40
      $region39: #{tpu_custom_call.1} parent=5 // pred_region
        %s331 = ssub.s32 %s29, 1
        %s332 = sand.u32 %s63, 1
        %s333 = scalar_lea.sflag [#allocation7], %s332
        %s334 = sand.u32 %s63, 1
        %s335 = smul.addr %s334, 128
        %s336 = scalar_lea.vmem [#allocation6], %s335
        // Predicated region
        $region41: #{tpu_custom_call.1} parent=39 // pred_check
          %p337 = pneg %p76
        $region42: #{tpu_custom_call.1} parent=39 // pred_check_branch
          %339 = sbr.rel (%p337) target = $region44
        $region43: #{tpu_custom_call.1} parent=39 // pred_region
          %340 = dma.done %s333, 2048
        $region44: #{tpu_custom_call.1} parent=39 // pred_fallthru
          _
        %s341 = sand.u32 %s34, 1
        %s342 = scalar_lea.sflag [#allocation10], %s341
        %s343 = sand.u32 %s91, 1
        %s344 = smul.addr %s343, 128
        %s345 = scalar_lea.vmem [#allocation9], %s344
        // Predicated region
        $region45: #{tpu_custom_call.1} parent=39 // pred_check
          %p346 = pneg %p104
        $region46: #{tpu_custom_call.1} parent=39 // pred_check_branch
          %348 = sbr.rel (%p346) target = $region48
        $region47: #{tpu_custom_call.1} parent=39 // pred_region
          %349 = dma.done %s342, 2048
        $region48: #{tpu_custom_call.1} parent=39 // pred_fallthru
          _
        // Predicated region
        $region49: #{tpu_custom_call.1} parent=39 // pred_check
          %p350 = pneg %p146
        $region50: #{tpu_custom_call.1} parent=39 // pred_check_branch
          %352 = sbr.rel (%p350) target = $region52
        $region51: #{tpu_custom_call.1} parent=39 // pred_region
          %353 = dma.done [#allocation10], 256
        $region52: #{tpu_custom_call.1} parent=39 // pred_fallthru
          _
        %p354 = pneg %p50
        %p355 = pneg %p47
        %s356 = sand.u32 %s63, 1
        %s357 = scalar_lea.sflag [#allocation7], %s356
        %s358 = sand.u32 %s63, 1
        %s359 = smul.addr %s358, 128
        %s360 = scalar_lea.vmem [#allocation6], %s359
        %p361 = pneg %p76
        %p362 = pneg %p73
        %s363 = sand.u32 %s34, 1
        %s364 = scalar_lea.sflag [#allocation10], %s363
        %s365 = sand.u32 %s91, 1
        %s366 = smul.addr %s365, 128
        %s367 = scalar_lea.vmem [#allocation9], %s366
        %p368 = pneg %p104
        %p369 = pneg %p101
        %p370 = pneg %p125
        %p371 = pneg %p122
        %p372 = pneg %p146
        %p373 = pneg %p143
        %p374 = pneg %p172
        %p375 = pneg %p169
        %s376 = sand.u32 %s159, 1
        %s377 = scalar_lea.sflag [#allocation8], %s376
        %s378 = sand.u32 %s159, 1
        %s379 = smul.addr %s378, 32
        %s380 = scalar_lea.vmem [#allocation12], %s379
        %p381 = pneg %p200
        %p382 = pneg %p197
        %s383 = sand.u32 %s34, 1
        %s384 = scalar_lea.sflag [#allocation14], %s383
        %s385 = sand.u32 %s187, 1
        %s386 = smul.addr %s385, 32
        %s387 = scalar_lea.vmem [#allocation13], %s386
        %p388 = pneg %p221
        %p389 = pneg %p218
        %p390 = pneg %p242
        %p391 = pneg %p239
        %s392 = smul.u32 4, %s34
        %s393 = ssub.s32 2, %s34
        %s394 = smul.u32 4, %s393
        %s395 = smul.u32 4, %s34
        %s396 = ssub.s32 2, %s34
        %s397 = smul.u32 4, %s396
        %p398 = scmp.eq.s32.totalorder %s34, 0
        // Predicated region
        $region53: #{tpu_custom_call.1} parent=39 // pred_check
          %p399 = pneg %p398
        $region54: #{tpu_custom_call.1} parent=39 // pred_check_branch
          %401 = sbr.rel (%p399) target = $region56
        $region55: #{tpu_custom_call.1} parent=39 // pred_region
          // Predicated region
          $region57: #{tpu_custom_call.1} parent=55 // pred_check
            _
          $region58: #{tpu_custom_call.1} parent=55 // pred_check_branch
            %403 = sbr.rel target = $region60
          $region59: #{tpu_custom_call.1} parent=55 // pred_region
            %404 = sst [smem:[#allocation20]] [#allocation19]
            %405 = sst [smem:[#allocation21]] [#allocation18]
          $region60: #{tpu_custom_call.1} parent=55 // pred_fallthru
            _
          %407 = shalt.err (0)
          %s409 = sshll.u32 [#allocation2], 4
          %s410 = int_to_ptr.vmem [resolvable:$true] %s409
          %412 = dma.hbm_to_vmem [thread:$0]  %s3, 16384, %s410, [#allocation3]
          %s413 = smul.u32 8, 16
          %s414 = smul.u32 %s413, 8
          %s415 = sshll.u32 %s414, 4
          %416 = dma.done [#allocation3], %s415
          %v417 = vld [vmem:[%s4] sm:$0xff]
          %v418 = vld [vmem:[%s4 + $0x8] sm:$0xff]
          %419 = vst [vmem:[#allocation4] sm:$0xff] %v417
          %420 = vst [vmem:[#allocation4 + $0x8] sm:$0xff] %v418
          %v421 = vld [vmem:[#allocation11] sm:$0xff]
          %v422 = vld [vmem:[#allocation11 + $0x8] sm:$0xff]
          %423 = vst [vmem:[#allocation5] sm:$0xff] %v421
          %424 = vst [vmem:[#allocation5 + $0x8] sm:$0xff] %v422
        $region56: #{tpu_custom_call.1} parent=39 // pred_fallthru
          _
        %v425 = vld [vmem:[%s0] sm:$0xff]
        %s426 = smul.u32 %s34, 4
        %s427 = ssub.s32 2, %s34
        %s428 = smul.u32 %s427, 4
        %s429 = sadd.s32 %s428, 3
        %v430 = vld [vmem:[#allocation4] sm:$0xff]
        %v431 = vld [vmem:[#allocation4 + $0x8] sm:$0xff]
        %v432 = vld [vmem:[#allocation5] sm:$0xff]
        %v433 = vld [vmem:[#allocation5 + $0x8] sm:$0xff]
        %v434 = vld [vmem:[#allocation2] sm:$0xff]
        %v435 = vld [vmem:[#allocation2 + $0x8] sm:$0xff]
        %v436 = vld [vmem:[#allocation2 + $0x10] sm:$0xff]
        %v437 = vld [vmem:[#allocation2 + $0x18] sm:$0xff]
        %v438 = vld [vmem:[#allocation2 + $0x20] sm:$0xff]
        %v439 = vld [vmem:[#allocation2 + $0x28] sm:$0xff]
        %v440 = vld [vmem:[#allocation2 + $0x30] sm:$0xff]
        %v441 = vld [vmem:[#allocation2 + $0x38] sm:$0xff]
        %v442 = vld [vmem:[#allocation2 + $0x40] sm:$0xff]
        %v443 = vld [vmem:[#allocation2 + $0x48] sm:$0xff]
        %v444 = vld [vmem:[#allocation2 + $0x50] sm:$0xff]
        %v445 = vld [vmem:[#allocation2 + $0x58] sm:$0xff]
        %v446 = vld [vmem:[#allocation2 + $0x60] sm:$0xff]
        %v447 = vld [vmem:[#allocation2 + $0x68] sm:$0xff]
        %v448 = vld [vmem:[#allocation2 + $0x70] sm:$0xff]
        %v449 = vld [vmem:[#allocation2 + $0x78] sm:$0xff]
        %v450 = vld [vmem:[#allocation2 + $0x80] sm:$0xff]
        %v451 = vld [vmem:[#allocation2 + $0x88] sm:$0xff]
        %v452 = vld [vmem:[#allocation2 + $0x90] sm:$0xff]
        %v453 = vld [vmem:[#allocation2 + $0x98] sm:$0xff]
        %v454 = vld [vmem:[#allocation2 + $0xa0] sm:$0xff]
        %v455 = vld [vmem:[#allocation2 + $0xa8] sm:$0xff]
        %v456 = vld [vmem:[#allocation2 + $0xb0] sm:$0xff]
        %v457 = vld [vmem:[#allocation2 + $0xb8] sm:$0xff]
        %v458 = vld [vmem:[#allocation2 + $0xc0] sm:$0xff]
        %v459 = vld [vmem:[#allocation2 + $0xc8] sm:$0xff]
        %v460 = vld [vmem:[#allocation2 + $0xd0] sm:$0xff]
        %v461 = vld [vmem:[#allocation2 + $0xd8] sm:$0xff]
        %v462 = vld [vmem:[#allocation2 + $0xe0] sm:$0xff]
        %v463 = vld [vmem:[#allocation2 + $0xe8] sm:$0xff]
        %v464 = vld [vmem:[#allocation2 + $0xf0] sm:$0xff]
        %v465 = vld [vmem:[#allocation2 + $0xf8] sm:$0xff]
        %v466 = vld [vmem:[#allocation2 + $0x100] sm:$0xff]
        %v467 = vld [vmem:[#allocation2 + $0x108] sm:$0xff]
        %v468 = vld [vmem:[#allocation2 + $0x110] sm:$0xff]
        %v469 = vld [vmem:[#allocation2 + $0x118] sm:$0xff]
        %v470 = vld [vmem:[#allocation2 + $0x120] sm:$0xff]
        %v471 = vld [vmem:[#allocation2 + $0x128] sm:$0xff]
        %v472 = vld [vmem:[#allocation2 + $0x130] sm:$0xff]
        %v473 = vld [vmem:[#allocation2 + $0x138] sm:$0xff]
        %v474 = vld [vmem:[#allocation2 + $0x140] sm:$0xff]
        %v475 = vld [vmem:[#allocation2 + $0x148] sm:$0xff]
        %v476 = vld [vmem:[#allocation2 + $0x150] sm:$0xff]
        %v477 = vld [vmem:[#allocation2 + $0x158] sm:$0xff]
        %v478 = vld [vmem:[#allocation2 + $0x160] sm:$0xff]
        %v479 = vld [vmem:[#allocation2 + $0x168] sm:$0xff]
        %v480 = vld [vmem:[#allocation2 + $0x170] sm:$0xff]
        %v481 = vld [vmem:[#allocation2 + $0x178] sm:$0xff]
        %v482 = vld [vmem:[#allocation2 + $0x180] sm:$0xff]
        %v483 = vld [vmem:[#allocation2 + $0x188] sm:$0xff]
        %v484 = vld [vmem:[#allocation2 + $0x190] sm:$0xff]
        %v485 = vld [vmem:[#allocation2 + $0x198] sm:$0xff]
        %v486 = vld [vmem:[#allocation2 + $0x1a0] sm:$0xff]
        %v487 = vld [vmem:[#allocation2 + $0x1a8] sm:$0xff]
        %v488 = vld [vmem:[#allocation2 + $0x1b0] sm:$0xff]
        %v489 = vld [vmem:[#allocation2 + $0x1b8] sm:$0xff]
        %v490 = vld [vmem:[#allocation2 + $0x1c0] sm:$0xff]
        %v491 = vld [vmem:[#allocation2 + $0x1c8] sm:$0xff]
        %v492 = vld [vmem:[#allocation2 + $0x1d0] sm:$0xff]
        %v493 = vld [vmem:[#allocation2 + $0x1d8] sm:$0xff]
        %v494 = vld [vmem:[#allocation2 + $0x1e0] sm:$0xff]
        %v495 = vld [vmem:[#allocation2 + $0x1e8] sm:$0xff]
        %v496 = vld [vmem:[#allocation2 + $0x1f0] sm:$0xff]
        %v497 = vld [vmem:[#allocation2 + $0x1f8] sm:$0xff]
        %v498 = vld [vmem:[#allocation2 + $0x200] sm:$0xff]
        %v499 = vld [vmem:[#allocation2 + $0x208] sm:$0xff]
        %v500 = vld [vmem:[#allocation2 + $0x210] sm:$0xff]
        %v501 = vld [vmem:[#allocation2 + $0x218] sm:$0xff]
        %v502 = vld [vmem:[#allocation2 + $0x220] sm:$0xff]
        %v503 = vld [vmem:[#allocation2 + $0x228] sm:$0xff]
        %v504 = vld [vmem:[#allocation2 + $0x230] sm:$0xff]
        %v505 = vld [vmem:[#allocation2 + $0x238] sm:$0xff]
        %v506 = vld [vmem:[#allocation2 + $0x240] sm:$0xff]
        %v507 = vld [vmem:[#allocation2 + $0x248] sm:$0xff]
        %v508 = vld [vmem:[#allocation2 + $0x250] sm:$0xff]
        %v509 = vld [vmem:[#allocation2 + $0x258] sm:$0xff]
        %v510 = vld [vmem:[#allocation2 + $0x260] sm:$0xff]
        %v511 = vld [vmem:[#allocation2 + $0x268] sm:$0xff]
        %v512 = vld [vmem:[#allocation2 + $0x270] sm:$0xff]
        %v513 = vld [vmem:[#allocation2 + $0x278] sm:$0xff]
        %v514 = vld [vmem:[#allocation2 + $0x280] sm:$0xff]
        %v515 = vld [vmem:[#allocation2 + $0x288] sm:$0xff]
        %v516 = vld [vmem:[#allocation2 + $0x290] sm:$0xff]
        %v517 = vld [vmem:[#allocation2 + $0x298] sm:$0xff]
        %v518 = vld [vmem:[#allocation2 + $0x2a0] sm:$0xff]
        %v519 = vld [vmem:[#allocation2 + $0x2a8] sm:$0xff]
        %v520 = vld [vmem:[#allocation2 + $0x2b0] sm:$0xff]
        %v521 = vld [vmem:[#allocation2 + $0x2b8] sm:$0xff]
        %v522 = vld [vmem:[#allocation2 + $0x2c0] sm:$0xff]
        %v523 = vld [vmem:[#allocation2 + $0x2c8] sm:$0xff]
        %v524 = vld [vmem:[#allocation2 + $0x2d0] sm:$0xff]
        %v525 = vld [vmem:[#allocation2 + $0x2d8] sm:$0xff]
        %v526 = vld [vmem:[#allocation2 + $0x2e0] sm:$0xff]
        %v527 = vld [vmem:[#allocation2 + $0x2e8] sm:$0xff]
        %v528 = vld [vmem:[#allocation2 + $0x2f0] sm:$0xff]
        %v529 = vld [vmem:[#allocation2 + $0x2f8] sm:$0xff]
        %v530 = vld [vmem:[#allocation2 + $0x300] sm:$0xff]
        %v531 = vld [vmem:[#allocation2 + $0x308] sm:$0xff]
        %v532 = vld [vmem:[#allocation2 + $0x310] sm:$0xff]
        %v533 = vld [vmem:[#allocation2 + $0x318] sm:$0xff]
        %v534 = vld [vmem:[#allocation2 + $0x320] sm:$0xff]
        %v535 = vld [vmem:[#allocation2 + $0x328] sm:$0xff]
        %v536 = vld [vmem:[#allocation2 + $0x330] sm:$0xff]
        %v537 = vld [vmem:[#allocation2 + $0x338] sm:$0xff]
        %v538 = vld [vmem:[#allocation2 + $0x340] sm:$0xff]
        %v539 = vld [vmem:[#allocation2 + $0x348] sm:$0xff]
        %v540 = vld [vmem:[#allocation2 + $0x350] sm:$0xff]
        %v541 = vld [vmem:[#allocation2 + $0x358] sm:$0xff]
        %v542 = vld [vmem:[#allocation2 + $0x360] sm:$0xff]
        %v543 = vld [vmem:[#allocation2 + $0x368] sm:$0xff]
        %v544 = vld [vmem:[#allocation2 + $0x370] sm:$0xff]
        %v545 = vld [vmem:[#allocation2 + $0x378] sm:$0xff]
        %v546 = vld [vmem:[#allocation2 + $0x380] sm:$0xff]
        %v547 = vld [vmem:[#allocation2 + $0x388] sm:$0xff]
        %v548 = vld [vmem:[#allocation2 + $0x390] sm:$0xff]
        %v549 = vld [vmem:[#allocation2 + $0x398] sm:$0xff]
        %v550 = vld [vmem:[#allocation2 + $0x3a0] sm:$0xff]
        %v551 = vld [vmem:[#allocation2 + $0x3a8] sm:$0xff]
        %v552 = vld [vmem:[#allocation2 + $0x3b0] sm:$0xff]
        %v553 = vld [vmem:[#allocation2 + $0x3b8] sm:$0xff]
        %v554 = vld [vmem:[#allocation2 + $0x3c0] sm:$0xff]
        %v555 = vld [vmem:[#allocation2 + $0x3c8] sm:$0xff]
        %v556 = vld [vmem:[#allocation2 + $0x3d0] sm:$0xff]
        %v557 = vld [vmem:[#allocation2 + $0x3d8] sm:$0xff]
        %v558 = vld [vmem:[#allocation2 + $0x3e0] sm:$0xff]
        %v559 = vld [vmem:[#allocation2 + $0x3e8] sm:$0xff]
        %v560 = vld [vmem:[#allocation2 + $0x3f0] sm:$0xff]
        %v561 = vld [vmem:[#allocation2 + $0x3f8] sm:$0xff]
        %562 = vmatprep.subr.mxu0 %v435
        %563 = vmatpush1.msra.mxu0 %v434
        %564 = vmatprep.subr.mxu0 %v443
        %565 = vmatpush1.msra.mxu0 %v442
        %566 = vmatprep.subr.mxu0 %v451
        %567 = vmatpush1.msra.mxu0 %v450
        %568 = vmatprep.subr.mxu0 %v459
        %569 = vmatpush1.msra.mxu0 %v458
        %570 = vmatprep.subr.mxu0 %v467
        %571 = vmatpush1.msra.mxu0 %v466
        %572 = vmatprep.subr.mxu0 %v475
        %573 = vmatpush1.msra.mxu0 %v474
        %574 = vmatprep.subr.mxu0 %v483
        %575 = vmatpush1.msra.mxu0 %v482
        %576 = vmatprep.subr.mxu0 %v491
        %577 = vmatpush1.msra.mxu0 %v490
        %578 = vmatprep.subr.mxu0 %v499
        %579 = vmatpush1.msra.mxu0 %v498
        %580 = vmatprep.subr.mxu0 %v507
        %581 = vmatpush1.msra.mxu0 %v506
        %582 = vmatprep.subr.mxu0 %v515
        %583 = vmatpush1.msra.mxu0 %v514
        %584 = vmatprep.subr.mxu0 %v523
        %585 = vmatpush1.msra.mxu0 %v522
        %586 = vmatprep.subr.mxu0 %v531
        %587 = vmatpush1.msra.mxu0 %v530
        %588 = vmatprep.subr.mxu0 %v539
        %589 = vmatpush1.msra.mxu0 %v538
        %590 = vmatprep.subr.mxu0 %v547
        %591 = vmatpush1.msra.mxu0 %v546
        %592 = vmatprep.subr.mxu0 %v555
        %593 = vmatpush1.msra.mxu0 %v554
        %594 = vmatprep.subr.mxu0 0.0
        %595 = vmatpush1.msra.mxu0 0.0
        %596 = vmatprep.subr.mxu0 0.0
        %597 = vmatpush1.msra.mxu0 0.0
        %598 = vmatprep.subr.mxu0 0.0
        %599 = vmatpush1.msra.mxu0 0.0
        %600 = vmatprep.subr.mxu0 0.0
        %601 = vmatpush1.msra.mxu0 0.0
        %602 = vmatprep.subr.mxu0 0.0
        %603 = vmatpush1.msra.mxu0 0.0
        %604 = vmatprep.subr.mxu0 0.0
        %605 = vmatpush1.msra.mxu0 0.0
        %606 = vmatprep.subr.mxu0 0.0
        %607 = vmatpush1.msra.mxu0 0.0
        %608 = vmatprep.subr.mxu0 0.0
        %609 = vmatpush1.msra.mxu0 0.0
        %610 = vmatprep.subr.mxu0 0.0
        %611 = vmatpush1.msra.mxu0 0.0
        %612 = vmatprep.subr.mxu0 0.0
        %613 = vmatpush1.msra.mxu0 0.0
        %614 = vmatprep.subr.mxu0 0.0
        %615 = vmatpush1.msra.mxu0 0.0
        %616 = vmatprep.subr.mxu0 0.0
        %617 = vmatpush1.msra.mxu0 0.0
        %618 = vmatprep.subr.mxu0 0.0
        %619 = vmatpush1.msra.mxu0 0.0
        %620 = vmatprep.subr.mxu0 0.0
        %621 = vmatpush1.msra.mxu0 0.0
        %622 = vmatprep.subr.mxu0 0.0
        %623 = vmatpush1.msra.mxu0 0.0
        %624 = vmatprep.subr.mxu0 0.0
        %625 = vmatpush1.msra.mxu0 0.0
        %626 = vmatprep.mubr.f32.mxu0 0.0
        %627 = vmatmul.mubr.f32.gmra.mrb[0].mxu0 %v430
        %v628 = vpop.f32.mrb[0].mxu0
        %v629 = vadd.f32 0.0, %v628
        %v630 = vpop.f32.mrb[0].mxu0
        %v631 = vadd.f32 0.0, %v630
        %632 = vmatprep.mubr.f32.mxu0 0.0
        %633 = vmatmul.mubr.f32.gmra.mrb[0].mxu0 %v431
        %v634 = vpop.f32.mrb[0].mxu0
        %v635 = vpop.f32.mrb[0].mxu0
        %636 = vdwg.mxu0
        %637 = vmatprep.subr.mxu0 %v437
        %638 = vmatpush1.msra.mxu0 %v436
        %639 = vmatprep.subr.mxu0 %v445
        %640 = vmatpush1.msra.mxu0 %v444
        %641 = vmatprep.subr.mxu0 %v453
        %642 = vmatpush1.msra.mxu0 %v452
        %643 = vmatprep.subr.mxu0 %v461
        %644 = vmatpush1.msra.mxu0 %v460
        %645 = vmatprep.subr.mxu0 %v469
        %646 = vmatpush1.msra.mxu0 %v468
        %647 = vmatprep.subr.mxu0 %v477
        %648 = vmatpush1.msra.mxu0 %v476
        %649 = vmatprep.subr.mxu0 %v485
        %650 = vmatpush1.msra.mxu0 %v484
        %651 = vmatprep.subr.mxu0 %v493
        %652 = vmatpush1.msra.mxu0 %v492
        %653 = vmatprep.subr.mxu0 %v501
        %654 = vmatpush1.msra.mxu0 %v500
        %655 = vmatprep.subr.mxu0 %v509
        %656 = vmatpush1.msra.mxu0 %v508
        %657 = vmatprep.subr.mxu0 %v517
        %658 = vmatpush1.msra.mxu0 %v516
        %659 = vmatprep.subr.mxu0 %v525
        %660 = vmatpush1.msra.mxu0 %v524
        %661 = vmatprep.subr.mxu0 %v533
        %662 = vmatpush1.msra.mxu0 %v532
        %663 = vmatprep.subr.mxu0 %v541
        %664 = vmatpush1.msra.mxu0 %v540
        %665 = vmatprep.subr.mxu0 %v549
        %666 = vmatpush1.msra.mxu0 %v548
        %667 = vmatprep.subr.mxu0 %v557
        %668 = vmatpush1.msra.mxu0 %v556
        %669 = vmatprep.subr.mxu0 0.0
        %670 = vmatpush1.msra.mxu0 0.0
        %671 = vmatprep.subr.mxu0 0.0
        %672 = vmatpush1.msra.mxu0 0.0
        %673 = vmatprep.subr.mxu0 0.0
        %674 = vmatpush1.msra.mxu0 0.0
        %675 = vmatprep.subr.mxu0 0.0
        %676 = vmatpush1.msra.mxu0 0.0
        %677 = vmatprep.subr.mxu0 0.0
        %678 = vmatpush1.msra.mxu0 0.0
        %679 = vmatprep.subr.mxu0 0.0
        %680 = vmatpush1.msra.mxu0 0.0
        %681 = vmatprep.subr.mxu0 0.0
        %682 = vmatpush1.msra.mxu0 0.0
        %683 = vmatprep.subr.mxu0 0.0
        %684 = vmatpush1.msra.mxu0 0.0
        %685 = vmatprep.subr.mxu0 0.0
        %686 = vmatpush1.msra.mxu0 0.0
        %687 = vmatprep.subr.mxu0 0.0
        %688 = vmatpush1.msra.mxu0 0.0
        %689 = vmatprep.subr.mxu0 0.0
        %690 = vmatpush1.msra.mxu0 0.0
        %691 = vmatprep.subr.mxu0 0.0
        %692 = vmatpush1.msra.mxu0 0.0
        %693 = vmatprep.subr.mxu0 0.0
        %694 = vmatpush1.msra.mxu0 0.0
        %695 = vmatprep.subr.mxu0 0.0
        %696 = vmatpush1.msra.mxu0 0.0
        %697 = vmatprep.subr.mxu0 0.0
        %698 = vmatpush1.msra.mxu0 0.0
        %699 = vmatprep.subr.mxu0 0.0
        %700 = vmatpush1.msra.mxu0 0.0
        %701 = vmatprep.mubr.f32.mxu0 0.0
        %702 = vmatmul.mubr.f32.gmra.mrb[0].mxu0 %v430
        %v703 = vpop.f32.mrb[0].mxu0
        %v704 = vadd.f32 0.0, %v703
        %v705 = vpop.f32.mrb[0].mxu0
        %v706 = vadd.f32 0.0, %v705
        %707 = vmatprep.mubr.f32.mxu0 0.0
        %708 = vmatmul.mubr.f32.gmra.mrb[0].mxu0 %v431
        %v709 = vpop.f32.mrb[0].mxu0
        %v710 = vpop.f32.mrb[0].mxu0
        %711 = vdwg.mxu0
        %712 = vmatprep.subr.mxu0 %v439
        %713 = vmatpush1.msra.mxu0 %v438
        %714 = vmatprep.subr.mxu0 %v447
        %715 = vmatpush1.msra.mxu0 %v446
        %716 = vmatprep.subr.mxu0 %v455
        %717 = vmatpush1.msra.mxu0 %v454
        %718 = vmatprep.subr.mxu0 %v463
        %719 = vmatpush1.msra.mxu0 %v462
        %720 = vmatprep.subr.mxu0 %v471
        %721 = vmatpush1.msra.mxu0 %v470
        %722 = vmatprep.subr.mxu0 %v479
        %723 = vmatpush1.msra.mxu0 %v478
        %724 = vmatprep.subr.mxu0 %v487
        %725 = vmatpush1.msra.mxu0 %v486
        %726 = vmatprep.subr.mxu0 %v495
        %727 = vmatpush1.msra.mxu0 %v494
        %728 = vmatprep.subr.mxu0 %v503
        %729 = vmatpush1.msra.mxu0 %v502
        %730 = vmatprep.subr.mxu0 %v511
        %731 = vmatpush1.msra.mxu0 %v510
        %732 = vmatprep.subr.mxu0 %v519
        %733 = vmatpush1.msra.mxu0 %v518
        %734 = vmatprep.subr.mxu0 %v527
        %735 = vmatpush1.msra.mxu0 %v526
        %736 = vmatprep.subr.mxu0 %v535
        %737 = vmatpush1.msra.mxu0 %v534
        %738 = vmatprep.subr.mxu0 %v543
        %739 = vmatpush1.msra.mxu0 %v542
        %740 = vmatprep.subr.mxu0 %v551
        %741 = vmatpush1.msra.mxu0 %v550
        %742 = vmatprep.subr.mxu0 %v559
        %743 = vmatpush1.msra.mxu0 %v558
        %744 = vmatprep.subr.mxu0 0.0
        %745 = vmatpush1.msra.mxu0 0.0
        %746 = vmatprep.subr.mxu0 0.0
        %747 = vmatpush1.msra.mxu0 0.0
        %748 = vmatprep.subr.mxu0 0.0
        %749 = vmatpush1.msra.mxu0 0.0
        %750 = vmatprep.subr.mxu0 0.0
        %751 = vmatpush1.msra.mxu0 0.0
        %752 = vmatprep.subr.mxu0 0.0
        %753 = vmatpush1.msra.mxu0 0.0
        %754 = vmatprep.subr.mxu0 0.0
        %755 = vmatpush1.msra.mxu0 0.0
        %756 = vmatprep.subr.mxu0 0.0
        %757 = vmatpush1.msra.mxu0 0.0
        %758 = vmatprep.subr.mxu0 0.0
        %759 = vmatpush1.msra.mxu0 0.0
        %760 = vmatprep.subr.mxu0 0.0
        %761 = vmatpush1.msra.mxu0 0.0
        %762 = vmatprep.subr.mxu0 0.0
        %763 = vmatpush1.msra.mxu0 0.0
        %764 = vmatprep.subr.mxu0 0.0
        %765 = vmatpush1.msra.mxu0 0.0
        %766 = vmatprep.subr.mxu0 0.0
        %767 = vmatpush1.msra.mxu0 0.0
        %768 = vmatprep.subr.mxu0 0.0
        %769 = vmatpush1.msra.mxu0 0.0
        %770 = vmatprep.subr.mxu0 0.0
        %771 = vmatpush1.msra.mxu0 0.0
        %772 = vmatprep.subr.mxu0 0.0
        %773 = vmatpush1.msra.mxu0 0.0
        %774 = vmatprep.subr.mxu0 0.0
        %775 = vmatpush1.msra.mxu0 0.0
        %776 = vmatprep.mubr.f32.mxu0 0.0
        %777 = vmatmul.mubr.f32.gmra.mrb[0].mxu0 %v430
        %v778 = vpop.f32.mrb[0].mxu0
        %v779 = vpop.f32.mrb[0].mxu0
        %780 = vmatprep.mubr.f32.mxu0 0.0
        %781 = vmatmul.mubr.f32.gmra.mrb[0].mxu0 %v431
        %v782 = vpop.f32.mrb[0].mxu0
        %v783 = vadd.f32 0.0, %v782
        %v784 = vpop.f32.mrb[0].mxu0
        %v785 = vadd.f32 0.0, %v784
        %786 = vdwg.mxu0
        %787 = vmatprep.subr.mxu0 %v441
        %788 = vmatpush1.msra.mxu0 %v440
        %789 = vmatprep.subr.mxu0 %v449
        %790 = vmatpush1.msra.mxu0 %v448
        %791 = vmatprep.subr.mxu0 %v457
        %792 = vmatpush1.msra.mxu0 %v456
        %793 = vmatprep.subr.mxu0 %v465
        %794 = vmatpush1.msra.mxu0 %v464
        %795 = vmatprep.subr.mxu0 %v473
        %796 = vmatpush1.msra.mxu0 %v472
        %797 = vmatprep.subr.mxu0 %v481
        %798 = vmatpush1.msra.mxu0 %v480
        %799 = vmatprep.subr.mxu0 %v489
        %800 = vmatpush1.msra.mxu0 %v488
        %801 = vmatprep.subr.mxu0 %v497
        %802 = vmatpush1.msra.mxu0 %v496
        %803 = vmatprep.subr.mxu0 %v505
        %804 = vmatpush1.msra.mxu0 %v504
        %805 = vmatprep.subr.mxu0 %v513
        %806 = vmatpush1.msra.mxu0 %v512
        %807 = vmatprep.subr.mxu0 %v521
        %808 = vmatpush1.msra.mxu0 %v520
        %809 = vmatprep.subr.mxu0 %v529
        %810 = vmatpush1.msra.mxu0 %v528
        %811 = vmatprep.subr.mxu0 %v537
        %812 = vmatpush1.msra.mxu0 %v536
        %813 = vmatprep.subr.mxu0 %v545
        %814 = vmatpush1.msra.mxu0 %v544
        %815 = vmatprep.subr.mxu0 %v553
        %816 = vmatpush1.msra.mxu0 %v552
        %817 = vmatprep.subr.mxu0 %v561
        %818 = vmatpush1.msra.mxu0 %v560
        %819 = vmatprep.subr.mxu0 0.0
        %820 = vmatpush1.msra.mxu0 0.0
        %821 = vmatprep.subr.mxu0 0.0
        %822 = vmatpush1.msra.mxu0 0.0
        %823 = vmatprep.subr.mxu0 0.0
        %824 = vmatpush1.msra.mxu0 0.0
        %825 = vmatprep.subr.mxu0 0.0
        %826 = vmatpush1.msra.mxu0 0.0
        %827 = vmatprep.subr.mxu0 0.0
        %828 = vmatpush1.msra.mxu0 0.0
        %829 = vmatprep.subr.mxu0 0.0
        %830 = vmatpush1.msra.mxu0 0.0
        %831 = vmatprep.subr.mxu0 0.0
        %832 = vmatpush1.msra.mxu0 0.0
        %833 = vmatprep.subr.mxu0 0.0
        %834 = vmatpush1.msra.mxu0 0.0
        %835 = vmatprep.subr.mxu0 0.0
        %836 = vmatpush1.msra.mxu0 0.0
        %837 = vmatprep.subr.mxu0 0.0
        %838 = vmatpush1.msra.mxu0 0.0
        %839 = vmatprep.subr.mxu0 0.0
        %840 = vmatpush1.msra.mxu0 0.0
        %841 = vmatprep.subr.mxu0 0.0
        %842 = vmatpush1.msra.mxu0 0.0
        %843 = vmatprep.subr.mxu0 0.0
        %844 = vmatpush1.msra.mxu0 0.0
        %845 = vmatprep.subr.mxu0 0.0
        %846 = vmatpush1.msra.mxu0 0.0
        %847 = vmatprep.subr.mxu0 0.0
        %848 = vmatpush1.msra.mxu0 0.0
        %849 = vmatprep.subr.mxu0 0.0
        %850 = vmatpush1.msra.mxu0 0.0
        %851 = vmatprep.mubr.f32.mxu0 0.0
        %852 = vmatmul.mubr.f32.gmra.mrb[0].mxu0 %v430
        %v853 = vpop.f32.mrb[0].mxu0
        %v854 = vpop.f32.mrb[0].mxu0
        %855 = vmatprep.mubr.f32.mxu0 0.0
        %856 = vmatmul.mubr.f32.gmra.mrb[0].mxu0 %v431
        %v857 = vpop.f32.mrb[0].mxu0
        %v858 = vadd.f32 0.0, %v857
        %v859 = vpop.f32.mrb[0].mxu0
        %v860 = vadd.f32 0.0, %v859
        %861 = vdwg.mxu0
        %v862 = vld [vmem:[%s336] sm:$0xff]
        %v863 = vld [vmem:[%s336 + $0x8] sm:$0xff]
        %v864 = vld [vmem:[%s336 + $0x10] sm:$0xff]
        %v865 = vld [vmem:[%s336 + $0x18] sm:$0xff]
        %v866 = vadd.f32 %v862, %v629
        %v867 = vadd.f32 %v863, %v631
        %v868 = vadd.f32 %v864, %v704
        %v869 = vadd.f32 %v865, %v706
        %s870 = scalar_lea.vmem %s345, 96 [#allocation9]
        %v871 = vld [vmem:[%s870] sm:$0xff]
        %v872 = vld [vmem:[%s870 + $0x8] sm:$0xff]
        %v873 = vld [vmem:[%s870 + $0x10] sm:$0xff]
        %v874 = vld [vmem:[%s870 + $0x18] sm:$0xff]
        %v875 = vadd.f32 %v871, %v783
        %v876 = vadd.f32 %v872, %v785
        %v877 = vadd.f32 %v873, %v858
        %v878 = vadd.f32 %v874, %v860
        %v879 = vxor.u32 %v866, 2147483648
        %v880 = vmul.f32 %v879, 1.442695
        %v881 = vpow.pop %v880
        %v882 = vadd.f32 %v881, 1.0
        %v883 = vrcp.pop %v882
        %v884 = vmul.f32 1.0, %v883
        %v885 = vxor.u32 %v867, 2147483648
        %v886 = vmul.f32 %v885, 1.442695
        %v887 = vpow.pop %v886
        %v888 = vadd.f32 %v887, 1.0
        %v889 = vrcp.pop %v888
        %v890 = vmul.f32 1.0, %v889
        %v891 = vtanh.pop %v868
        %v892 = vxor.u32 %v869, 2147483648
        %v893 = vmul.f32 %v892, 1.442695
        %v894 = vpow.pop %v893
        %v895 = vadd.f32 %v894, 1.0
        %v896 = vrcp.pop %v895
        %v897 = vmul.f32 1.0, %v896
        %v898 = vmul.f32 %v890, %v432
        %v899 = vmul.f32 %v884, %v891
        %v900 = vadd.f32 %v898, %v899
        %v901 = vtanh.pop %v900
        %v902 = vmul.f32 %v897, %v901
        %v903 = vxor.u32 %v875, 2147483648
        %v904 = vmul.f32 %v903, 1.442695
        %v905 = vpow.pop %v904
        %v906 = vadd.f32 %v905, 1.0
        %v907 = vrcp.pop %v906
        %v908 = vmul.f32 1.0, %v907
        %v909 = vxor.u32 %v876, 2147483648
        %v910 = vmul.f32 %v909, 1.442695
        %v911 = vpow.pop %v910
        %v912 = vadd.f32 %v911, 1.0
        %v913 = vrcp.pop %v912
        %v914 = vmul.f32 1.0, %v913
        %v915 = vtanh.pop %v877
        %v916 = vxor.u32 %v878, 2147483648
        %v917 = vmul.f32 %v916, 1.442695
        %v918 = vpow.pop %v917
        %v919 = vadd.f32 %v918, 1.0
        %v920 = vrcp.pop %v919
        %v921 = vmul.f32 1.0, %v920
        %v922 = vmul.f32 %v914, %v433
        %v923 = vmul.f32 %v908, %v915
        %v924 = vadd.f32 %v922, %v923
        %v925 = vtanh.pop %v924
        %v926 = vmul.f32 %v921, %v925
        %v927 = vstv %s426
        %vm928 = vcmp.lt.s32.totalorder %v927, %v425
        %v929 = vstv %s429
        %vm930 = vcmp.lt.s32.totalorder %v929, %v425
        %v931 = vsel %vm928, 1, 0
        %932 = vset.pattern.permute.xlu0 0
        %933 = vperm.xlu0 %932, %v931
        %v934 = vpop.permute.xlu0 %933
        %vm935 = vcmp.eq.s32.totalorder %v934, 1
        %v936 = vsel %vm935, %v902, %v430
        %937 = vst [vmem:[#allocation4] sm:$0xff] %v936
        %v938 = vsel %vm935, %v900, %v432
        %939 = vst [vmem:[#allocation5] sm:$0xff] %v938
        %v940 = vsel %vm930, 1, 0
        %941 = vset.pattern.permute.xlu0 0
        %942 = vperm.xlu0 %941, %v940
        %v943 = vpop.permute.xlu0 %942
        %vm944 = vcmp.eq.s32.totalorder %v943, 1
        %v945 = vsel %vm944, %v926, %v431
        %946 = vst [vmem:[#allocation4 + $0x8] sm:$0xff] %v945
        %v947 = vsel %vm944, %v924, %v433
        %948 = vst [vmem:[#allocation5 + $0x8] sm:$0xff] %v947
        %v949 = vsel %vm935, %v902, 0.0
        %950 = vst [vmem:[%s380] sm:$0xff] %v949
        %v951 = vsel %vm944, %v926, 0.0
        %s952 = scalar_lea.vmem %s387, 24 [#allocation13]
        %953 = vst [vmem:[%s952] sm:$0xff] %v951
        %s954 = sadd.s32 %s426, 1
        %s955 = sadd.s32 %s428, 2
        %v956 = vld [vmem:[#allocation4] sm:$0xff]
        %v957 = vld [vmem:[#allocation4 + $0x8] sm:$0xff]
        %v958 = vld [vmem:[#allocation5] sm:$0xff]
        %v959 = vld [vmem:[#allocation5 + $0x8] sm:$0xff]
        %v960 = vld [vmem:[#allocation2] sm:$0xff]
        %v961 = vld [vmem:[#allocation2 + $0x8] sm:$0xff]
        %v962 = vld [vmem:[#allocation2 + $0x10] sm:$0xff]
        %v963 = vld [vmem:[#allocation2 + $0x18] sm:$0xff]
        %v964 = vld [vmem:[#allocation2 + $0x20] sm:$0xff]
        %v965 = vld [vmem:[#allocation2 + $0x28] sm:$0xff]
        %v966 = vld [vmem:[#allocation2 + $0x30] sm:$0xff]
        %v967 = vld [vmem:[#allocation2 + $0x38] sm:$0xff]
        %v968 = vld [vmem:[#allocation2 + $0x40] sm:$0xff]
        %v969 = vld [vmem:[#allocation2 + $0x48] sm:$0xff]
        %v970 = vld [vmem:[#allocation2 + $0x50] sm:$0xff]
        %v971 = vld [vmem:[#allocation2 + $0x58] sm:$0xff]
        %v972 = vld [vmem:[#allocation2 + $0x60] sm:$0xff]
        %v973 = vld [vmem:[#allocation2 + $0x68] sm:$0xff]
        %v974 = vld [vmem:[#allocation2 + $0x70] sm:$0xff]
        %v975 = vld [vmem:[#allocation2 + $0x78] sm:$0xff]
        %v976 = vld [vmem:[#allocation2 + $0x80] sm:$0xff]
        %v977 = vld [vmem:[#allocation2 + $0x88] sm:$0xff]
        %v978 = vld [vmem:[#allocation2 + $0x90] sm:$0xff]
        %v979 = vld [vmem:[#allocation2 + $0x98] sm:$0xff]
        %v980 = vld [vmem:[#allocation2 + $0xa0] sm:$0xff]
        %v981 = vld [vmem:[#allocation2 + $0xa8] sm:$0xff]
        %v982 = vld [vmem:[#allocation2 + $0xb0] sm:$0xff]
        %v983 = vld [vmem:[#allocation2 + $0xb8] sm:$0xff]
        %v984 = vld [vmem:[#allocation2 + $0xc0] sm:$0xff]
        %v985 = vld [vmem:[#allocation2 + $0xc8] sm:$0xff]
        %v986 = vld [vmem:[#allocation2 + $0xd0] sm:$0xff]
        %v987 = vld [vmem:[#allocation2 + $0xd8] sm:$0xff]
        %v988 = vld [vmem:[#allocation2 + $0xe0] sm:$0xff]
        %v989 = vld [vmem:[#allocation2 + $0xe8] sm:$0xff]
        %v990 = vld [vmem:[#allocation2 + $0xf0] sm:$0xff]
        %v991 = vld [vmem:[#allocation2 + $0xf8] sm:$0xff]
        %v992 = vld [vmem:[#allocation2 + $0x100] sm:$0xff]
        %v993 = vld [vmem:[#allocation2 + $0x108] sm:$0xff]
        %v994 = vld [vmem:[#allocation2 + $0x110] sm:$0xff]
        %v995 = vld [vmem:[#allocation2 + $0x118] sm:$0xff]
        %v996 = vld [vmem:[#allocation2 + $0x120] sm:$0xff]
        %v997 = vld [vmem:[#allocation2 + $0x128] sm:$0xff]
        %v998 = vld [vmem:[#allocation2 + $0x130] sm:$0xff]
        %v999 = vld [vmem:[#allocation2 + $0x138] sm:$0xff]
        %v1000 = vld [vmem:[#allocation2 + $0x140] sm:$0xff]
        %v1001 = vld [vmem:[#allocation2 + $0x148] sm:$0xff]
        %v1002 = vld [vmem:[#allocation2 + $0x150] sm:$0xff]
        %v1003 = vld [vmem:[#allocation2 + $0x158] sm:$0xff]
        %v1004 = vld [vmem:[#allocation2 + $0x160] sm:$0xff]
        %v1005 = vld [vmem:[#allocation2 + $0x168] sm:$0xff]
        %v1006 = vld [vmem:[#allocation2 + $0x170] sm:$0xff]
        %v1007 = vld [vmem:[#allocation2 + $0x178] sm:$0xff]
        %v1008 = vld [vmem:[#allocation2 + $0x180] sm:$0xff]
        %v1009 = vld [vmem:[#allocation2 + $0x188] sm:$0xff]
        %v1010 = vld [vmem:[#allocation2 + $0x190] sm:$0xff]
        %v1011 = vld [vmem:[#allocation2 + $0x198] sm:$0xff]
        %v1012 = vld [vmem:[#allocation2 + $0x1a0] sm:$0xff]
        %v1013 = vld [vmem:[#allocation2 + $0x1a8] sm:$0xff]
        %v1014 = vld [vmem:[#allocation2 + $0x1b0] sm:$0xff]
        %v1015 = vld [vmem:[#allocation2 + $0x1b8] sm:$0xff]
        %v1016 = vld [vmem:[#allocation2 + $0x1c0] sm:$0xff]
        %v1017 = vld [vmem:[#allocation2 + $0x1c8] sm:$0xff]
        %v1018 = vld [vmem:[#allocation2 + $0x1d0] sm:$0xff]
        %v1019 = vld [vmem:[#allocation2 + $0x1d8] sm:$0xff]
        %v1020 = vld [vmem:[#allocation2 + $0x1e0] sm:$0xff]
        %v1021 = vld [vmem:[#allocation2 + $0x1e8] sm:$0xff]
        %v1022 = vld [vmem:[#allocation2 + $0x1f0] sm:$0xff]
        %v1023 = vld [vmem:[#allocation2 + $0x1f8] sm:$0xff]
        %v1024 = vld [vmem:[#allocation2 + $0x200] sm:$0xff]
        %v1025 = vld [vmem:[#allocation2 + $0x208] sm:$0xff]
        %v1026 = vld [vmem:[#allocation2 + $0x210] sm:$0xff]
        %v1027 = vld [vmem:[#allocation2 + $0x218] sm:$0xff]
        %v1028 = vld [vmem:[#allocation2 + $0x220] sm:$0xff]
        %v1029 = vld [vmem:[#allocation2 + $0x228] sm:$0xff]
        %v1030 = vld [vmem:[#allocation2 + $0x230] sm:$0xff]
        %v1031 = vld [vmem:[#allocation2 + $0x238] sm:$0xff]
        %v1032 = vld [vmem:[#allocation2 + $0x240] sm:$0xff]
        %v1033 = vld [vmem:[#allocation2 + $0x248] sm:$0xff]
        %v1034 = vld [vmem:[#allocation2 + $0x250] sm:$0xff]
        %v1035 = vld [vmem:[#allocation2 + $0x258] sm:$0xff]
        %v1036 = vld [vmem:[#allocation2 + $0x260] sm:$0xff]
        %v1037 = vld [vmem:[#allocation2 + $0x268] sm:$0xff]
        %v1038 = vld [vmem:[#allocation2 + $0x270] sm:$0xff]
        %v1039 = vld [vmem:[#allocation2 + $0x278] sm:$0xff]
        %v1040 = vld [vmem:[#allocation2 + $0x280] sm:$0xff]
        %v1041 = vld [vmem:[#allocation2 + $0x288] sm:$0xff]
        %v1042 = vld [vmem:[#allocation2 + $0x290] sm:$0xff]
        %v1043 = vld [vmem:[#allocation2 + $0x298] sm:$0xff]
        %v1044 = vld [vmem:[#allocation2 + $0x2a0] sm:$0xff]
        %v1045 = vld [vmem:[#allocation2 + $0x2a8] sm:$0xff]
        %v1046 = vld [vmem:[#allocation2 + $0x2b0] sm:$0xff]
        %v1047 = vld [vmem:[#allocation2 + $0x2b8] sm:$0xff]
        %v1048 = vld [vmem:[#allocation2 + $0x2c0] sm:$0xff]
        %v1049 = vld [vmem:[#allocation2 + $0x2c8] sm:$0xff]
        %v1050 = vld [vmem:[#allocation2 + $0x2d0] sm:$0xff]
        %v1051 = vld [vmem:[#allocation2 + $0x2d8] sm:$0xff]
        %v1052 = vld [vmem:[#allocation2 + $0x2e0] sm:$0xff]
        %v1053 = vld [vmem:[#allocation2 + $0x2e8] sm:$0xff]
        %v1054 = vld [vmem:[#allocation2 + $0x2f0] sm:$0xff]
        %v1055 = vld [vmem:[#allocation2 + $0x2f8] sm:$0xff]
        %v1056 = vld [vmem:[#allocation2 + $0x300] sm:$0xff]
        %v1057 = vld [vmem:[#allocation2 + $0x308] sm:$0xff]
        %v1058 = vld [vmem:[#allocation2 + $0x310] sm:$0xff]
        %v1059 = vld [vmem:[#allocation2 + $0x318] sm:$0xff]
        %v1060 = vld [vmem:[#allocation2 + $0x320] sm:$0xff]
        %v1061 = vld [vmem:[#allocation2 + $0x328] sm:$0xff]
        %v1062 = vld [vmem:[#allocation2 + $0x330] sm:$0xff]
        %v1063 = vld [vmem:[#allocation2 + $0x338] sm:$0xff]
        %v1064 = vld [vmem:[#allocation2 + $0x340] sm:$0xff]
        %v1065 = vld [vmem:[#allocation2 + $0x348] sm:$0xff]
        %v1066 = vld [vmem:[#allocation2 + $0x350] sm:$0xff]
        %v1067 = vld [vmem:[#allocation2 + $0x358] sm:$0xff]
        %v1068 = vld [vmem:[#allocation2 + $0x360] sm:$0xff]
        %v1069 = vld [vmem:[#allocation2 + $0x368] sm:$0xff]
        %v1070 = vld [vmem:[#allocation2 + $0x370] sm:$0xff]
        %v1071 = vld [vmem:[#allocation2 + $0x378] sm:$0xff]
        %v1072 = vld [vmem:[#allocation2 + $0x380] sm:$0xff]
        %v1073 = vld [vmem:[#allocation2 + $0x388] sm:$0xff]
        %v1074 = vld [vmem:[#allocation2 + $0x390] sm:$0xff]
        %v1075 = vld [vmem:[#allocation2 + $0x398] sm:$0xff]
        %v1076 = vld [vmem:[#allocation2 + $0x3a0] sm:$0xff]
        %v1077 = vld [vmem:[#allocation2 + $0x3a8] sm:$0xff]
        %v1078 = vld [vmem:[#allocation2 + $0x3b0] sm:$0xff]
        %v1079 = vld [vmem:[#allocation2 + $0x3b8] sm:$0xff]
        %v1080 = vld [vmem:[#allocation2 + $0x3c0] sm:$0xff]
        %v1081 = vld [vmem:[#allocation2 + $0x3c8] sm:$0xff]
        %v1082 = vld [vmem:[#allocation2 + $0x3d0] sm:$0xff]
        %v1083 = vld [vmem:[#allocation2 + $0x3d8] sm:$0xff]
        %v1084 = vld [vmem:[#allocation2 + $0x3e0] sm:$0xff]
        %v1085 = vld [vmem:[#allocation2 + $0x3e8] sm:$0xff]
        %v1086 = vld [vmem:[#allocation2 + $0x3f0] sm:$0xff]
        %v1087 = vld [vmem:[#allocation2 + $0x3f8] sm:$0xff]
        %1088 = vmatprep.subr.mxu0 %v961
        %1089 = vmatpush1.msra.mxu0 %v960
        %1090 = vmatprep.subr.mxu0 %v969
        %1091 = vmatpush1.msra.mxu0 %v968
        %1092 = vmatprep.subr.mxu0 %v977
        %1093 = vmatpush1.msra.mxu0 %v976
        %1094 = vmatprep.subr.mxu0 %v985
        %1095 = vmatpush1.msra.mxu0 %v984
        %1096 = vmatprep.subr.mxu0 %v993
        %1097 = vmatpush1.msra.mxu0 %v992
        %1098 = vmatprep.subr.mxu0 %v1001
        %1099 = vmatpush1.msra.mxu0 %v1000
        %1100 = vmatprep.subr.mxu0 %v1009
        %1101 = vmatpush1.msra.mxu0 %v1008
        %1102 = vmatprep.subr.mxu0 %v1017
        %1103 = vmatpush1.msra.mxu0 %v1016
        %1104 = vmatprep.subr.mxu0 %v1025
        %1105 = vmatpush1.msra.mxu0 %v1024
        %1106 = vmatprep.subr.mxu0 %v1033
        %1107 = vmatpush1.msra.mxu0 %v1032
        %1108 = vmatprep.subr.mxu0 %v1041
        %1109 = vmatpush1.msra.mxu0 %v1040
        %1110 = vmatprep.subr.mxu0 %v1049
        %1111 = vmatpush1.msra.mxu0 %v1048
        %1112 = vmatprep.subr.mxu0 %v1057
        %1113 = vmatpush1.msra.mxu0 %v1056
        %1114 = vmatprep.subr.mxu0 %v1065
        %1115 = vmatpush1.msra.mxu0 %v1064
        %1116 = vmatprep.subr.mxu0 %v1073
        %1117 = vmatpush1.msra.mxu0 %v1072
        %1118 = vmatprep.subr.mxu0 %v1081
        %1119 = vmatpush1.msra.mxu0 %v1080
        %1120 = vmatprep.subr.mxu0 0.0
        %1121 = vmatpush1.msra.mxu0 0.0
        %1122 = vmatprep.subr.mxu0 0.0
        %1123 = vmatpush1.msra.mxu0 0.0
        %1124 = vmatprep.subr.mxu0 0.0
        %1125 = vmatpush1.msra.mxu0 0.0
        %1126 = vmatprep.subr.mxu0 0.0
        %1127 = vmatpush1.msra.mxu0 0.0
        %1128 = vmatprep.subr.mxu0 0.0
        %1129 = vmatpush1.msra.mxu0 0.0
        %1130 = vmatprep.subr.mxu0 0.0
        %1131 = vmatpush1.msra.mxu0 0.0
        %1132 = vmatprep.subr.mxu0 0.0
        %1133 = vmatpush1.msra.mxu0 0.0
        %1134 = vmatprep.subr.mxu0 0.0
        %1135 = vmatpush1.msra.mxu0 0.0
        %1136 = vmatprep.subr.mxu0 0.0
        %1137 = vmatpush1.msra.mxu0 0.0
        %1138 = vmatprep.subr.mxu0 0.0
        %1139 = vmatpush1.msra.mxu0 0.0
        %1140 = vmatprep.subr.mxu0 0.0
        %1141 = vmatpush1.msra.mxu0 0.0
        %1142 = vmatprep.subr.mxu0 0.0
        %1143 = vmatpush1.msra.mxu0 0.0
        %1144 = vmatprep.subr.mxu0 0.0
        %1145 = vmatpush1.msra.mxu0 0.0
        %1146 = vmatprep.subr.mxu0 0.0
        %1147 = vmatpush1.msra.mxu0 0.0
        %1148 = vmatprep.subr.mxu0 0.0
        %1149 = vmatpush1.msra.mxu0 0.0
        %1150 = vmatprep.subr.mxu0 0.0
        %1151 = vmatpush1.msra.mxu0 0.0
        %1152 = vmatprep.mubr.f32.mxu0 0.0
        %1153 = vmatmul.mubr.f32.gmra.mrb[0].mxu0 %v956
        %v1154 = vpop.f32.mrb[0].mxu0
        %v1155 = vadd.f32 0.0, %v1154
        %v1156 = vpop.f32.mrb[0].mxu0
        %v1157 = vadd.f32 0.0, %v1156
        %1158 = vmatprep.mubr.f32.mxu0 0.0
        %1159 = vmatmul.mubr.f32.gmra.mrb[0].mxu0 %v957
        %v1160 = vpop.f32.mrb[0].mxu0
        %v1161 = vpop.f32.mrb[0].mxu0
        %1162 = vdwg.mxu0
        %1163 = vmatprep.subr.mxu0 %v963
        %1164 = vmatpush1.msra.mxu0 %v962
        %1165 = vmatprep.subr.mxu0 %v971
        %1166 = vmatpush1.msra.mxu0 %v970
        %1167 = vmatprep.subr.mxu0 %v979
        %1168 = vmatpush1.msra.mxu0 %v978
        %1169 = vmatprep.subr.mxu0 %v987
        %1170 = vmatpush1.msra.mxu0 %v986
        %1171 = vmatprep.subr.mxu0 %v995
        %1172 = vmatpush1.msra.mxu0 %v994
        %1173 = vmatprep.subr.mxu0 %v1003
        %1174 = vmatpush1.msra.mxu0 %v1002
        %1175 = vmatprep.subr.mxu0 %v1011
        %1176 = vmatpush1.msra.mxu0 %v1010
        %1177 = vmatprep.subr.mxu0 %v1019
        %1178 = vmatpush1.msra.mxu0 %v1018
        %1179 = vmatprep.subr.mxu0 %v1027
        %1180 = vmatpush1.msra.mxu0 %v1026
        %1181 = vmatprep.subr.mxu0 %v1035
        %1182 = vmatpush1.msra.mxu0 %v1034
        %1183 = vmatprep.subr.mxu0 %v1043
        %1184 = vmatpush1.msra.mxu0 %v1042
        %1185 = vmatprep.subr.mxu0 %v1051
        %1186 = vmatpush1.msra.mxu0 %v1050
        %1187 = vmatprep.subr.mxu0 %v1059
        %1188 = vmatpush1.msra.mxu0 %v1058
        %1189 = vmatprep.subr.mxu0 %v1067
        %1190 = vmatpush1.msra.mxu0 %v1066
        %1191 = vmatprep.subr.mxu0 %v1075
        %1192 = vmatpush1.msra.mxu0 %v1074
        %1193 = vmatprep.subr.mxu0 %v1083
        %1194 = vmatpush1.msra.mxu0 %v1082
        %1195 = vmatprep.subr.mxu0 0.0
        %1196 = vmatpush1.msra.mxu0 0.0
        %1197 = vmatprep.subr.mxu0 0.0
        %1198 = vmatpush1.msra.mxu0 0.0
        %1199 = vmatprep.subr.mxu0 0.0
        %1200 = vmatpush1.msra.mxu0 0.0
        %1201 = vmatprep.subr.mxu0 0.0
        %1202 = vmatpush1.msra.mxu0 0.0
        %1203 = vmatprep.subr.mxu0 0.0
        %1204 = vmatpush1.msra.mxu0 0.0
        %1205 = vmatprep.subr.mxu0 0.0
        %1206 = vmatpush1.msra.mxu0 0.0
        %1207 = vmatprep.subr.mxu0 0.0
        %1208 = vmatpush1.msra.mxu0 0.0
        %1209 = vmatprep.subr.mxu0 0.0
        %1210 = vmatpush1.msra.mxu0 0.0
        %1211 = vmatprep.subr.mxu0 0.0
        %1212 = vmatpush1.msra.mxu0 0.0
        %1213 = vmatprep.subr.mxu0 0.0
        %1214 = vmatpush1.msra.mxu0 0.0
        %1215 = vmatprep.subr.mxu0 0.0
        %1216 = vmatpush1.msra.mxu0 0.0
        %1217 = vmatprep.subr.mxu0 0.0
        %1218 = vmatpush1.msra.mxu0 0.0
        %1219 = vmatprep.subr.mxu0 0.0
        %1220 = vmatpush1.msra.mxu0 0.0
        %1221 = vmatprep.subr.mxu0 0.0
        %1222 = vmatpush1.msra.mxu0 0.0
        %1223 = vmatprep.subr.mxu0 0.0
        %1224 = vmatpush1.msra.mxu0 0.0
        %1225 = vmatprep.subr.mxu0 0.0
        %1226 = vmatpush1.msra.mxu0 0.0
        %1227 = vmatprep.mubr.f32.mxu0 0.0
        %1228 = vmatmul.mubr.f32.gmra.mrb[0].mxu0 %v956
        %v1229 = vpop.f32.mrb[0].mxu0
        %v1230 = vadd.f32 0.0, %v1229
        %v1231 = vpop.f32.mrb[0].mxu0
        %v1232 = vadd.f32 0.0, %v1231
        %1233 = vmatprep.mubr.f32.mxu0 0.0
        %1234 = vmatmul.mubr.f32.gmra.mrb[0].mxu0 %v957
        %v1235 = vpop.f32.mrb[0].mxu0
        %v1236 = vpop.f32.mrb[0].mxu0
        %1237 = vdwg.mxu0
        %1238 = vmatprep.subr.mxu0 %v965
        %1239 = vmatpush1.msra.mxu0 %v964
        %1240 = vmatprep.subr.mxu0 %v973
        %1241 = vmatpush1.msra.mxu0 %v972
        %1242 = vmatprep.subr.mxu0 %v981
        %1243 = vmatpush1.msra.mxu0 %v980
        %1244 = vmatprep.subr.mxu0 %v989
        %1245 = vmatpush1.msra.mxu0 %v988
        %1246 = vmatprep.subr.mxu0 %v997
        %1247 = vmatpush1.msra.mxu0 %v996
        %1248 = vmatprep.subr.mxu0 %v1005
        %1249 = vmatpush1.msra.mxu0 %v1004
        %1250 = vmatprep.subr.mxu0 %v1013
        %1251 = vmatpush1.msra.mxu0 %v1012
        %1252 = vmatprep.subr.mxu0 %v1021
        %1253 = vmatpush1.msra.mxu0 %v1020
        %1254 = vmatprep.subr.mxu0 %v1029
        %1255 = vmatpush1.msra.mxu0 %v1028
        %1256 = vmatprep.subr.mxu0 %v1037
        %1257 = vmatpush1.msra.mxu0 %v1036
        %1258 = vmatprep.subr.mxu0 %v1045
        %1259 = vmatpush1.msra.mxu0 %v1044
        %1260 = vmatprep.subr.mxu0 %v1053
        %1261 = vmatpush1.msra.mxu0 %v1052
        %1262 = vmatprep.subr.mxu0 %v1061
        %1263 = vmatpush1.msra.mxu0 %v1060
        %1264 = vmatprep.subr.mxu0 %v1069
        %1265 = vmatpush1.msra.mxu0 %v1068
        %1266 = vmatprep.subr.mxu0 %v1077
        %1267 = vmatpush1.msra.mxu0 %v1076
        %1268 = vmatprep.subr.mxu0 %v1085
        %1269 = vmatpush1.msra.mxu0 %v1084
        %1270 = vmatprep.subr.mxu0 0.0
        %1271 = vmatpush1.msra.mxu0 0.0
        %1272 = vmatprep.subr.mxu0 0.0
        %1273 = vmatpush1.msra.mxu0 0.0
        %1274 = vmatprep.subr.mxu0 0.0
        %1275 = vmatpush1.msra.mxu0 0.0
        %1276 = vmatprep.subr.mxu0 0.0
        %1277 = vmatpush1.msra.mxu0 0.0
        %1278 = vmatprep.subr.mxu0 0.0
        %1279 = vmatpush1.msra.mxu0 0.0
        %1280 = vmatprep.subr.mxu0 0.0
        %1281 = vmatpush1.msra.mxu0 0.0
        %1282 = vmatprep.subr.mxu0 0.0
        %1283 = vmatpush1.msra.mxu0 0.0
        %1284 = vmatprep.subr.mxu0 0.0
        %1285 = vmatpush1.msra.mxu0 0.0
        %1286 = vmatprep.subr.mxu0 0.0
        %1287 = vmatpush1.msra.mxu0 0.0
        %1288 = vmatprep.subr.mxu0 0.0
        %1289 = vmatpush1.msra.mxu0 0.0
        %1290 = vmatprep.subr.mxu0 0.0
        %1291 = vmatpush1.msra.mxu0 0.0
        %1292 = vmatprep.subr.mxu0 0.0
        %1293 = vmatpush1.msra.mxu0 0.0
        %1294 = vmatprep.subr.mxu0 0.0
        %1295 = vmatpush1.msra.mxu0 0.0
        %1296 = vmatprep.subr.mxu0 0.0
        %1297 = vmatpush1.msra.mxu0 0.0
        %1298 = vmatprep.subr.mxu0 0.0
        %1299 = vmatpush1.msra.mxu0 0.0
        %1300 = vmatprep.subr.mxu0 0.0
        %1301 = vmatpush1.msra.mxu0 0.0
        %1302 = vmatprep.mubr.f32.mxu0 0.0
        %1303 = vmatmul.mubr.f32.gmra.mrb[0].mxu0 %v956
        %v1304 = vpop.f32.mrb[0].mxu0
        %v1305 = vpop.f32.mrb[0].mxu0
        %1306 = vmatprep.mubr.f32.mxu0 0.0
        %1307 = vmatmul.mubr.f32.gmra.mrb[0].mxu0 %v957
        %v1308 = vpop.f32.mrb[0].mxu0
        %v1309 = vadd.f32 0.0, %v1308
        %v1310 = vpop.f32.mrb[0].mxu0
        %v1311 = vadd.f32 0.0, %v1310
        %1312 = vdwg.mxu0
        %1313 = vmatprep.subr.mxu0 %v967
        %1314 = vmatpush1.msra.mxu0 %v966
        %1315 = vmatprep.subr.mxu0 %v975
        %1316 = vmatpush1.msra.mxu0 %v974
        %1317 = vmatprep.subr.mxu0 %v983
        %1318 = vmatpush1.msra.mxu0 %v982
        %1319 = vmatprep.subr.mxu0 %v991
        %1320 = vmatpush1.msra.mxu0 %v990
        %1321 = vmatprep.subr.mxu0 %v999
        %1322 = vmatpush1.msra.mxu0 %v998
        %1323 = vmatprep.subr.mxu0 %v1007
        %1324 = vmatpush1.msra.mxu0 %v1006
        %1325 = vmatprep.subr.mxu0 %v1015
        %1326 = vmatpush1.msra.mxu0 %v1014
        %1327 = vmatprep.subr.mxu0 %v1023
        %1328 = vmatpush1.msra.mxu0 %v1022
        %1329 = vmatprep.subr.mxu0 %v1031
        %1330 = vmatpush1.msra.mxu0 %v1030
        %1331 = vmatprep.subr.mxu0 %v1039
        %1332 = vmatpush1.msra.mxu0 %v1038
        %1333 = vmatprep.subr.mxu0 %v1047
        %1334 = vmatpush1.msra.mxu0 %v1046
        %1335 = vmatprep.subr.mxu0 %v1055
        %1336 = vmatpush1.msra.mxu0 %v1054
        %1337 = vmatprep.subr.mxu0 %v1063
        %1338 = vmatpush1.msra.mxu0 %v1062
        %1339 = vmatprep.subr.mxu0 %v1071
        %1340 = vmatpush1.msra.mxu0 %v1070
        %1341 = vmatprep.subr.mxu0 %v1079
        %1342 = vmatpush1.msra.mxu0 %v1078
        %1343 = vmatprep.subr.mxu0 %v1087
        %1344 = vmatpush1.msra.mxu0 %v1086
        %1345 = vmatprep.subr.mxu0 0.0
        %1346 = vmatpush1.msra.mxu0 0.0
        %1347 = vmatprep.subr.mxu0 0.0
        %1348 = vmatpush1.msra.mxu0 0.0
        %1349 = vmatprep.subr.mxu0 0.0
        %1350 = vmatpush1.msra.mxu0 0.0
        %1351 = vmatprep.subr.mxu0 0.0
        %1352 = vmatpush1.msra.mxu0 0.0
        %1353 = vmatprep.subr.mxu0 0.0
        %1354 = vmatpush1.msra.mxu0 0.0
        %1355 = vmatprep.subr.mxu0 0.0
        %1356 = vmatpush1.msra.mxu0 0.0
        %1357 = vmatprep.subr.mxu0 0.0
        %1358 = vmatpush1.msra.mxu0 0.0
        %1359 = vmatprep.subr.mxu0 0.0
        %1360 = vmatpush1.msra.mxu0 0.0
        %1361 = vmatprep.subr.mxu0 0.0
        %1362 = vmatpush1.msra.mxu0 0.0
        %1363 = vmatprep.subr.mxu0 0.0
        %1364 = vmatpush1.msra.mxu0 0.0
        %1365 = vmatprep.subr.mxu0 0.0
        %1366 = vmatpush1.msra.mxu0 0.0
        %1367 = vmatprep.subr.mxu0 0.0
        %1368 = vmatpush1.msra.mxu0 0.0
        %1369 = vmatprep.subr.mxu0 0.0
        %1370 = vmatpush1.msra.mxu0 0.0
        %1371 = vmatprep.subr.mxu0 0.0
        %1372 = vmatpush1.msra.mxu0 0.0
        %1373 = vmatprep.subr.mxu0 0.0
        %1374 = vmatpush1.msra.mxu0 0.0
        %1375 = vmatprep.subr.mxu0 0.0
        %1376 = vmatpush1.msra.mxu0 0.0
        %1377 = vmatprep.mubr.f32.mxu0 0.0
        %1378 = vmatmul.mubr.f32.gmra.mrb[0].mxu0 %v956
        %v1379 = vpop.f32.mrb[0].mxu0
        %v1380 = vpop.f32.mrb[0].mxu0
        %1381 = vmatprep.mubr.f32.mxu0 0.0
        %1382 = vmatmul.mubr.f32.gmra.mrb[0].mxu0 %v957
        %v1383 = vpop.f32.mrb[0].mxu0
        %v1384 = vadd.f32 0.0, %v1383
        %v1385 = vpop.f32.mrb[0].mxu0
        %v1386 = vadd.f32 0.0, %v1385
        %1387 = vdwg.mxu0
        %s1388 = scalar_lea.vmem %s336, 32 [#allocation6]
        %v1389 = vld [vmem:[%s1388] sm:$0xff]
        %v1390 = vld [vmem:[%s1388 + $0x8] sm:$0xff]
        %v1391 = vld [vmem:[%s1388 + $0x10] sm:$0xff]
        %v1392 = vld [vmem:[%s1388 + $0x18] sm:$0xff]
        %v1393 = vadd.f32 %v1389, %v1155
        %v1394 = vadd.f32 %v1390, %v1157
        %v1395 = vadd.f32 %v1391, %v1230
        %v1396 = vadd.f32 %v1392, %v1232
        %s1397 = scalar_lea.vmem %s345, 64 [#allocation9]
        %v1398 = vld [vmem:[%s1397] sm:$0xff]
        %v1399 = vld [vmem:[%s1397 + $0x8] sm:$0xff]
        %v1400 = vld [vmem:[%s1397 + $0x10] sm:$0xff]
        %v1401 = vld [vmem:[%s1397 + $0x18] sm:$0xff]
        %v1402 = vadd.f32 %v1398, %v1309
        %v1403 = vadd.f32 %v1399, %v1311
        %v1404 = vadd.f32 %v1400, %v1384
        %v1405 = vadd.f32 %v1401, %v1386
        %v1406 = vxor.u32 %v1393, 2147483648
        %v1407 = vmul.f32 %v1406, 1.442695
        %v1408 = vpow.pop %v1407
        %v1409 = vadd.f32 %v1408, 1.0
        %v1410 = vrcp.pop %v1409
        %v1411 = vmul.f32 1.0, %v1410
        %v1412 = vxor.u32 %v1394, 2147483648
        %v1413 = vmul.f32 %v1412, 1.442695
        %v1414 = vpow.pop %v1413
        %v1415 = vadd.f32 %v1414, 1.0
        %v1416 = vrcp.pop %v1415
        %v1417 = vmul.f32 1.0, %v1416
        %v1418 = vtanh.pop %v1395
        %v1419 = vxor.u32 %v1396, 2147483648
        %v1420 = vmul.f32 %v1419, 1.442695
        %v1421 = vpow.pop %v1420
        %v1422 = vadd.f32 %v1421, 1.0
        %v1423 = vrcp.pop %v1422
        %v1424 = vmul.f32 1.0, %v1423
        %v1425 = vmul.f32 %v1417, %v958
        %v1426 = vmul.f32 %v1411, %v1418
        %v1427 = vadd.f32 %v1425, %v1426
        %v1428 = vtanh.pop %v1427
        %v1429 = vmul.f32 %v1424, %v1428
        %v1430 = vxor.u32 %v1402, 2147483648
        %v1431 = vmul.f32 %v1430, 1.442695
        %v1432 = vpow.pop %v1431
        %v1433 = vadd.f32 %v1432, 1.0
        %v1434 = vrcp.pop %v1433
        %v1435 = vmul.f32 1.0, %v1434
        %v1436 = vxor.u32 %v1403, 2147483648
        %v1437 = vmul.f32 %v1436, 1.442695
        %v1438 = vpow.pop %v1437
        %v1439 = vadd.f32 %v1438, 1.0
        %v1440 = vrcp.pop %v1439
        %v1441 = vmul.f32 1.0, %v1440
        %v1442 = vtanh.pop %v1404
        %v1443 = vxor.u32 %v1405, 2147483648
        %v1444 = vmul.f32 %v1443, 1.442695
        %v1445 = vpow.pop %v1444
        %v1446 = vadd.f32 %v1445, 1.0
        %v1447 = vrcp.pop %v1446
        %v1448 = vmul.f32 1.0, %v1447
        %v1449 = vmul.f32 %v1441, %v959
        %v1450 = vmul.f32 %v1435, %v1442
        %v1451 = vadd.f32 %v1449, %v1450
        %v1452 = vtanh.pop %v1451
        %v1453 = vmul.f32 %v1448, %v1452
        %v1454 = vstv %s954
        %vm1455 = vcmp.lt.s32.totalorder %v1454, %v425
        %v1456 = vstv %s955
        %vm1457 = vcmp.lt.s32.totalorder %v1456, %v425
        %v1458 = vsel %vm1455, 1, 0
        %1459 = vset.pattern.permute.xlu0 0
        %1460 = vperm.xlu0 %1459, %v1458
        %v1461 = vpop.permute.xlu0 %1460
        %vm1462 = vcmp.eq.s32.totalorder %v1461, 1
        %v1463 = vsel %vm1462, %v1429, %v956
        %1464 = vst [vmem:[#allocation4] sm:$0xff] %v1463
        %v1465 = vsel %vm1462, %v1427, %v958
        %1466 = vst [vmem:[#allocation5] sm:$0xff] %v1465
        %v1467 = vsel %vm1457, 1, 0
        %1468 = vset.pattern.permute.xlu0 0
        %1469 = vperm.xlu0 %1468, %v1467
        %v1470 = vpop.permute.xlu0 %1469
        %vm1471 = vcmp.eq.s32.totalorder %v1470, 1
        %v1472 = vsel %vm1471, %v1453, %v957
        %1473 = vst [vmem:[#allocation4 + $0x8] sm:$0xff] %v1472
        %v1474 = vsel %vm1471, %v1451, %v959
        %1475 = vst [vmem:[#allocation5 + $0x8] sm:$0xff] %v1474
        %v1476 = vsel %vm1462, %v1429, 0.0
        %s1477 = scalar_lea.vmem %s380, 8 [#allocation12]
        %1478 = vst [vmem:[%s1477] sm:$0xff] %v1476
        %v1479 = vsel %vm1471, %v1453, 0.0
        %s1480 = scalar_lea.vmem %s387, 16 [#allocation13]
        %1481 = vst [vmem:[%s1480] sm:$0xff] %v1479
        %s1482 = sadd.s32 %s426, 2
        %s1483 = sadd.s32 %s428, 1
        %v1484 = vld [vmem:[#allocation4] sm:$0xff]
        %v1485 = vld [vmem:[#allocation4 + $0x8] sm:$0xff]
        %v1486 = vld [vmem:[#allocation5] sm:$0xff]
        %v1487 = vld [vmem:[#allocation5 + $0x8] sm:$0xff]
        %v1488 = vld [vmem:[#allocation2] sm:$0xff]
        %v1489 = vld [vmem:[#allocation2 + $0x8] sm:$0xff]
        %v1490 = vld [vmem:[#allocation2 + $0x10] sm:$0xff]
        %v1491 = vld [vmem:[#allocation2 + $0x18] sm:$0xff]
        %v1492 = vld [vmem:[#allocation2 + $0x20] sm:$0xff]
        %v1493 = vld [vmem:[#allocation2 + $0x28] sm:$0xff]
        %v1494 = vld [vmem:[#allocation2 + $0x30] sm:$0xff]
        %v1495 = vld [vmem:[#allocation2 + $0x38] sm:$0xff]
        %v1496 = vld [vmem:[#allocation2 + $0x40] sm:$0xff]
        %v1497 = vld [vmem:[#allocation2 + $0x48] sm:$0xff]
        %v1498 = vld [vmem:[#allocation2 + $0x50] sm:$0xff]
        %v1499 = vld [vmem:[#allocation2 + $0x58] sm:$0xff]
        %v1500 = vld [vmem:[#allocation2 + $0x60] sm:$0xff]
        %v1501 = vld [vmem:[#allocation2 + $0x68] sm:$0xff]
        %v1502 = vld [vmem:[#allocation2 + $0x70] sm:$0xff]
        %v1503 = vld [vmem:[#allocation2 + $0x78] sm:$0xff]
        %v1504 = vld [vmem:[#allocation2 + $0x80] sm:$0xff]
        %v1505 = vld [vmem:[#allocation2 + $0x88] sm:$0xff]
        %v1506 = vld [vmem:[#allocation2 + $0x90] sm:$0xff]
        %v1507 = vld [vmem:[#allocation2 + $0x98] sm:$0xff]
        %v1508 = vld [vmem:[#allocation2 + $0xa0] sm:$0xff]
        %v1509 = vld [vmem:[#allocation2 + $0xa8] sm:$0xff]
        %v1510 = vld [vmem:[#allocation2 + $0xb0] sm:$0xff]
        %v1511 = vld [vmem:[#allocation2 + $0xb8] sm:$0xff]
        %v1512 = vld [vmem:[#allocation2 + $0xc0] sm:$0xff]
        %v1513 = vld [vmem:[#allocation2 + $0xc8] sm:$0xff]
        %v1514 = vld [vmem:[#allocation2 + $0xd0] sm:$0xff]
        %v1515 = vld [vmem:[#allocation2 + $0xd8] sm:$0xff]
        %v1516 = vld [vmem:[#allocation2 + $0xe0] sm:$0xff]
        %v1517 = vld [vmem:[#allocation2 + $0xe8] sm:$0xff]
        %v1518 = vld [vmem:[#allocation2 + $0xf0] sm:$0xff]
        %v1519 = vld [vmem:[#allocation2 + $0xf8] sm:$0xff]
        %v1520 = vld [vmem:[#allocation2 + $0x100] sm:$0xff]
        %v1521 = vld [vmem:[#allocation2 + $0x108] sm:$0xff]
        %v1522 = vld [vmem:[#allocation2 + $0x110] sm:$0xff]
        %v1523 = vld [vmem:[#allocation2 + $0x118] sm:$0xff]
        %v1524 = vld [vmem:[#allocation2 + $0x120] sm:$0xff]
        %v1525 = vld [vmem:[#allocation2 + $0x128] sm:$0xff]
        %v1526 = vld [vmem:[#allocation2 + $0x130] sm:$0xff]
        %v1527 = vld [vmem:[#allocation2 + $0x138] sm:$0xff]
        %v1528 = vld [vmem:[#allocation2 + $0x140] sm:$0xff]
        %v1529 = vld [vmem:[#allocation2 + $0x148] sm:$0xff]
        %v1530 = vld [vmem:[#allocation2 + $0x150] sm:$0xff]
        %v1531 = vld [vmem:[#allocation2 + $0x158] sm:$0xff]
        %v1532 = vld [vmem:[#allocation2 + $0x160] sm:$0xff]
        %v1533 = vld [vmem:[#allocation2 + $0x168] sm:$0xff]
        %v1534 = vld [vmem:[#allocation2 + $0x170] sm:$0xff]
        %v1535 = vld [vmem:[#allocation2 + $0x178] sm:$0xff]
        %v1536 = vld [vmem:[#allocation2 + $0x180] sm:$0xff]
        %v1537 = vld [vmem:[#allocation2 + $0x188] sm:$0xff]
        %v1538 = vld [vmem:[#allocation2 + $0x190] sm:$0xff]
        %v1539 = vld [vmem:[#allocation2 + $0x198] sm:$0xff]
        %v1540 = vld [vmem:[#allocation2 + $0x1a0] sm:$0xff]
        %v1541 = vld [vmem:[#allocation2 + $0x1a8] sm:$0xff]
        %v1542 = vld [vmem:[#allocation2 + $0x1b0] sm:$0xff]
        %v1543 = vld [vmem:[#allocation2 + $0x1b8] sm:$0xff]
        %v1544 = vld [vmem:[#allocation2 + $0x1c0] sm:$0xff]
        %v1545 = vld [vmem:[#allocation2 + $0x1c8] sm:$0xff]
        %v1546 = vld [vmem:[#allocation2 + $0x1d0] sm:$0xff]
        %v1547 = vld [vmem:[#allocation2 + $0x1d8] sm:$0xff]
        %v1548 = vld [vmem:[#allocation2 + $0x1e0] sm:$0xff]
        %v1549 = vld [vmem:[#allocation2 + $0x1e8] sm:$0xff]
        %v1550 = vld [vmem:[#allocation2 + $0x1f0] sm:$0xff]
        %v1551 = vld [vmem:[#allocation2 + $0x1f8] sm:$0xff]
        %v1552 = vld [vmem:[#allocation2 + $0x200] sm:$0xff]
        %v1553 = vld [vmem:[#allocation2 + $0x208] sm:$0xff]
        %v1554 = vld [vmem:[#allocation2 + $0x210] sm:$0xff]
        %v1555 = vld [vmem:[#allocation2 + $0x218] sm:$0xff]
        %v1556 = vld [vmem:[#allocation2 + $0x220] sm:$0xff]
        %v1557 = vld [vmem:[#allocation2 + $0x228] sm:$0xff]
        %v1558 = vld [vmem:[#allocation2 + $0x230] sm:$0xff]
        %v1559 = vld [vmem:[#allocation2 + $0x238] sm:$0xff]
        %v1560 = vld [vmem:[#allocation2 + $0x240] sm:$0xff]
        %v1561 = vld [vmem:[#allocation2 + $0x248] sm:$0xff]
        %v1562 = vld [vmem:[#allocation2 + $0x250] sm:$0xff]
        %v1563 = vld [vmem:[#allocation2 + $0x258] sm:$0xff]
        %v1564 = vld [vmem:[#allocation2 + $0x260] sm:$0xff]
        %v1565 = vld [vmem:[#allocation2 + $0x268] sm:$0xff]
        %v1566 = vld [vmem:[#allocation2 + $0x270] sm:$0xff]
        %v1567 = vld [vmem:[#allocation2 + $0x278] sm:$0xff]
        %v1568 = vld [vmem:[#allocation2 + $0x280] sm:$0xff]
        %v1569 = vld [vmem:[#allocation2 + $0x288] sm:$0xff]
        %v1570 = vld [vmem:[#allocation2 + $0x290] sm:$0xff]
        %v1571 = vld [vmem:[#allocation2 + $0x298] sm:$0xff]
        %v1572 = vld [vmem:[#allocation2 + $0x2a0] sm:$0xff]
        %v1573 = vld [vmem:[#allocation2 + $0x2a8] sm:$0xff]
        %v1574 = vld [vmem:[#allocation2 + $0x2b0] sm:$0xff]
        %v1575 = vld [vmem:[#allocation2 + $0x2b8] sm:$0xff]
        %v1576 = vld [vmem:[#allocation2 + $0x2c0] sm:$0xff]
        %v1577 = vld [vmem:[#allocation2 + $0x2c8] sm:$0xff]
        %v1578 = vld [vmem:[#allocation2 + $0x2d0] sm:$0xff]
        %v1579 = vld [vmem:[#allocation2 + $0x2d8] sm:$0xff]
        %v1580 = vld [vmem:[#allocation2 + $0x2e0] sm:$0xff]
        %v1581 = vld [vmem:[#allocation2 + $0x2e8] sm:$0xff]
        %v1582 = vld [vmem:[#allocation2 + $0x2f0] sm:$0xff]
        %v1583 = vld [vmem:[#allocation2 + $0x2f8] sm:$0xff]
        %v1584 = vld [vmem:[#allocation2 + $0x300] sm:$0xff]
        %v1585 = vld [vmem:[#allocation2 + $0x308] sm:$0xff]
        %v1586 = vld [vmem:[#allocation2 + $0x310] sm:$0xff]
        %v1587 = vld [vmem:[#allocation2 + $0x318] sm:$0xff]
        %v1588 = vld [vmem:[#allocation2 + $0x320] sm:$0xff]
        %v1589 = vld [vmem:[#allocation2 + $0x328] sm:$0xff]
        %v1590 = vld [vmem:[#allocation2 + $0x330] sm:$0xff]
        %v1591 = vld [vmem:[#allocation2 + $0x338] sm:$0xff]
        %v1592 = vld [vmem:[#allocation2 + $0x340] sm:$0xff]
        %v1593 = vld [vmem:[#allocation2 + $0x348] sm:$0xff]
        %v1594 = vld [vmem:[#allocation2 + $0x350] sm:$0xff]
        %v1595 = vld [vmem:[#allocation2 + $0x358] sm:$0xff]
        %v1596 = vld [vmem:[#allocation2 + $0x360] sm:$0xff]
        %v1597 = vld [vmem:[#allocation2 + $0x368] sm:$0xff]
        %v1598 = vld [vmem:[#allocation2 + $0x370] sm:$0xff]
        %v1599 = vld [vmem:[#allocation2 + $0x378] sm:$0xff]
        %v1600 = vld [vmem:[#allocation2 + $0x380] sm:$0xff]
        %v1601 = vld [vmem:[#allocation2 + $0x388] sm:$0xff]
        %v1602 = vld [vmem:[#allocation2 + $0x390] sm:$0xff]
        %v1603 = vld [vmem:[#allocation2 + $0x398] sm:$0xff]
        %v1604 = vld [vmem:[#allocation2 + $0x3a0] sm:$0xff]
        %v1605 = vld [vmem:[#allocation2 + $0x3a8] sm:$0xff]
        %v1606 = vld [vmem:[#allocation2 + $0x3b0] sm:$0xff]
        %v1607 = vld [vmem:[#allocation2 + $0x3b8] sm:$0xff]
        %v1608 = vld [vmem:[#allocation2 + $0x3c0] sm:$0xff]
        %v1609 = vld [vmem:[#allocation2 + $0x3c8] sm:$0xff]
        %v1610 = vld [vmem:[#allocation2 + $0x3d0] sm:$0xff]
        %v1611 = vld [vmem:[#allocation2 + $0x3d8] sm:$0xff]
        %v1612 = vld [vmem:[#allocation2 + $0x3e0] sm:$0xff]
        %v1613 = vld [vmem:[#allocation2 + $0x3e8] sm:$0xff]
        %v1614 = vld [vmem:[#allocation2 + $0x3f0] sm:$0xff]
        %v1615 = vld [vmem:[#allocation2 + $0x3f8] sm:$0xff]
        %1616 = vmatprep.subr.mxu0 %v1489
        %1617 = vmatpush1.msra.mxu0 %v1488
        %1618 = vmatprep.subr.mxu0 %v1497
        %1619 = vmatpush1.msra.mxu0 %v1496
        %1620 = vmatprep.subr.mxu0 %v1505
        %1621 = vmatpush1.msra.mxu0 %v1504
        %1622 = vmatprep.subr.mxu0 %v1513
        %1623 = vmatpush1.msra.mxu0 %v1512
        %1624 = vmatprep.subr.mxu0 %v1521
        %1625 = vmatpush1.msra.mxu0 %v1520
        %1626 = vmatprep.subr.mxu0 %v1529
        %1627 = vmatpush1.msra.mxu0 %v1528
        %1628 = vmatprep.subr.mxu0 %v1537
        %1629 = vmatpush1.msra.mxu0 %v1536
        %1630 = vmatprep.subr.mxu0 %v1545
        %1631 = vmatpush1.msra.mxu0 %v1544
        %1632 = vmatprep.subr.mxu0 %v1553
        %1633 = vmatpush1.msra.mxu0 %v1552
        %1634 = vmatprep.subr.mxu0 %v1561
        %1635 = vmatpush1.msra.mxu0 %v1560
        %1636 = vmatprep.subr.mxu0 %v1569
        %1637 = vmatpush1.msra.mxu0 %v1568
        %1638 = vmatprep.subr.mxu0 %v1577
        %1639 = vmatpush1.msra.mxu0 %v1576
        %1640 = vmatprep.subr.mxu0 %v1585
        %1641 = vmatpush1.msra.mxu0 %v1584
        %1642 = vmatprep.subr.mxu0 %v1593
        %1643 = vmatpush1.msra.mxu0 %v1592
        %1644 = vmatprep.subr.mxu0 %v1601
        %1645 = vmatpush1.msra.mxu0 %v1600
        %1646 = vmatprep.subr.mxu0 %v1609
        %1647 = vmatpush1.msra.mxu0 %v1608
        %1648 = vmatprep.subr.mxu0 0.0
        %1649 = vmatpush1.msra.mxu0 0.0
        %1650 = vmatprep.subr.mxu0 0.0
        %1651 = vmatpush1.msra.mxu0 0.0
        %1652 = vmatprep.subr.mxu0 0.0
        %1653 = vmatpush1.msra.mxu0 0.0
        %1654 = vmatprep.subr.mxu0 0.0
        %1655 = vmatpush1.msra.mxu0 0.0
        %1656 = vmatprep.subr.mxu0 0.0
        %1657 = vmatpush1.msra.mxu0 0.0
        %1658 = vmatprep.subr.mxu0 0.0
        %1659 = vmatpush1.msra.mxu0 0.0
        %1660 = vmatprep.subr.mxu0 0.0
        %1661 = vmatpush1.msra.mxu0 0.0
        %1662 = vmatprep.subr.mxu0 0.0
        %1663 = vmatpush1.msra.mxu0 0.0
        %1664 = vmatprep.subr.mxu0 0.0
        %1665 = vmatpush1.msra.mxu0 0.0
        %1666 = vmatprep.subr.mxu0 0.0
        %1667 = vmatpush1.msra.mxu0 0.0
        %1668 = vmatprep.subr.mxu0 0.0
        %1669 = vmatpush1.msra.mxu0 0.0
        %1670 = vmatprep.subr.mxu0 0.0
        %1671 = vmatpush1.msra.mxu0 0.0
        %1672 = vmatprep.subr.mxu0 0.0
        %1673 = vmatpush1.msra.mxu0 0.0
        %1674 = vmatprep.subr.mxu0 0.0
        %1675 = vmatpush1.msra.mxu0 0.0
        %1676 = vmatprep.subr.mxu0 0.0
        %1677 = vmatpush1.msra.mxu0 0.0
        %1678 = vmatprep.subr.mxu0 0.0
        %1679 = vmatpush1.msra.mxu0 0.0
        %1680 = vmatprep.mubr.f32.mxu0 0.0
        %1681 = vmatmul.mubr.f32.gmra.mrb[0].mxu0 %v1484
        %v1682 = vpop.f32.mrb[0].mxu0
        %v1683 = vadd.f32 0.0, %v1682
        %v1684 = vpop.f32.mrb[0].mxu0
        %v1685 = vadd.f32 0.0, %v1684
        %1686 = vmatprep.mubr.f32.mxu0 0.0
        %1687 = vmatmul.mubr.f32.gmra.mrb[0].mxu0 %v1485
        %v1688 = vpop.f32.mrb[0].mxu0
        %v1689 = vpop.f32.mrb[0].mxu0
        %1690 = vdwg.mxu0
        %1691 = vmatprep.subr.mxu0 %v1491
        %1692 = vmatpush1.msra.mxu0 %v1490
        %1693 = vmatprep.subr.mxu0 %v1499
        %1694 = vmatpush1.msra.mxu0 %v1498
        %1695 = vmatprep.subr.mxu0 %v1507
        %1696 = vmatpush1.msra.mxu0 %v1506
        %1697 = vmatprep.subr.mxu0 %v1515
        %1698 = vmatpush1.msra.mxu0 %v1514
        %1699 = vmatprep.subr.mxu0 %v1523
        %1700 = vmatpush1.msra.mxu0 %v1522
        %1701 = vmatprep.subr.mxu0 %v1531
        %1702 = vmatpush1.msra.mxu0 %v1530
        %1703 = vmatprep.subr.mxu0 %v1539
        %1704 = vmatpush1.msra.mxu0 %v1538
        %1705 = vmatprep.subr.mxu0 %v1547
        %1706 = vmatpush1.msra.mxu0 %v1546
        %1707 = vmatprep.subr.mxu0 %v1555
        %1708 = vmatpush1.msra.mxu0 %v1554
        %1709 = vmatprep.subr.mxu0 %v1563
        %1710 = vmatpush1.msra.mxu0 %v1562
        %1711 = vmatprep.subr.mxu0 %v1571
        %1712 = vmatpush1.msra.mxu0 %v1570
        %1713 = vmatprep.subr.mxu0 %v1579
        %1714 = vmatpush1.msra.mxu0 %v1578
        %1715 = vmatprep.subr.mxu0 %v1587
        %1716 = vmatpush1.msra.mxu0 %v1586
        %1717 = vmatprep.subr.mxu0 %v1595
        %1718 = vmatpush1.msra.mxu0 %v1594
        %1719 = vmatprep.subr.mxu0 %v1603
        %1720 = vmatpush1.msra.mxu0 %v1602
        %1721 = vmatprep.subr.mxu0 %v1611
        %1722 = vmatpush1.msra.mxu0 %v1610
        %1723 = vmatprep.subr.mxu0 0.0
        %1724 = vmatpush1.msra.mxu0 0.0
        %1725 = vmatprep.subr.mxu0 0.0
        %1726 = vmatpush1.msra.mxu0 0.0
        %1727 = vmatprep.subr.mxu0 0.0
        %1728 = vmatpush1.msra.mxu0 0.0
        %1729 = vmatprep.subr.mxu0 0.0
        %1730 = vmatpush1.msra.mxu0 0.0
        %1731 = vmatprep.subr.mxu0 0.0
        %1732 = vmatpush1.msra.mxu0 0.0
        %1733 = vmatprep.subr.mxu0 0.0
        %1734 = vmatpush1.msra.mxu0 0.0
        %1735 = vmatprep.subr.mxu0 0.0
        %1736 = vmatpush1.msra.mxu0 0.0
        %1737 = vmatprep.subr.mxu0 0.0
        %1738 = vmatpush1.msra.mxu0 0.0
        %1739 = vmatprep.subr.mxu0 0.0
        %1740 = vmatpush1.msra.mxu0 0.0
        %1741 = vmatprep.subr.mxu0 0.0
        %1742 = vmatpush1.msra.mxu0 0.0
        %1743 = vmatprep.subr.mxu0 0.0
        %1744 = vmatpush1.msra.mxu0 0.0
        %1745 = vmatprep.subr.mxu0 0.0
        %1746 = vmatpush1.msra.mxu0 0.0
        %1747 = vmatprep.subr.mxu0 0.0
        %1748 = vmatpush1.msra.mxu0 0.0
        %1749 = vmatprep.subr.mxu0 0.0
        %1750 = vmatpush1.msra.mxu0 0.0
        %1751 = vmatprep.subr.mxu0 0.0
        %1752 = vmatpush1.msra.mxu0 0.0
        %1753 = vmatprep.subr.mxu0 0.0
        %1754 = vmatpush1.msra.mxu0 0.0
        %1755 = vmatprep.mubr.f32.mxu0 0.0
        %1756 = vmatmul.mubr.f32.gmra.mrb[0].mxu0 %v1484
        %v1757 = vpop.f32.mrb[0].mxu0
        %v1758 = vadd.f32 0.0, %v1757
        %v1759 = vpop.f32.mrb[0].mxu0
        %v1760 = vadd.f32 0.0, %v1759
        %1761 = vmatprep.mubr.f32.mxu0 0.0
        %1762 = vmatmul.mubr.f32.gmra.mrb[0].mxu0 %v1485
        %v1763 = vpop.f32.mrb[0].mxu0
        %v1764 = vpop.f32.mrb[0].mxu0
        %1765 = vdwg.mxu0
        %1766 = vmatprep.subr.mxu0 %v1493
        %1767 = vmatpush1.msra.mxu0 %v1492
        %1768 = vmatprep.subr.mxu0 %v1501
        %1769 = vmatpush1.msra.mxu0 %v1500
        %1770 = vmatprep.subr.mxu0 %v1509
        %1771 = vmatpush1.msra.mxu0 %v1508
        %1772 = vmatprep.subr.mxu0 %v1517
        %1773 = vmatpush1.msra.mxu0 %v1516
        %1774 = vmatprep.subr.mxu0 %v1525
        %1775 = vmatpush1.msra.mxu0 %v1524
        %1776 = vmatprep.subr.mxu0 %v1533
        %1777 = vmatpush1.msra.mxu0 %v1532
        %1778 = vmatprep.subr.mxu0 %v1541
        %1779 = vmatpush1.msra.mxu0 %v1540
        %1780 = vmatprep.subr.mxu0 %v1549
        %1781 = vmatpush1.msra.mxu0 %v1548
        %1782 = vmatprep.subr.mxu0 %v1557
        %1783 = vmatpush1.msra.mxu0 %v1556
        %1784 = vmatprep.subr.mxu0 %v1565
        %1785 = vmatpush1.msra.mxu0 %v1564
        %1786 = vmatprep.subr.mxu0 %v1573
        %1787 = vmatpush1.msra.mxu0 %v1572
        %1788 = vmatprep.subr.mxu0 %v1581
        %1789 = vmatpush1.msra.mxu0 %v1580
        %1790 = vmatprep.subr.mxu0 %v1589
        %1791 = vmatpush1.msra.mxu0 %v1588
        %1792 = vmatprep.subr.mxu0 %v1597
        %1793 = vmatpush1.msra.mxu0 %v1596
        %1794 = vmatprep.subr.mxu0 %v1605
        %1795 = vmatpush1.msra.mxu0 %v1604
        %1796 = vmatprep.subr.mxu0 %v1613
        %1797 = vmatpush1.msra.mxu0 %v1612
        %1798 = vmatprep.subr.mxu0 0.0
        %1799 = vmatpush1.msra.mxu0 0.0
        %1800 = vmatprep.subr.mxu0 0.0
        %1801 = vmatpush1.msra.mxu0 0.0
        %1802 = vmatprep.subr.mxu0 0.0
        %1803 = vmatpush1.msra.mxu0 0.0
        %1804 = vmatprep.subr.mxu0 0.0
        %1805 = vmatpush1.msra.mxu0 0.0
        %1806 = vmatprep.subr.mxu0 0.0
        %1807 = vmatpush1.msra.mxu0 0.0
        %1808 = vmatprep.subr.mxu0 0.0
        %1809 = vmatpush1.msra.mxu0 0.0
        %1810 = vmatprep.subr.mxu0 0.0
        %1811 = vmatpush1.msra.mxu0 0.0
        %1812 = vmatprep.subr.mxu0 0.0
        %1813 = vmatpush1.msra.mxu0 0.0
        %1814 = vmatprep.subr.mxu0 0.0
        %1815 = vmatpush1.msra.mxu0 0.0
        %1816 = vmatprep.subr.mxu0 0.0
        %1817 = vmatpush1.msra.mxu0 0.0
        %1818 = vmatprep.subr.mxu0 0.0
        %1819 = vmatpush1.msra.mxu0 0.0
        %1820 = vmatprep.subr.mxu0 0.0
        %1821 = vmatpush1.msra.mxu0 0.0
        %1822 = vmatprep.subr.mxu0 0.0
        %1823 = vmatpush1.msra.mxu0 0.0
        %1824 = vmatprep.subr.mxu0 0.0
        %1825 = vmatpush1.msra.mxu0 0.0
        %1826 = vmatprep.subr.mxu0 0.0
        %1827 = vmatpush1.msra.mxu0 0.0
        %1828 = vmatprep.subr.mxu0 0.0
        %1829 = vmatpush1.msra.mxu0 0.0
        %1830 = vmatprep.mubr.f32.mxu0 0.0
        %1831 = vmatmul.mubr.f32.gmra.mrb[0].mxu0 %v1484
        %v1832 = vpop.f32.mrb[0].mxu0
        %v1833 = vpop.f32.mrb[0].mxu0
        %1834 = vmatprep.mubr.f32.mxu0 0.0
        %1835 = vmatmul.mubr.f32.gmra.mrb[0].mxu0 %v1485
        %v1836 = vpop.f32.mrb[0].mxu0
        %v1837 = vadd.f32 0.0, %v1836
        %v1838 = vpop.f32.mrb[0].mxu0
        %v1839 = vadd.f32 0.0, %v1838
        %1840 = vdwg.mxu0
        %1841 = vmatprep.subr.mxu0 %v1495
        %1842 = vmatpush1.msra.mxu0 %v1494
        %1843 = vmatprep.subr.mxu0 %v1503
        %1844 = vmatpush1.msra.mxu0 %v1502
        %1845 = vmatprep.subr.mxu0 %v1511
        %1846 = vmatpush1.msra.mxu0 %v1510
        %1847 = vmatprep.subr.mxu0 %v1519
        %1848 = vmatpush1.msra.mxu0 %v1518
        %1849 = vmatprep.subr.mxu0 %v1527
        %1850 = vmatpush1.msra.mxu0 %v1526
        %1851 = vmatprep.subr.mxu0 %v1535
        %1852 = vmatpush1.msra.mxu0 %v1534
        %1853 = vmatprep.subr.mxu0 %v1543
        %1854 = vmatpush1.msra.mxu0 %v1542
        %1855 = vmatprep.subr.mxu0 %v1551
        %1856 = vmatpush1.msra.mxu0 %v1550
        %1857 = vmatprep.subr.mxu0 %v1559
        %1858 = vmatpush1.msra.mxu0 %v1558
        %1859 = vmatprep.subr.mxu0 %v1567
        %1860 = vmatpush1.msra.mxu0 %v1566
        %1861 = vmatprep.subr.mxu0 %v1575
        %1862 = vmatpush1.msra.mxu0 %v1574
        %1863 = vmatprep.subr.mxu0 %v1583
        %1864 = vmatpush1.msra.mxu0 %v1582
        %1865 = vmatprep.subr.mxu0 %v1591
        %1866 = vmatpush1.msra.mxu0 %v1590
        %1867 = vmatprep.subr.mxu0 %v1599
        %1868 = vmatpush1.msra.mxu0 %v1598
        %1869 = vmatprep.subr.mxu0 %v1607
        %1870 = vmatpush1.msra.mxu0 %v1606
        %1871 = vmatprep.subr.mxu0 %v1615
        %1872 = vmatpush1.msra.mxu0 %v1614
        %1873 = vmatprep.subr.mxu0 0.0
        %1874 = vmatpush1.msra.mxu0 0.0
        %1875 = vmatprep.subr.mxu0 0.0
        %1876 = vmatpush1.msra.mxu0 0.0
        %1877 = vmatprep.subr.mxu0 0.0
        %1878 = vmatpush1.msra.mxu0 0.0
        %1879 = vmatprep.subr.mxu0 0.0
        %1880 = vmatpush1.msra.mxu0 0.0
        %1881 = vmatprep.subr.mxu0 0.0
        %1882 = vmatpush1.msra.mxu0 0.0
        %1883 = vmatprep.subr.mxu0 0.0
        %1884 = vmatpush1.msra.mxu0 0.0
        %1885 = vmatprep.subr.mxu0 0.0
        %1886 = vmatpush1.msra.mxu0 0.0
        %1887 = vmatprep.subr.mxu0 0.0
        %1888 = vmatpush1.msra.mxu0 0.0
        %1889 = vmatprep.subr.mxu0 0.0
        %1890 = vmatpush1.msra.mxu0 0.0
        %1891 = vmatprep.subr.mxu0 0.0
        %1892 = vmatpush1.msra.mxu0 0.0
        %1893 = vmatprep.subr.mxu0 0.0
        %1894 = vmatpush1.msra.mxu0 0.0
        %1895 = vmatprep.subr.mxu0 0.0
        %1896 = vmatpush1.msra.mxu0 0.0
        %1897 = vmatprep.subr.mxu0 0.0
        %1898 = vmatpush1.msra.mxu0 0.0
        %1899 = vmatprep.subr.mxu0 0.0
        %1900 = vmatpush1.msra.mxu0 0.0
        %1901 = vmatprep.subr.mxu0 0.0
        %1902 = vmatpush1.msra.mxu0 0.0
        %1903 = vmatprep.subr.mxu0 0.0
        %1904 = vmatpush1.msra.mxu0 0.0
        %1905 = vmatprep.mubr.f32.mxu0 0.0
        %1906 = vmatmul.mubr.f32.gmra.mrb[0].mxu0 %v1484
        %v1907 = vpop.f32.mrb[0].mxu0
        %v1908 = vpop.f32.mrb[0].mxu0
        %1909 = vmatprep.mubr.f32.mxu0 0.0
        %1910 = vmatmul.mubr.f32.gmra.mrb[0].mxu0 %v1485
        %v1911 = vpop.f32.mrb[0].mxu0
        %v1912 = vadd.f32 0.0, %v1911
        %v1913 = vpop.f32.mrb[0].mxu0
        %v1914 = vadd.f32 0.0, %v1913
        %1915 = vdwg.mxu0
        %s1916 = scalar_lea.vmem %s336, 64 [#allocation6]
        %v1917 = vld [vmem:[%s1916] sm:$0xff]
        %v1918 = vld [vmem:[%s1916 + $0x8] sm:$0xff]
        %v1919 = vld [vmem:[%s1916 + $0x10] sm:$0xff]
        %v1920 = vld [vmem:[%s1916 + $0x18] sm:$0xff]
        %v1921 = vadd.f32 %v1917, %v1683
        %v1922 = vadd.f32 %v1918, %v1685
        %v1923 = vadd.f32 %v1919, %v1758
        %v1924 = vadd.f32 %v1920, %v1760
        %s1925 = scalar_lea.vmem %s345, 32 [#allocation9]
        %v1926 = vld [vmem:[%s1925] sm:$0xff]
        %v1927 = vld [vmem:[%s1925 + $0x8] sm:$0xff]
        %v1928 = vld [vmem:[%s1925 + $0x10] sm:$0xff]
        %v1929 = vld [vmem:[%s1925 + $0x18] sm:$0xff]
        %v1930 = vadd.f32 %v1926, %v1837
        %v1931 = vadd.f32 %v1927, %v1839
        %v1932 = vadd.f32 %v1928, %v1912
        %v1933 = vadd.f32 %v1929, %v1914
        %v1934 = vxor.u32 %v1921, 2147483648
        %v1935 = vmul.f32 %v1934, 1.442695
        %v1936 = vpow.pop %v1935
        %v1937 = vadd.f32 %v1936, 1.0
        %v1938 = vrcp.pop %v1937
        %v1939 = vmul.f32 1.0, %v1938
        %v1940 = vxor.u32 %v1922, 2147483648
        %v1941 = vmul.f32 %v1940, 1.442695
        %v1942 = vpow.pop %v1941
        %v1943 = vadd.f32 %v1942, 1.0
        %v1944 = vrcp.pop %v1943
        %v1945 = vmul.f32 1.0, %v1944
        %v1946 = vtanh.pop %v1923
        %v1947 = vxor.u32 %v1924, 2147483648
        %v1948 = vmul.f32 %v1947, 1.442695
        %v1949 = vpow.pop %v1948
        %v1950 = vadd.f32 %v1949, 1.0
        %v1951 = vrcp.pop %v1950
        %v1952 = vmul.f32 1.0, %v1951
        %v1953 = vmul.f32 %v1945, %v1486
        %v1954 = vmul.f32 %v1939, %v1946
        %v1955 = vadd.f32 %v1953, %v1954
        %v1956 = vtanh.pop %v1955
        %v1957 = vmul.f32 %v1952, %v1956
        %v1958 = vxor.u32 %v1930, 2147483648
        %v1959 = vmul.f32 %v1958, 1.442695
        %v1960 = vpow.pop %v1959
        %v1961 = vadd.f32 %v1960, 1.0
        %v1962 = vrcp.pop %v1961
        %v1963 = vmul.f32 1.0, %v1962
        %v1964 = vxor.u32 %v1931, 2147483648
        %v1965 = vmul.f32 %v1964, 1.442695
        %v1966 = vpow.pop %v1965
        %v1967 = vadd.f32 %v1966, 1.0
        %v1968 = vrcp.pop %v1967
        %v1969 = vmul.f32 1.0, %v1968
        %v1970 = vtanh.pop %v1932
        %v1971 = vxor.u32 %v1933, 2147483648
        %v1972 = vmul.f32 %v1971, 1.442695
        %v1973 = vpow.pop %v1972
        %v1974 = vadd.f32 %v1973, 1.0
        %v1975 = vrcp.pop %v1974
        %v1976 = vmul.f32 1.0, %v1975
        %v1977 = vmul.f32 %v1969, %v1487
        %v1978 = vmul.f32 %v1963, %v1970
        %v1979 = vadd.f32 %v1977, %v1978
        %v1980 = vtanh.pop %v1979
        %v1981 = vmul.f32 %v1976, %v1980
        %v1982 = vstv %s1482
        %vm1983 = vcmp.lt.s32.totalorder %v1982, %v425
        %v1984 = vstv %s1483
        %vm1985 = vcmp.lt.s32.totalorder %v1984, %v425
        %v1986 = vsel %vm1983, 1, 0
        %1987 = vset.pattern.permute.xlu0 0
        %1988 = vperm.xlu0 %1987, %v1986
        %v1989 = vpop.permute.xlu0 %1988
        %vm1990 = vcmp.eq.s32.totalorder %v1989, 1
        %v1991 = vsel %vm1990, %v1957, %v1484
        %1992 = vst [vmem:[#allocation4] sm:$0xff] %v1991
        %v1993 = vsel %vm1990, %v1955, %v1486
        %1994 = vst [vmem:[#allocation5] sm:$0xff] %v1993
        %v1995 = vsel %vm1985, 1, 0
        %1996 = vset.pattern.permute.xlu0 0
        %1997 = vperm.xlu0 %1996, %v1995
        %v1998 = vpop.permute.xlu0 %1997
        %vm1999 = vcmp.eq.s32.totalorder %v1998, 1
        %v2000 = vsel %vm1999, %v1981, %v1485
        %2001 = vst [vmem:[#allocation4 + $0x8] sm:$0xff] %v2000
        %v2002 = vsel %vm1999, %v1979, %v1487
        %2003 = vst [vmem:[#allocation5 + $0x8] sm:$0xff] %v2002
        %v2004 = vsel %vm1990, %v1957, 0.0
        %s2005 = scalar_lea.vmem %s380, 16 [#allocation12]
        %2006 = vst [vmem:[%s2005] sm:$0xff] %v2004
        %v2007 = vsel %vm1999, %v1981, 0.0
        %s2008 = scalar_lea.vmem %s387, 8 [#allocation13]
        %2009 = vst [vmem:[%s2008] sm:$0xff] %v2007
        %s2010 = sadd.s32 %s426, 3
        %v2011 = vld [vmem:[#allocation4] sm:$0xff]
        %v2012 = vld [vmem:[#allocation4 + $0x8] sm:$0xff]
        %v2013 = vld [vmem:[#allocation5] sm:$0xff]
        %v2014 = vld [vmem:[#allocation5 + $0x8] sm:$0xff]
        %v2015 = vld [vmem:[#allocation2] sm:$0xff]
        %v2016 = vld [vmem:[#allocation2 + $0x8] sm:$0xff]
        %v2017 = vld [vmem:[#allocation2 + $0x10] sm:$0xff]
        %v2018 = vld [vmem:[#allocation2 + $0x18] sm:$0xff]
        %v2019 = vld [vmem:[#allocation2 + $0x20] sm:$0xff]
        %v2020 = vld [vmem:[#allocation2 + $0x28] sm:$0xff]
        %v2021 = vld [vmem:[#allocation2 + $0x30] sm:$0xff]
        %v2022 = vld [vmem:[#allocation2 + $0x38] sm:$0xff]
        %v2023 = vld [vmem:[#allocation2 + $0x40] sm:$0xff]
        %v2024 = vld [vmem:[#allocation2 + $0x48] sm:$0xff]
        %v2025 = vld [vmem:[#allocation2 + $0x50] sm:$0xff]
        %v2026 = vld [vmem:[#allocation2 + $0x58] sm:$0xff]
        %v2027 = vld [vmem:[#allocation2 + $0x60] sm:$0xff]
        %v2028 = vld [vmem:[#allocation2 + $0x68] sm:$0xff]
        %v2029 = vld [vmem:[#allocation2 + $0x70] sm:$0xff]
        %v2030 = vld [vmem:[#allocation2 + $0x78] sm:$0xff]
        %v2031 = vld [vmem:[#allocation2 + $0x80] sm:$0xff]
        %v2032 = vld [vmem:[#allocation2 + $0x88] sm:$0xff]
        %v2033 = vld [vmem:[#allocation2 + $0x90] sm:$0xff]
        %v2034 = vld [vmem:[#allocation2 + $0x98] sm:$0xff]
        %v2035 = vld [vmem:[#allocation2 + $0xa0] sm:$0xff]
        %v2036 = vld [vmem:[#allocation2 + $0xa8] sm:$0xff]
        %v2037 = vld [vmem:[#allocation2 + $0xb0] sm:$0xff]
        %v2038 = vld [vmem:[#allocation2 + $0xb8] sm:$0xff]
        %v2039 = vld [vmem:[#allocation2 + $0xc0] sm:$0xff]
        %v2040 = vld [vmem:[#allocation2 + $0xc8] sm:$0xff]
        %v2041 = vld [vmem:[#allocation2 + $0xd0] sm:$0xff]
        %v2042 = vld [vmem:[#allocation2 + $0xd8] sm:$0xff]
        %v2043 = vld [vmem:[#allocation2 + $0xe0] sm:$0xff]
        %v2044 = vld [vmem:[#allocation2 + $0xe8] sm:$0xff]
        %v2045 = vld [vmem:[#allocation2 + $0xf0] sm:$0xff]
        %v2046 = vld [vmem:[#allocation2 + $0xf8] sm:$0xff]
        %v2047 = vld [vmem:[#allocation2 + $0x100] sm:$0xff]
        %v2048 = vld [vmem:[#allocation2 + $0x108] sm:$0xff]
        %v2049 = vld [vmem:[#allocation2 + $0x110] sm:$0xff]
        %v2050 = vld [vmem:[#allocation2 + $0x118] sm:$0xff]
        %v2051 = vld [vmem:[#allocation2 + $0x120] sm:$0xff]
        %v2052 = vld [vmem:[#allocation2 + $0x128] sm:$0xff]
        %v2053 = vld [vmem:[#allocation2 + $0x130] sm:$0xff]
        %v2054 = vld [vmem:[#allocation2 + $0x138] sm:$0xff]
        %v2055 = vld [vmem:[#allocation2 + $0x140] sm:$0xff]
        %v2056 = vld [vmem:[#allocation2 + $0x148] sm:$0xff]
        %v2057 = vld [vmem:[#allocation2 + $0x150] sm:$0xff]
        %v2058 = vld [vmem:[#allocation2 + $0x158] sm:$0xff]
        %v2059 = vld [vmem:[#allocation2 + $0x160] sm:$0xff]
        %v2060 = vld [vmem:[#allocation2 + $0x168] sm:$0xff]
        %v2061 = vld [vmem:[#allocation2 + $0x170] sm:$0xff]
        %v2062 = vld [vmem:[#allocation2 + $0x178] sm:$0xff]
        %v2063 = vld [vmem:[#allocation2 + $0x180] sm:$0xff]
        %v2064 = vld [vmem:[#allocation2 + $0x188] sm:$0xff]
        %v2065 = vld [vmem:[#allocation2 + $0x190] sm:$0xff]
        %v2066 = vld [vmem:[#allocation2 + $0x198] sm:$0xff]
        %v2067 = vld [vmem:[#allocation2 + $0x1a0] sm:$0xff]
        %v2068 = vld [vmem:[#allocation2 + $0x1a8] sm:$0xff]
        %v2069 = vld [vmem:[#allocation2 + $0x1b0] sm:$0xff]
        %v2070 = vld [vmem:[#allocation2 + $0x1b8] sm:$0xff]
        %v2071 = vld [vmem:[#allocation2 + $0x1c0] sm:$0xff]
        %v2072 = vld [vmem:[#allocation2 + $0x1c8] sm:$0xff]
        %v2073 = vld [vmem:[#allocation2 + $0x1d0] sm:$0xff]
        %v2074 = vld [vmem:[#allocation2 + $0x1d8] sm:$0xff]
        %v2075 = vld [vmem:[#allocation2 + $0x1e0] sm:$0xff]
        %v2076 = vld [vmem:[#allocation2 + $0x1e8] sm:$0xff]
        %v2077 = vld [vmem:[#allocation2 + $0x1f0] sm:$0xff]
        %v2078 = vld [vmem:[#allocation2 + $0x1f8] sm:$0xff]
        %v2079 = vld [vmem:[#allocation2 + $0x200] sm:$0xff]
        %v2080 = vld [vmem:[#allocation2 + $0x208] sm:$0xff]
        %v2081 = vld [vmem:[#allocation2 + $0x210] sm:$0xff]
        %v2082 = vld [vmem:[#allocation2 + $0x218] sm:$0xff]
        %v2083 = vld [vmem:[#allocation2 + $0x220] sm:$0xff]
        %v2084 = vld [vmem:[#allocation2 + $0x228] sm:$0xff]
        %v2085 = vld [vmem:[#allocation2 + $0x230] sm:$0xff]
        %v2086 = vld [vmem:[#allocation2 + $0x238] sm:$0xff]
        %v2087 = vld [vmem:[#allocation2 + $0x240] sm:$0xff]
        %v2088 = vld [vmem:[#allocation2 + $0x248] sm:$0xff]
        %v2089 = vld [vmem:[#allocation2 + $0x250] sm:$0xff]
        %v2090 = vld [vmem:[#allocation2 + $0x258] sm:$0xff]
        %v2091 = vld [vmem:[#allocation2 + $0x260] sm:$0xff]
        %v2092 = vld [vmem:[#allocation2 + $0x268] sm:$0xff]
        %v2093 = vld [vmem:[#allocation2 + $0x270] sm:$0xff]
        %v2094 = vld [vmem:[#allocation2 + $0x278] sm:$0xff]
        %v2095 = vld [vmem:[#allocation2 + $0x280] sm:$0xff]
        %v2096 = vld [vmem:[#allocation2 + $0x288] sm:$0xff]
        %v2097 = vld [vmem:[#allocation2 + $0x290] sm:$0xff]
        %v2098 = vld [vmem:[#allocation2 + $0x298] sm:$0xff]
        %v2099 = vld [vmem:[#allocation2 + $0x2a0] sm:$0xff]
        %v2100 = vld [vmem:[#allocation2 + $0x2a8] sm:$0xff]
        %v2101 = vld [vmem:[#allocation2 + $0x2b0] sm:$0xff]
        %v2102 = vld [vmem:[#allocation2 + $0x2b8] sm:$0xff]
        %v2103 = vld [vmem:[#allocation2 + $0x2c0] sm:$0xff]
        %v2104 = vld [vmem:[#allocation2 + $0x2c8] sm:$0xff]
        %v2105 = vld [vmem:[#allocation2 + $0x2d0] sm:$0xff]
        %v2106 = vld [vmem:[#allocation2 + $0x2d8] sm:$0xff]
        %v2107 = vld [vmem:[#allocation2 + $0x2e0] sm:$0xff]
        %v2108 = vld [vmem:[#allocation2 + $0x2e8] sm:$0xff]
        %v2109 = vld [vmem:[#allocation2 + $0x2f0] sm:$0xff]
        %v2110 = vld [vmem:[#allocation2 + $0x2f8] sm:$0xff]
        %v2111 = vld [vmem:[#allocation2 + $0x300] sm:$0xff]
        %v2112 = vld [vmem:[#allocation2 + $0x308] sm:$0xff]
        %v2113 = vld [vmem:[#allocation2 + $0x310] sm:$0xff]
        %v2114 = vld [vmem:[#allocation2 + $0x318] sm:$0xff]
        %v2115 = vld [vmem:[#allocation2 + $0x320] sm:$0xff]
        %v2116 = vld [vmem:[#allocation2 + $0x328] sm:$0xff]
        %v2117 = vld [vmem:[#allocation2 + $0x330] sm:$0xff]
        %v2118 = vld [vmem:[#allocation2 + $0x338] sm:$0xff]
        %v2119 = vld [vmem:[#allocation2 + $0x340] sm:$0xff]
        %v2120 = vld [vmem:[#allocation2 + $0x348] sm:$0xff]
        %v2121 = vld [vmem:[#allocation2 + $0x350] sm:$0xff]
        %v2122 = vld [vmem:[#allocation2 + $0x358] sm:$0xff]
        %v2123 = vld [vmem:[#allocation2 + $0x360] sm:$0xff]
        %v2124 = vld [vmem:[#allocation2 + $0x368] sm:$0xff]
        %v2125 = vld [vmem:[#allocation2 + $0x370] sm:$0xff]
        %v2126 = vld [vmem:[#allocation2 + $0x378] sm:$0xff]
        %v2127 = vld [vmem:[#allocation2 + $0x380] sm:$0xff]
        %v2128 = vld [vmem:[#allocation2 + $0x388] sm:$0xff]
        %v2129 = vld [vmem:[#allocation2 + $0x390] sm:$0xff]
        %v2130 = vld [vmem:[#allocation2 + $0x398] sm:$0xff]
        %v2131 = vld [vmem:[#allocation2 + $0x3a0] sm:$0xff]
        %v2132 = vld [vmem:[#allocation2 + $0x3a8] sm:$0xff]
        %v2133 = vld [vmem:[#allocation2 + $0x3b0] sm:$0xff]
        %v2134 = vld [vmem:[#allocation2 + $0x3b8] sm:$0xff]
        %v2135 = vld [vmem:[#allocation2 + $0x3c0] sm:$0xff]
        %v2136 = vld [vmem:[#allocation2 + $0x3c8] sm:$0xff]
        %v2137 = vld [vmem:[#allocation2 + $0x3d0] sm:$0xff]
        %v2138 = vld [vmem:[#allocation2 + $0x3d8] sm:$0xff]
        %v2139 = vld [vmem:[#allocation2 + $0x3e0] sm:$0xff]
        %v2140 = vld [vmem:[#allocation2 + $0x3e8] sm:$0xff]
        %v2141 = vld [vmem:[#allocation2 + $0x3f0] sm:$0xff]
        %v2142 = vld [vmem:[#allocation2 + $0x3f8] sm:$0xff]
        %2143 = vmatprep.subr.mxu0 %v2016
        %2144 = vmatpush1.msra.mxu0 %v2015
        %2145 = vmatprep.subr.mxu0 %v2024
        %2146 = vmatpush1.msra.mxu0 %v2023
        %2147 = vmatprep.subr.mxu0 %v2032
        %2148 = vmatpush1.msra.mxu0 %v2031
        %2149 = vmatprep.subr.mxu0 %v2040
        %2150 = vmatpush1.msra.mxu0 %v2039
        %2151 = vmatprep.subr.mxu0 %v2048
        %2152 = vmatpush1.msra.mxu0 %v2047
        %2153 = vmatprep.subr.mxu0 %v2056
        %2154 = vmatpush1.msra.mxu0 %v2055
        %2155 = vmatprep.subr.mxu0 %v2064
        %2156 = vmatpush1.msra.mxu0 %v2063
        %2157 = vmatprep.subr.mxu0 %v2072
        %2158 = vmatpush1.msra.mxu0 %v2071
        %2159 = vmatprep.subr.mxu0 %v2080
        %2160 = vmatpush1.msra.mxu0 %v2079
        %2161 = vmatprep.subr.mxu0 %v2088
        %2162 = vmatpush1.msra.mxu0 %v2087
        %2163 = vmatprep.subr.mxu0 %v2096
        %2164 = vmatpush1.msra.mxu0 %v2095
        %2165 = vmatprep.subr.mxu0 %v2104
        %2166 = vmatpush1.msra.mxu0 %v2103
        %2167 = vmatprep.subr.mxu0 %v2112
        %2168 = vmatpush1.msra.mxu0 %v2111
        %2169 = vmatprep.subr.mxu0 %v2120
        %2170 = vmatpush1.msra.mxu0 %v2119
        %2171 = vmatprep.subr.mxu0 %v2128
        %2172 = vmatpush1.msra.mxu0 %v2127
        %2173 = vmatprep.subr.mxu0 %v2136
        %2174 = vmatpush1.msra.mxu0 %v2135
        %2175 = vmatprep.subr.mxu0 0.0
        %2176 = vmatpush1.msra.mxu0 0.0
        %2177 = vmatprep.subr.mxu0 0.0
        %2178 = vmatpush1.msra.mxu0 0.0
        %2179 = vmatprep.subr.mxu0 0.0
        %2180 = vmatpush1.msra.mxu0 0.0
        %2181 = vmatprep.subr.mxu0 0.0
        %2182 = vmatpush1.msra.mxu0 0.0
        %2183 = vmatprep.subr.mxu0 0.0
        %2184 = vmatpush1.msra.mxu0 0.0
        %2185 = vmatprep.subr.mxu0 0.0
        %2186 = vmatpush1.msra.mxu0 0.0
        %2187 = vmatprep.subr.mxu0 0.0
        %2188 = vmatpush1.msra.mxu0 0.0
        %2189 = vmatprep.subr.mxu0 0.0
        %2190 = vmatpush1.msra.mxu0 0.0
        %2191 = vmatprep.subr.mxu0 0.0
        %2192 = vmatpush1.msra.mxu0 0.0
        %2193 = vmatprep.subr.mxu0 0.0
        %2194 = vmatpush1.msra.mxu0 0.0
        %2195 = vmatprep.subr.mxu0 0.0
        %2196 = vmatpush1.msra.mxu0 0.0
        %2197 = vmatprep.subr.mxu0 0.0
        %2198 = vmatpush1.msra.mxu0 0.0
        %2199 = vmatprep.subr.mxu0 0.0
        %2200 = vmatpush1.msra.mxu0 0.0
        %2201 = vmatprep.subr.mxu0 0.0
        %2202 = vmatpush1.msra.mxu0 0.0
        %2203 = vmatprep.subr.mxu0 0.0
        %2204 = vmatpush1.msra.mxu0 0.0
        %2205 = vmatprep.subr.mxu0 0.0
        %2206 = vmatpush1.msra.mxu0 0.0
        %2207 = vmatprep.mubr.f32.mxu0 0.0
        %2208 = vmatmul.mubr.f32.gmra.mrb[0].mxu0 %v2011
        %v2209 = vpop.f32.mrb[0].mxu0
        %v2210 = vadd.f32 0.0, %v2209
        %v2211 = vpop.f32.mrb[0].mxu0
        %v2212 = vadd.f32 0.0, %v2211
        %2213 = vmatprep.mubr.f32.mxu0 0.0
        %2214 = vmatmul.mubr.f32.gmra.mrb[0].mxu0 %v2012
        %v2215 = vpop.f32.mrb[0].mxu0
        %v2216 = vpop.f32.mrb[0].mxu0
        %2217 = vdwg.mxu0
        %2218 = vmatprep.subr.mxu0 %v2018
        %2219 = vmatpush1.msra.mxu0 %v2017
        %2220 = vmatprep.subr.mxu0 %v2026
        %2221 = vmatpush1.msra.mxu0 %v2025
        %2222 = vmatprep.subr.mxu0 %v2034
        %2223 = vmatpush1.msra.mxu0 %v2033
        %2224 = vmatprep.subr.mxu0 %v2042
        %2225 = vmatpush1.msra.mxu0 %v2041
        %2226 = vmatprep.subr.mxu0 %v2050
        %2227 = vmatpush1.msra.mxu0 %v2049
        %2228 = vmatprep.subr.mxu0 %v2058
        %2229 = vmatpush1.msra.mxu0 %v2057
        %2230 = vmatprep.subr.mxu0 %v2066
        %2231 = vmatpush1.msra.mxu0 %v2065
        %2232 = vmatprep.subr.mxu0 %v2074
        %2233 = vmatpush1.msra.mxu0 %v2073
        %2234 = vmatprep.subr.mxu0 %v2082
        %2235 = vmatpush1.msra.mxu0 %v2081
        %2236 = vmatprep.subr.mxu0 %v2090
        %2237 = vmatpush1.msra.mxu0 %v2089
        %2238 = vmatprep.subr.mxu0 %v2098
        %2239 = vmatpush1.msra.mxu0 %v2097
        %2240 = vmatprep.subr.mxu0 %v2106
        %2241 = vmatpush1.msra.mxu0 %v2105
        %2242 = vmatprep.subr.mxu0 %v2114
        %2243 = vmatpush1.msra.mxu0 %v2113
        %2244 = vmatprep.subr.mxu0 %v2122
        %2245 = vmatpush1.msra.mxu0 %v2121
        %2246 = vmatprep.subr.mxu0 %v2130
        %2247 = vmatpush1.msra.mxu0 %v2129
        %2248 = vmatprep.subr.mxu0 %v2138
        %2249 = vmatpush1.msra.mxu0 %v2137
        %2250 = vmatprep.subr.mxu0 0.0
        %2251 = vmatpush1.msra.mxu0 0.0
        %2252 = vmatprep.subr.mxu0 0.0
        %2253 = vmatpush1.msra.mxu0 0.0
        %2254 = vmatprep.subr.mxu0 0.0
        %2255 = vmatpush1.msra.mxu0 0.0
        %2256 = vmatprep.subr.mxu0 0.0
        %2257 = vmatpush1.msra.mxu0 0.0
        %2258 = vmatprep.subr.mxu0 0.0
        %2259 = vmatpush1.msra.mxu0 0.0
        %2260 = vmatprep.subr.mxu0 0.0
        %2261 = vmatpush1.msra.mxu0 0.0
        %2262 = vmatprep.subr.mxu0 0.0
        %2263 = vmatpush1.msra.mxu0 0.0
        %2264 = vmatprep.subr.mxu0 0.0
        %2265 = vmatpush1.msra.mxu0 0.0
        %2266 = vmatprep.subr.mxu0 0.0
        %2267 = vmatpush1.msra.mxu0 0.0
        %2268 = vmatprep.subr.mxu0 0.0
        %2269 = vmatpush1.msra.mxu0 0.0
        %2270 = vmatprep.subr.mxu0 0.0
        %2271 = vmatpush1.msra.mxu0 0.0
        %2272 = vmatprep.subr.mxu0 0.0
        %2273 = vmatpush1.msra.mxu0 0.0
        %2274 = vmatprep.subr.mxu0 0.0
        %2275 = vmatpush1.msra.mxu0 0.0
        %2276 = vmatprep.subr.mxu0 0.0
        %2277 = vmatpush1.msra.mxu0 0.0
        %2278 = vmatprep.subr.mxu0 0.0
        %2279 = vmatpush1.msra.mxu0 0.0
        %2280 = vmatprep.subr.mxu0 0.0
        %2281 = vmatpush1.msra.mxu0 0.0
        %2282 = vmatprep.mubr.f32.mxu0 0.0
        %2283 = vmatmul.mubr.f32.gmra.mrb[0].mxu0 %v2011
        %v2284 = vpop.f32.mrb[0].mxu0
        %v2285 = vadd.f32 0.0, %v2284
        %v2286 = vpop.f32.mrb[0].mxu0
        %v2287 = vadd.f32 0.0, %v2286
        %2288 = vmatprep.mubr.f32.mxu0 0.0
        %2289 = vmatmul.mubr.f32.gmra.mrb[0].mxu0 %v2012
        %v2290 = vpop.f32.mrb[0].mxu0
        %v2291 = vpop.f32.mrb[0].mxu0
        %2292 = vdwg.mxu0
        %2293 = vmatprep.subr.mxu0 %v2020
        %2294 = vmatpush1.msra.mxu0 %v2019
        %2295 = vmatprep.subr.mxu0 %v2028
        %2296 = vmatpush1.msra.mxu0 %v2027
        %2297 = vmatprep.subr.mxu0 %v2036
        %2298 = vmatpush1.msra.mxu0 %v2035
        %2299 = vmatprep.subr.mxu0 %v2044
        %2300 = vmatpush1.msra.mxu0 %v2043
        %2301 = vmatprep.subr.mxu0 %v2052
        %2302 = vmatpush1.msra.mxu0 %v2051
        %2303 = vmatprep.subr.mxu0 %v2060
        %2304 = vmatpush1.msra.mxu0 %v2059
        %2305 = vmatprep.subr.mxu0 %v2068
        %2306 = vmatpush1.msra.mxu0 %v2067
        %2307 = vmatprep.subr.mxu0 %v2076
        %2308 = vmatpush1.msra.mxu0 %v2075
        %2309 = vmatprep.subr.mxu0 %v2084
        %2310 = vmatpush1.msra.mxu0 %v2083
        %2311 = vmatprep.subr.mxu0 %v2092
        %2312 = vmatpush1.msra.mxu0 %v2091
        %2313 = vmatprep.subr.mxu0 %v2100
        %2314 = vmatpush1.msra.mxu0 %v2099
        %2315 = vmatprep.subr.mxu0 %v2108
        %2316 = vmatpush1.msra.mxu0 %v2107
        %2317 = vmatprep.subr.mxu0 %v2116
        %2318 = vmatpush1.msra.mxu0 %v2115
        %2319 = vmatprep.subr.mxu0 %v2124
        %2320 = vmatpush1.msra.mxu0 %v2123
        %2321 = vmatprep.subr.mxu0 %v2132
        %2322 = vmatpush1.msra.mxu0 %v2131
        %2323 = vmatprep.subr.mxu0 %v2140
        %2324 = vmatpush1.msra.mxu0 %v2139
        %2325 = vmatprep.subr.mxu0 0.0
        %2326 = vmatpush1.msra.mxu0 0.0
        %2327 = vmatprep.subr.mxu0 0.0
        %2328 = vmatpush1.msra.mxu0 0.0
        %2329 = vmatprep.subr.mxu0 0.0
        %2330 = vmatpush1.msra.mxu0 0.0
        %2331 = vmatprep.subr.mxu0 0.0
        %2332 = vmatpush1.msra.mxu0 0.0
        %2333 = vmatprep.subr.mxu0 0.0
        %2334 = vmatpush1.msra.mxu0 0.0
        %2335 = vmatprep.subr.mxu0 0.0
        %2336 = vmatpush1.msra.mxu0 0.0
        %2337 = vmatprep.subr.mxu0 0.0
        %2338 = vmatpush1.msra.mxu0 0.0
        %2339 = vmatprep.subr.mxu0 0.0
        %2340 = vmatpush1.msra.mxu0 0.0
        %2341 = vmatprep.subr.mxu0 0.0
        %2342 = vmatpush1.msra.mxu0 0.0
        %2343 = vmatprep.subr.mxu0 0.0
        %2344 = vmatpush1.msra.mxu0 0.0
        %2345 = vmatprep.subr.mxu0 0.0
        %2346 = vmatpush1.msra.mxu0 0.0
        %2347 = vmatprep.subr.mxu0 0.0
        %2348 = vmatpush1.msra.mxu0 0.0
        %2349 = vmatprep.subr.mxu0 0.0
        %2350 = vmatpush1.msra.mxu0 0.0
        %2351 = vmatprep.subr.mxu0 0.0
        %2352 = vmatpush1.msra.mxu0 0.0
        %2353 = vmatprep.subr.mxu0 0.0
        %2354 = vmatpush1.msra.mxu0 0.0
        %2355 = vmatprep.subr.mxu0 0.0
        %2356 = vmatpush1.msra.mxu0 0.0
        %2357 = vmatprep.mubr.f32.mxu0 0.0
        %2358 = vmatmul.mubr.f32.gmra.mrb[0].mxu0 %v2011
        %v2359 = vpop.f32.mrb[0].mxu0
        %v2360 = vpop.f32.mrb[0].mxu0
        %2361 = vmatprep.mubr.f32.mxu0 0.0
        %2362 = vmatmul.mubr.f32.gmra.mrb[0].mxu0 %v2012
        %v2363 = vpop.f32.mrb[0].mxu0
        %v2364 = vadd.f32 0.0, %v2363
        %v2365 = vpop.f32.mrb[0].mxu0
        %v2366 = vadd.f32 0.0, %v2365
        %2367 = vdwg.mxu0
        %2368 = vmatprep.subr.mxu0 %v2022
        %2369 = vmatpush1.msra.mxu0 %v2021
        %2370 = vmatprep.subr.mxu0 %v2030
        %2371 = vmatpush1.msra.mxu0 %v2029
        %2372 = vmatprep.subr.mxu0 %v2038
        %2373 = vmatpush1.msra.mxu0 %v2037
        %2374 = vmatprep.subr.mxu0 %v2046
        %2375 = vmatpush1.msra.mxu0 %v2045
        %2376 = vmatprep.subr.mxu0 %v2054
        %2377 = vmatpush1.msra.mxu0 %v2053
        %2378 = vmatprep.subr.mxu0 %v2062
        %2379 = vmatpush1.msra.mxu0 %v2061
        %2380 = vmatprep.subr.mxu0 %v2070
        %2381 = vmatpush1.msra.mxu0 %v2069
        %2382 = vmatprep.subr.mxu0 %v2078
        %2383 = vmatpush1.msra.mxu0 %v2077
        %2384 = vmatprep.subr.mxu0 %v2086
        %2385 = vmatpush1.msra.mxu0 %v2085
        %2386 = vmatprep.subr.mxu0 %v2094
        %2387 = vmatpush1.msra.mxu0 %v2093
        %2388 = vmatprep.subr.mxu0 %v2102
        %2389 = vmatpush1.msra.mxu0 %v2101
        %2390 = vmatprep.subr.mxu0 %v2110
        %2391 = vmatpush1.msra.mxu0 %v2109
        %2392 = vmatprep.subr.mxu0 %v2118
        %2393 = vmatpush1.msra.mxu0 %v2117
        %2394 = vmatprep.subr.mxu0 %v2126
        %2395 = vmatpush1.msra.mxu0 %v2125
        %2396 = vmatprep.subr.mxu0 %v2134
        %2397 = vmatpush1.msra.mxu0 %v2133
        %2398 = vmatprep.subr.mxu0 %v2142
        %2399 = vmatpush1.msra.mxu0 %v2141
        %2400 = vmatprep.subr.mxu0 0.0
        %2401 = vmatpush1.msra.mxu0 0.0
        %2402 = vmatprep.subr.mxu0 0.0
        %2403 = vmatpush1.msra.mxu0 0.0
        %2404 = vmatprep.subr.mxu0 0.0
        %2405 = vmatpush1.msra.mxu0 0.0
        %2406 = vmatprep.subr.mxu0 0.0
        %2407 = vmatpush1.msra.mxu0 0.0
        %2408 = vmatprep.subr.mxu0 0.0
        %2409 = vmatpush1.msra.mxu0 0.0
        %2410 = vmatprep.subr.mxu0 0.0
        %2411 = vmatpush1.msra.mxu0 0.0
        %2412 = vmatprep.subr.mxu0 0.0
        %2413 = vmatpush1.msra.mxu0 0.0
        %2414 = vmatprep.subr.mxu0 0.0
        %2415 = vmatpush1.msra.mxu0 0.0
        %2416 = vmatprep.subr.mxu0 0.0
        %2417 = vmatpush1.msra.mxu0 0.0
        %2418 = vmatprep.subr.mxu0 0.0
        %2419 = vmatpush1.msra.mxu0 0.0
        %2420 = vmatprep.subr.mxu0 0.0
        %2421 = vmatpush1.msra.mxu0 0.0
        %2422 = vmatprep.subr.mxu0 0.0
        %2423 = vmatpush1.msra.mxu0 0.0
        %2424 = vmatprep.subr.mxu0 0.0
        %2425 = vmatpush1.msra.mxu0 0.0
        %2426 = vmatprep.subr.mxu0 0.0
        %2427 = vmatpush1.msra.mxu0 0.0
        %2428 = vmatprep.subr.mxu0 0.0
        %2429 = vmatpush1.msra.mxu0 0.0
        %2430 = vmatprep.subr.mxu0 0.0
        %2431 = vmatpush1.msra.mxu0 0.0
        %2432 = vmatprep.mubr.f32.mxu0 0.0
        %2433 = vmatmul.mubr.f32.gmra.mrb[0].mxu0 %v2011
        %v2434 = vpop.f32.mrb[0].mxu0
        %v2435 = vpop.f32.mrb[0].mxu0
        %2436 = vmatprep.mubr.f32.mxu0 0.0
        %2437 = vmatmul.mubr.f32.gmra.mrb[0].mxu0 %v2012
        %v2438 = vpop.f32.mrb[0].mxu0
        %v2439 = vadd.f32 0.0, %v2438
        %v2440 = vpop.f32.mrb[0].mxu0
        %v2441 = vadd.f32 0.0, %v2440
        %2442 = vdwg.mxu0
        %s2443 = scalar_lea.vmem %s336, 96 [#allocation6]
        %v2444 = vld [vmem:[%s2443] sm:$0xff]
        %v2445 = vld [vmem:[%s2443 + $0x8] sm:$0xff]
        %v2446 = vld [vmem:[%s2443 + $0x10] sm:$0xff]
        %v2447 = vld [vmem:[%s2443 + $0x18] sm:$0xff]
        %v2448 = vadd.f32 %v2444, %v2210
        %v2449 = vadd.f32 %v2445, %v2212
        %v2450 = vadd.f32 %v2446, %v2285
        %v2451 = vadd.f32 %v2447, %v2287
        %v2452 = vld [vmem:[%s345] sm:$0xff]
        %v2453 = vld [vmem:[%s345 + $0x8] sm:$0xff]
        %v2454 = vld [vmem:[%s345 + $0x10] sm:$0xff]
        %v2455 = vld [vmem:[%s345 + $0x18] sm:$0xff]
        %v2456 = vadd.f32 %v2452, %v2364
        %v2457 = vadd.f32 %v2453, %v2366
        %v2458 = vadd.f32 %v2454, %v2439
        %v2459 = vadd.f32 %v2455, %v2441
        %v2460 = vxor.u32 %v2448, 2147483648
        %v2461 = vmul.f32 %v2460, 1.442695
        %v2462 = vpow.pop %v2461
        %v2463 = vadd.f32 %v2462, 1.0
        %v2464 = vrcp.pop %v2463
        %v2465 = vmul.f32 1.0, %v2464
        %v2466 = vxor.u32 %v2449, 2147483648
        %v2467 = vmul.f32 %v2466, 1.442695
        %v2468 = vpow.pop %v2467
        %v2469 = vadd.f32 %v2468, 1.0
        %v2470 = vrcp.pop %v2469
        %v2471 = vmul.f32 1.0, %v2470
        %v2472 = vtanh.pop %v2450
        %v2473 = vxor.u32 %v2451, 2147483648
        %v2474 = vmul.f32 %v2473, 1.442695
        %v2475 = vpow.pop %v2474
        %v2476 = vadd.f32 %v2475, 1.0
        %v2477 = vrcp.pop %v2476
        %v2478 = vmul.f32 1.0, %v2477
        %v2479 = vmul.f32 %v2471, %v2013
        %v2480 = vmul.f32 %v2465, %v2472
        %v2481 = vadd.f32 %v2479, %v2480
        %v2482 = vtanh.pop %v2481
        %v2483 = vmul.f32 %v2478, %v2482
        %v2484 = vxor.u32 %v2456, 2147483648
        %v2485 = vmul.f32 %v2484, 1.442695
        %v2486 = vpow.pop %v2485
        %v2487 = vadd.f32 %v2486, 1.0
        %v2488 = vrcp.pop %v2487
        %v2489 = vmul.f32 1.0, %v2488
        %v2490 = vxor.u32 %v2457, 2147483648
        %v2491 = vmul.f32 %v2490, 1.442695
        %v2492 = vpow.pop %v2491
        %v2493 = vadd.f32 %v2492, 1.0
        %v2494 = vrcp.pop %v2493
        %v2495 = vmul.f32 1.0, %v2494
        %v2496 = vtanh.pop %v2458
        %v2497 = vxor.u32 %v2459, 2147483648
        %v2498 = vmul.f32 %v2497, 1.442695
        %v2499 = vpow.pop %v2498
        %v2500 = vadd.f32 %v2499, 1.0
        %v2501 = vrcp.pop %v2500
        %v2502 = vmul.f32 1.0, %v2501
        %v2503 = vmul.f32 %v2495, %v2014
        %v2504 = vmul.f32 %v2489, %v2496
        %v2505 = vadd.f32 %v2503, %v2504
        %v2506 = vtanh.pop %v2505
        %v2507 = vmul.f32 %v2502, %v2506
        %v2508 = vstv %s2010
        %vm2509 = vcmp.lt.s32.totalorder %v2508, %v425
        %v2510 = vstv %s428
        %vm2511 = vcmp.lt.s32.totalorder %v2510, %v425
        %v2512 = vsel %vm2509, 1, 0
        %2513 = vset.pattern.permute.xlu0 0
        %2514 = vperm.xlu0 %2513, %v2512
        %v2515 = vpop.permute.xlu0 %2514
        %vm2516 = vcmp.eq.s32.totalorder %v2515, 1
        %v2517 = vsel %vm2516, %v2483, %v2011
        %2518 = vst [vmem:[#allocation4] sm:$0xff] %v2517
        %v2519 = vsel %vm2516, %v2481, %v2013
        %2520 = vst [vmem:[#allocation5] sm:$0xff] %v2519
        %v2521 = vsel %vm2511, 1, 0
        %2522 = vset.pattern.permute.xlu0 0
        %2523 = vperm.xlu0 %2522, %v2521
        %v2524 = vpop.permute.xlu0 %2523
        %vm2525 = vcmp.eq.s32.totalorder %v2524, 1
        %v2526 = vsel %vm2525, %v2507, %v2012
        %2527 = vst [vmem:[#allocation4 + $0x8] sm:$0xff] %v2526
        %v2528 = vsel %vm2525, %v2505, %v2014
        %2529 = vst [vmem:[#allocation5 + $0x8] sm:$0xff] %v2528
        %v2530 = vsel %vm2516, %v2483, 0.0
        %s2531 = scalar_lea.vmem %s380, 24 [#allocation12]
        %2532 = vst [vmem:[%s2531] sm:$0xff] %v2530
        %v2533 = vsel %vm2525, %v2507, 0.0
        %2534 = vst [vmem:[%s387] sm:$0xff] %v2533
        %p2535 = scmp.eq.s32.totalorder %s34, 2
        // Predicated region
        $region61: #{tpu_custom_call.1} parent=39 // pred_check
          %p2536 = pneg %p2535
        $region62: #{tpu_custom_call.1} parent=39 // pred_check_branch
          %2538 = sbr.rel (%p2536) target = $region64
        $region63: #{tpu_custom_call.1} parent=39 // pred_region
          %v2539 = vld [vmem:[#allocation4] sm:$0xff]
          %v2540 = vld [vmem:[#allocation4 + $0x8] sm:$0xff]
          %2541 = vst [vmem:[#allocation15] sm:$0xff] %v2539
          %2542 = vst [vmem:[#allocation15 + $0x8] sm:$0xff] %v2540
          %v2543 = vld [vmem:[#allocation5] sm:$0xff]
          %v2544 = vld [vmem:[#allocation5 + $0x8] sm:$0xff]
          %2545 = vst [vmem:[#allocation16] sm:$0xff] %v2543
          %2546 = vst [vmem:[#allocation16 + $0x8] sm:$0xff] %v2544
        $region64: #{tpu_custom_call.1} parent=39 // pred_fallthru
          _
        %s2547 = sand.u32 %s159, 1
        %s2548 = scalar_lea.sflag [#allocation8], %s2547
        %s2549 = sand.u32 %s159, 1
        %s2550 = smul.addr %s2549, 32
        %s2551 = scalar_lea.vmem [#allocation12], %s2550
        %s2552 = sand.u32 %s34, 1
        %s2553 = scalar_lea.sflag [#allocation14], %s2552
        %s2554 = sand.u32 %s187, 1
        %s2555 = smul.addr %s2554, 32
        %s2556 = scalar_lea.vmem [#allocation13], %s2555
        // Predicated region
        $region65: #{tpu_custom_call.1} parent=39 // pred_check
          %p2557 = pneg %p169
        $region66: #{tpu_custom_call.1} parent=39 // pred_check_branch
          %2559 = sbr.rel (%p2557) target = $region68
        $region67: #{tpu_custom_call.1} parent=39 // pred_region
          %s2560 = smul.u32 4, %s34
          %s2562 = ssub.s32 512, 512
          %2563 = vsyncadd %s2548, %s2562
          %s2564 = smul.addr %s2560, 128
          %s2565 = scalar_lea.hbm %s6, %s2564
          %s2566 = sshll.u32 %s2551, 4
          %s2567 = int_to_ptr.vmem [resolvable:$true] %s2566
          %2572 = dma.vmem_to_hbm [thread:$0]  %s2567, 512, %s2565, %s2548, 128, 128, 8
        $region68: #{tpu_custom_call.1} parent=39 // pred_fallthru
          _
        // Predicated region
        $region69: #{tpu_custom_call.1} parent=39 // pred_check
          %p2573 = pneg %p197
        $region70: #{tpu_custom_call.1} parent=39 // pred_check_branch
          %2575 = sbr.rel (%p2573) target = $region72
        $region71: #{tpu_custom_call.1} parent=39 // pred_region
          %s2576 = ssub.s32 2, %s34
          %s2577 = smul.u32 4, %s2576
          %s2579 = ssub.s32 512, 512
          %2580 = vsyncadd %s2553, %s2579
          %s2581 = smul.addr %s2577, 128
          %s2582 = scalar_lea.hbm %s7, %s2581
          %s2583 = sshll.u32 %s2556, 4
          %s2584 = int_to_ptr.vmem [resolvable:$true] %s2583
          %2589 = dma.vmem_to_hbm [thread:$0]  %s2584, 512, %s2582, %s2553, 128, 128, 8
        $region72: #{tpu_custom_call.1} parent=39 // pred_fallthru
          _
        // Predicated region
        $region73: #{tpu_custom_call.1} parent=39 // pred_check
          %p2590 = pneg %p218
        $region74: #{tpu_custom_call.1} parent=39 // pred_check_branch
          %2592 = sbr.rel (%p2590) target = $region76
        $region75: #{tpu_custom_call.1} parent=39 // pred_region
          %s2594 = ssub.s32 256, 256
          %2595 = vsyncadd [#allocation14], %s2594
          %s2596 = sshll.u32 [#allocation15], 4
          %s2597 = int_to_ptr.vmem [resolvable:$true] %s2596
          %2602 = dma.vmem_to_hbm [thread:$0]  %s2597, 256, %s8, [#allocation14], 128, 128, 8
        $region76: #{tpu_custom_call.1} parent=39 // pred_fallthru
          _
        // Predicated region
        $region77: #{tpu_custom_call.1} parent=39 // pred_check
          %p2603 = pneg %p239
        $region78: #{tpu_custom_call.1} parent=39 // pred_check_branch
          %2605 = sbr.rel (%p2603) target = $region80
        $region79: #{tpu_custom_call.1} parent=39 // pred_region
          %s2607 = ssub.s32 256, 256
          %2608 = vsyncadd [#allocation17], %s2607
          %s2609 = sshll.u32 [#allocation16], 4
          %s2610 = int_to_ptr.vmem [resolvable:$true] %s2609
          %2615 = dma.vmem_to_hbm [thread:$0]  %s2610, 256, %s9, [#allocation17], 128, 128, 8
        $region80: #{tpu_custom_call.1} parent=39 // pred_fallthru
          _
        // Predicated region
        $region81: #{tpu_custom_call.1} parent=39 // pred_check
          %p2616 = pneg %p218
        $region82: #{tpu_custom_call.1} parent=39 // pred_check_branch
          %2618 = sbr.rel (%p2616) target = $region84
        $region83: #{tpu_custom_call.1} parent=39 // pred_region
          %2619 = dma.done [#allocation14], 256
        $region84: #{tpu_custom_call.1} parent=39 // pred_fallthru
          _
        // Predicated region
        $region85: #{tpu_custom_call.1} parent=39 // pred_check
          %p2620 = pneg %p239
        $region86: #{tpu_custom_call.1} parent=39 // pred_check_branch
          %2622 = sbr.rel (%p2620) target = $region88
        $region87: #{tpu_custom_call.1} parent=39 // pred_region
          %2623 = dma.done [#allocation17], 256
        $region88: #{tpu_custom_call.1} parent=39 // pred_fallthru
          _
      $region40: #{tpu_custom_call.1} parent=5 // pred_fallthru
        _
      %p2624 = scmp.le.s32.totalorder 2, %s29
      // Predicated region
      $region89: #{tpu_custom_call.1} parent=5 // pred_check
        %p2625 = pneg %p2624
      $region90: #{tpu_custom_call.1} parent=5 // pred_check_branch
        %2627 = sbr.rel (%p2625) target = $region92
      $region91: #{tpu_custom_call.1} parent=5 // pred_region
        %s2628 = ssub.s32 %s29, 2
        // Predicated region
        $region93: #{tpu_custom_call.1} parent=91 // pred_check
          %p2629 = pneg %p175
        $region94: #{tpu_custom_call.1} parent=91 // pred_check_branch
          %2631 = sbr.rel (%p2629) target = $region96
        $region95: #{tpu_custom_call.1} parent=91 // pred_region
          %s2632 = sand.u32 %s160, 1
          %s2633 = scalar_lea.sflag [#allocation8], %s2632
          %s2634 = sand.u32 %s160, 1
          %s2635 = smul.addr %s2634, 32
          %s2636 = scalar_lea.vmem [#allocation12], %s2635
          %2637 = dma.done %s2633, 512
        $region96: #{tpu_custom_call.1} parent=91 // pred_fallthru
          _
        // Predicated region
        $region97: #{tpu_custom_call.1} parent=91 // pred_check
          %p2638 = pneg %p203
        $region98: #{tpu_custom_call.1} parent=91 // pred_check_branch
          %2640 = sbr.rel (%p2638) target = $region100
        $region99: #{tpu_custom_call.1} parent=91 // pred_region
          %s2641 = sand.u32 %s35, 1
          %s2642 = scalar_lea.sflag [#allocation14], %s2641
          %s2643 = sand.u32 %s188, 1
          %s2644 = smul.addr %s2643, 32
          %s2645 = scalar_lea.vmem [#allocation13], %s2644
          %2646 = dma.done %s2642, 512
        $region100: #{tpu_custom_call.1} parent=91 // pred_fallthru
          _
      $region92: #{tpu_custom_call.1} parent=5 // pred_fallthru
        _
    $region6: #{tpu_custom_call.1} parent=1 // loop_footer
      %s33 = sadd.s32 1, %s29
    $region7: #{tpu_custom_call.1} parent=1 // loop_footer_branch
      %28 = sbr.rel target = $region3
    $region8: #{tpu_custom_call.1} parent=1 // loop_exit
      _
    %2647 = vsyncpa [#allocation7], 1
    %s2648 = scalar_lea.sflag [#allocation7], 1
    %2649 = vsyncpa %s2648, 1
    %2650 = vsyncpa [#allocation10], 1
    %s2651 = scalar_lea.sflag [#allocation10], 1
    %2652 = vsyncpa %s2651, 1
    %2653 = vsyncpa [#allocation8], 1
    %s2654 = scalar_lea.sflag [#allocation8], 1
    %2655 = vsyncpa %s2654, 1
    %2656 = vsyncpa [#allocation14], 1
    %s2657 = scalar_lea.sflag [#allocation14], 1
    %2658 = vsyncpa %s2657, 1
    %2659 = vsyncpa [#allocation17], 1
  %2660 = vsyncmov [#allocation3]
  %s2661 = vpop.sfrf %2660
  %p2662 = scmp.eq.s32.totalorder %s2661, 0
  %p2663 = pneg %p2662
  %2665 = shalt.err (%p2663)

</llo_original>
